<compile_context>
chip_gen: v6e
topology: v6e:2x2x1
jax: 0.10.0
libtpu: 0.0.40
codegen_flags: <defaults>
</compile_context>

<pallas_src>
import jax
import jax.numpy as jnp
from jax import lax
from jax.experimental import pallas as pl
from jax.experimental.pallas import tpu as pltpu

# ----------------------- small, module-consistent config --------------------
IN_DIM   = 48                 # raw note-feature dim fed to the note embedder
NOTE_SZ  = 32                 # net_param.note.size == LSTM hidden size
ENC_SZ   = 32                 # net_param.encoder.size  (2*ENC_SZ == 2*NOTE_SZ)
N_HEAD   = 8                  # net_param.num_attention_head
N_LABEL  = 16                 # net_param.num_label
N_LAYERS = 2                  # note.layer + voice.layer + beat.layer + measure.layer
B, T     = 2, 8
TWO_E    = 2 * ENC_SZ
HEAD_SZ  = TWO_E // N_HEAD
H        = NOTE_SZ


# ------------------------- weight-slab static layout -------------------------
def _align8(n):
    return ((n + 7) // 8) * 8


def _build_layout():
    # Each entry gets its own 8-aligned row range at column offset 0.
    entries = [
        ('W0',    (IN_DIM, 8 * H)),        # embedder folded into layer-0 W_ih (fwd|bwd)
        ('WHH0',  (2 * H, 8 * H)),         # block-diagonal [whh0f ; whh0b]
        ('WIH1',  (2 * H, 8 * H)),         # [wih1f | wih1b]
        ('WHH1',  (2 * H, 8 * H)),         # block-diagonal [whh1f ; whh1b]
        ('WHEAD', (TWO_E, 2 * TWO_E)),     # [wc | wc @ wa]  (contractor folded into attn)
        ('W1',    (TWO_E, TWO_E)),
        ('W2',    (TWO_E, N_LABEL)),
        ('CTX',   (TWO_E, N_HEAD)),
        ('EXP',   (N_HEAD, TWO_E)),
        ('SELT',  (T * B, B)),
        ('SEL',   (B, T * B)),
        ('B0',    (1, 8 * H)),
        ('B1',    (1, 8 * H)),
        ('BHEAD', (1, 2 * TWO_E)),
        ('B1H',   (1, TWO_E)),
        ('B2H',   (1, N_LABEL)),
    ]
    layout, row = {}, 0
    for name, shape in entries:
        layout[name] = (row, shape)
        row += _align8(shape[0])
    return layout, _align8(row)


_LAYOUT, SLAB_ROWS = _build_layout()
SLAB_COLS = 8 * H                          # 256 lanes (widest entry)


# ------------------------------ fused kernel ---------------------------------
def _virtuoso_kernel(x_ref, slab_ref, o_ref, s0f_ref, s0b_ref, s1f_ref, s1b_ref):
    """x_ref is time-major flattened: row r = (t, b) with r = t*B + b."""
    Bn, Tn = B, T

    def get(name):
        r0, (nr, nc) = _LAYOUT[name]
        return slab_ref[r0:r0 + nr, 0:nc]          # static view -> single load

    def dot(a, b_):
        return jnp.dot(a, b_, preferred_element_type=jnp.float32)

    def sigmoid(v):
        return 1.0 / (1.0 + jnp.exp(-v))

    # LSTM cell gate math (PyTorch gate order i, f, g, o) for one direction.
    def cell(g, c_prev):
        i = sigmoid(g[:, 0:H])
        f = sigmoid(g[:, H:2 * H])
        gg = jnp.tanh(g[:, 2 * H:3 * H])
        o = sigmoid(g[:, 3 * H:4 * H])
        c = f * c_prev + i * gg
        return o * jnp.tanh(c), c

    def bi_layer(gx_cat, whh_bd, outf_ref, outb_ref):
        """Bidirectional layer with a single merged h@W_hh matmul per step.

        gx_cat: (T*B, 8H) hoisted x@W_ih + bias; cols [0,4H)=fwd, [4H,8H)=bwd.
        whh_bd: (2H, 8H) block-diagonal so [hf|hb] @ whh_bd gives both gate
        contributions in one MXU pass (halves serial matmuls on the critical
        path).  Outputs go to separate fwd/bwd scratch (lane-aligned stores).
        """
        hc = jnp.zeros((Bn, 2 * H), jnp.float32)        # [hf | hb]
        cf = jnp.zeros((Bn, H), jnp.float32)
        cb = jnp.zeros((Bn, H), jnp.float32)
        # T=8 -> static unroll is fine; switch to lax.fori_loop for large T.
        for t in range(Tn):
            tr = Tn - 1 - t
            gh = dot(hc, whh_bd)                                          # (B, 8H)
            gf = gx_cat[t * Bn:(t + 1) * Bn, 0:4 * H] + gh[:, 0:4 * H]
            gb = gx_cat[tr * Bn:(tr + 1) * Bn, 4 * H:8 * H] + gh[:, 4 * H:8 * H]
            hf, cf = cell(gf, cf)
            hb, cb = cell(gb, cb)
            hc = jnp.concatenate([hf, hb], axis=-1)
            # Lane-aligned full-width stores (sublane-masked only); batching 4
            # timesteps per store would fully align them but the stores are off
            # the recurrence critical path at this size.
            outf_ref[t * Bn:(t + 1) * Bn, :] = hf
            outb_ref[tr * Bn:(tr + 1) * Bn, :] = hb

    x = x_ref[...]                                                        # (T*B, IN)

    # --- layer 0: note embedder folded into the gate precompute (one matmul) ---
    # TODO(synk): the real nemb.* embedder splits features per category; it is
    # approximated by a single Linear, which is what makes this fold exact.
    gx0 = dot(x, get('W0')) + get('B0')                                   # (T*B, 8H)
    bi_layer(gx0, get('WHH0'), s0f_ref, s0b_ref)

    # --- layer 1: W_ih split by input halves (reads the two layer-0 scratches) ---
    wih1 = get('WIH1')                                                    # (2H, 8H)
    gx1 = (dot(s0f_ref[...], wih1[0:H, :]) +
           dot(s0b_ref[...], wih1[H:2 * H, :]) + get('B1'))
    bi_layer(gx1, get('WHH1'), s1f_ref, s1b_ref)

    # --- head: note_contractor folded into attention pre-activation ---
    whead = get('WHEAD')                                                  # (2H, 2*2E)
    head = (dot(s1f_ref[...], whead[0:H, :]) +
            dot(s1b_ref[...], whead[H:2 * H, :]) + get('BHEAD'))          # (T*B, 128)
    note = head[:, 0:TWO_E]                                               # note_contractor out
    attn = jnp.tanh(head[:, TWO_E:2 * TWO_E])                             # attention_net + tanh
    sim = dot(attn, get('CTX'))                                           # (T*B, nh)

    # Per-batch / per-head max shift (exact parity with jax.nn.softmax over time).
    selt = get('SELT')                                                    # (T*B, B)
    shift = jnp.zeros_like(sim)
    for b in range(Bn):                                                   # B=2, static
        mask = selt[:, b:b + 1] > 0.5
        m_b = jnp.max(jnp.where(mask, sim, -3.0e38), axis=0, keepdims=True)
        shift = jnp.where(mask, m_b, shift)
    e = jnp.exp(sim - shift)                                              # (T*B, nh)

    # Linear-cost pooled softmax: numer/denom via the (B, T*B) selector only
    # (replaces the old O((T*B)^2) selp matmul).
    sel = get('SEL')                                                      # (B, T*B)
    exp_mat = get('EXP')                                                  # (nh, 2E)
    e_full = dot(e, exp_mat)                                              # (T*B, 2E)
    numer = dot(sel, note * e_full)                                       # (B, 2E)
    denom = dot(dot(sel, e), exp_mat)                                     # (B, 2E)
    pooled = numer / denom

    # --- out_fc: Linear -> GELU(exact) -> Linear ---
    h1 = dot(pooled, get('W1')) + get('B1H')
    h1 = 0.5 * h1 * (1.0 + lax.erf(h1 * 0.7071067811865476))
    out = dot(h1, get('W2')) + get('B2H')                                 # (B, N_LABEL)
    o_ref[...] = out.astype(o_ref.dtype)


# --------------------------------- wrapper ------------------------------------
@jax.jit
def virtuoso_forward(x, slab):
    Bn, Tn, Fn = x.shape
    assert (Bn, Tn, Fn) == (B, T, IN_DIM)
    # Time-major flatten: rows ordered (t, b) so timestep t occupies rows
    # [t*B, (t+1)*B) and the recurrence uses static slices only.
    # (SEL/SELT constants in the slab hard-code this ordering.)
    x_tm = jnp.transpose(x, (1, 0, 2)).reshape(Tn * Bn, IN_DIM)

    # Single-launch, no grid.  On v7x the second TensorCore stays idle; with a
    # larger batch add a grid over batch chunks + dimension_semantics=("parallel",).
    return pl.pallas_call(
        _virtuoso_kernel,
        out_shape=jax.ShapeDtypeStruct((Bn, N_LABEL), jnp.float32),
        in_specs=[pl.BlockSpec(memory_space=pltpu.MemorySpace.VMEM),
                  pl.BlockSpec(memory_space=pltpu.MemorySpace.VMEM)],
        out_specs=pl.BlockSpec(memory_space=pltpu.MemorySpace.VMEM),
        scratch_shapes=[pltpu.VMEM((Tn * Bn, H), jnp.float32) for _ in range(4)],
    )(x_tm, slab)


# ------------------------ wrapper-side weight folding -------------------------
def pack_params(params):
    """Fold + concatenate the PyTorch-layout params into one f32 slab."""
    l0, l1 = params['lstm']
    wih0f, whh0f, b0f = l0['fwd']
    wih0b, whh0b, b0b = l0['bwd']
    wih1f, whh1f, b1f = l1['fwd']
    wih1b, whh1b, b1b = l1['bwd']

    # Embedder (pure Linear) folded into layer-0 input weights.
    wih0_cat = jnp.concatenate([wih0f, wih0b], axis=1)                    # (H, 8H)
    w0 = params['w_emb'] @ wih0_cat                                       # (IN, 8H)
    b0 = params['b_emb'] @ wih0_cat + jnp.concatenate([b0f, b0b], axis=1)

    def block_diag(wf, wb):
        m = jnp.zeros((2 * H, 8 * H), jnp.float32)
        return m.at[0:H, 0:4 * H].set(wf).at[H:2 * H, 4 * H:8 * H].set(wb)

    whh0 = block_diag(whh0f, whh0b)
    whh1 = block_diag(whh1f, whh1b)
    wih1 = jnp.concatenate([wih1f, wih1b], axis=1)                        # (2H, 8H)
    b1 = jnp.concatenate([b1f, b1b], axis=1)

    # note_contractor folded into attention_net pre-activation.
    whead = jnp.concatenate([params['wc'], params['wc'] @ params['wa']], axis=1)
    bhead = jnp.concatenate(
        [params['bc'], params['bc'] @ params['wa'] + params['ba']], axis=1)

    pieces = {
        'W0': w0, 'WHH0': whh0, 'WIH1': wih1, 'WHH1': whh1,
        'WHEAD': whead, 'W1': params['w1'], 'W2': params['w2'],
        'CTX': params['ctx_mat'], 'EXP': params['exp_mat'],
        'SELT': params['sel'].T, 'SEL': params['sel'],
        'B0': b0, 'B1': b1, 'BHEAD': bhead,
        'B1H': params['b1'], 'B2H': params['b2'],
    }
    slab = jnp.zeros((SLAB_ROWS, SLAB_COLS), jnp.float32)
    for name, val in pieces.items():
        r0, shape = _LAYOUT[name]
        assert tuple(val.shape) == shape, (name, val.shape, shape)
        slab = slab.at[r0:r0 + shape[0], 0:shape[1]].set(val.astype(jnp.float32))
    return slab


# ---------------------------- pure-JAX reference -------------------------------
def _reference_forward(x, params):
    """Plain XLA reference with identical semantics (for self-check)."""
    Bn, Tn, _ = x.shape
    emb = x.reshape(Bn * Tn, IN_DIM) @ params['w_emb'] + params['b_emb']
    h = emb.reshape(Bn, Tn, H)
    for layer_p in params['lstm']:
        outs = []
        for d, rev in (('fwd', False), ('bwd', True)):
            wih, whh, bias = layer_p[d]
            xs = h[:, ::-1] if rev else h
            hh = jnp.zeros((Bn, H), jnp.float32)
            cc = jnp.zeros((Bn, H), jnp.float32)
            ys = []
            for t in range(Tn):
                g = xs[:, t] @ wih + hh @ whh + bias
                i = jax.nn.sigmoid(g[:, 0 * H:1 * H])
                f = jax.nn.sigmoid(g[:, 1 * H:2 * H])
                gg = jnp.tanh(g[:, 2 * H:3 * H])
                o = jax.nn.sigmoid(g[:, 3 * H:4 * H])
                cc = f * cc + i * gg
                hh = o * jnp.tanh(cc)
                ys.append(hh)
            y = jnp.stack(ys, axis=1)
            outs.append(y[:, ::-1] if rev else y)
        h = jnp.concatenate(outs, axis=-1)                 # (B, T, 2H)
    note = h @ params['wc'] + params['bc']                 # (B, T, 2E)
    attn = jnp.tanh(note @ params['wa'] + params['ba'])
    sim = attn @ params['ctx_mat']                         # (B, T, nh)
    wgt = jax.nn.softmax(sim, axis=1)                      # softmax over time
    wfull = wgt @ params['exp_mat']                        # (B, T, 2E)
    pooled = jnp.sum(note * wfull, axis=1)                 # (B, 2E)
    h1 = pooled @ params['w1'] + params['b1']
    h1 = 0.5 * h1 * (1.0 + lax.erf(h1 * 0.7071067811865476))
    return h1 @ params['w2'] + params['b2']


# ------------------------- deterministic parameters ---------------------------
def make_params():
    keys = iter(jax.random.split(jax.random.PRNGKey(42), 128))

    def init(shape, scale=0.1):
        return jax.random.normal(next(keys), shape, jnp.float32) * scale

    lstm_params = []
    for layer in range(N_LAYERS):
        din = H if layer == 0 else 2 * H
        layer_p = {}
        for d in ('fwd', 'bwd'):
            wih_t = init((din, 4 * H))       # (W_ih)^T
            whh_t = init((H, 4 * H))         # (W_hh)^T
            bias = init((1, 4 * H))          # b_ih + b_hh combined
            layer_p[d] = (wih_t, whh_t, bias)
        lstm_params.append(layer_p)

    ctx = jax.random.uniform(next(keys), (N_HEAD, HEAD_SZ), jnp.float32,
                             minval=-1.0, maxval=1.0)        # context_vector
    exp_mat = jnp.kron(jnp.eye(N_HEAD, dtype=jnp.float32),
                       jnp.ones((1, HEAD_SZ), jnp.float32))  # (nh, 2E) head->lanes
    ctx_mat = exp_mat.T * ctx.reshape(-1)[:, None]           # (2E, nh) block-diag

    sel = jnp.tile(jnp.eye(B, dtype=jnp.float32), (1, T))    # (B, T*B): r%B == b

    return {
        'w_emb': init((IN_DIM, NOTE_SZ)), 'b_emb': init((1, NOTE_SZ)),
        'lstm': lstm_params,
        'wc': init((TWO_E, TWO_E)), 'bc': init((1, TWO_E)),   # note_contractor
        'wa': init((TWO_E, TWO_E)), 'ba': init((1, TWO_E)),   # attention_net
        'ctx_mat': ctx_mat, 'exp_mat': exp_mat, 'sel': sel,
        'w1': init((TWO_E, TWO_E)), 'b1': init((1, TWO_E)),   # out_fc[1]
        'w2': init((TWO_E, N_LABEL)), 'b2': init((1, N_LABEL)),  # out_fc[4]
    }


if __name__ == "__main__":
    x = jax.random.normal(jax.random.PRNGKey(0), (B, T, IN_DIM), jnp.float32)
    params = make_params()
    slab = pack_params(params)

    out = virtuoso_forward(x, slab)
    out = jax.block_until_ready(out)

    assert out.shape == (B, N_LABEL)
    assert bool(jnp.all(jnp.isfinite(out)))

    ref = _reference_forward(x, params)
    assert bool(jnp.allclose(out, ref, atol=1e-3, rtol=1e-3)), (
        "kernel/reference mismatch", out, ref)

    print("KERNEL_OK")
</pallas_src>

<mosaic_0001>
module attributes {stable_mosaic.version = 11 : i64} {
  func.func @_virtuoso_kernel(%arg0: memref<16x48xf32, #tpu.memory_space<vmem>>, %arg1: memref<568x256xf32, #tpu.memory_space<vmem>>, %arg2: memref<2x16xf32, #tpu.memory_space<vmem>>, %arg3: memref<16x32xf32, #tpu.memory_space<vmem>>, %arg4: memref<16x32xf32, #tpu.memory_space<vmem>>, %arg5: memref<16x32xf32, #tpu.memory_space<vmem>>, %arg6: memref<16x32xf32, #tpu.memory_space<vmem>>) attributes {dimension_semantics = [], scalar_prefetch = 0 : i64, scratch_operands = 4 : i64, tpu.core_type = #tpu.core_type<tc>} {
    %c0 = arith.constant 0 : index
    %c0_0 = arith.constant 0 : index
    %0 = vector.load %arg0[%c0, %c0_0] : memref<16x48xf32, #tpu.memory_space<vmem>>, vector<16x48xf32>
    %c0_1 = arith.constant 0 : index
    %c0_2 = arith.constant 0 : index
    %1 = vector.load %arg1[%c0_1, %c0_2] : memref<568x256xf32, #tpu.memory_space<vmem>>, vector<48x256xf32>
    %cst = arith.constant dense<0.000000e+00> : vector<16x256xf32>
    %2 = tpu.matmul %0, %1, %cst {dimension_numbers = #tpu.dot_dimension_numbers<[1], [0], [0], [1], [0, 0, 1, 1], [], []>} : vector<16x48xf32>, vector<48x256xf32>, vector<16x256xf32> -> vector<16x256xf32>
    %c528 = arith.constant 528 : index
    %c0_3 = arith.constant 0 : index
    %3 = vector.load %arg1[%c528, %c0_3] : memref<568x256xf32, #tpu.memory_space<vmem>>, vector<1x256xf32>
    %4 = vector.broadcast %3 : vector<1x256xf32> to vector<16x256xf32>
    %5 = arith.addf %2, %4 : vector<16x256xf32>
    %c48 = arith.constant 48 : index
    %c0_4 = arith.constant 0 : index
    %6 = vector.load %arg1[%c48, %c0_4] : memref<568x256xf32, #tpu.memory_space<vmem>>, vector<64x256xf32>
    %cst_5 = arith.constant 0.000000e+00 : f32
    %7 = vector.broadcast %cst_5 : f32 to vector<2x64xf32>
    %cst_6 = arith.constant 0.000000e+00 : f32
    %8 = vector.broadcast %cst_6 : f32 to vector<2x32xf32>
    %cst_7 = arith.constant 0.000000e+00 : f32
    %9 = vector.broadcast %cst_7 : f32 to vector<2x32xf32>
    %cst_8 = arith.constant dense<0.000000e+00> : vector<2x256xf32>
    %10 = tpu.matmul %7, %6, %cst_8 {dimension_numbers = #tpu.dot_dimension_numbers<[1], [0], [0], [1], [0, 0, 1, 1], [], []>} : vector<2x64xf32>, vector<64x256xf32>, vector<2x256xf32> -> vector<2x256xf32>
    %11 = vector.extract_strided_slice %5 {offsets = [0, 0], sizes = [2, 128], strides = [1, 1]} : vector<16x256xf32> to vector<2x128xf32>
    %12 = vector.extract_strided_slice %10 {offsets = [0, 0], sizes = [2, 128], strides = [1, 1]} : vector<2x256xf32> to vector<2x128xf32>
    %13 = arith.addf %11, %12 : vector<2x128xf32>
    %14 = vector.extract_strided_slice %5 {offsets = [14, 128], sizes = [2, 128], strides = [1, 1]} : vector<16x256xf32> to vector<2x128xf32>
    %15 = vector.extract_strided_slice %10 {offsets = [0, 128], sizes = [2, 128], strides = [1, 1]} : vector<2x256xf32> to vector<2x128xf32>
    %16 = arith.addf %14, %15 : vector<2x128xf32>
    %17 = vector.extract_strided_slice %13 {offsets = [0, 0], sizes = [2, 32], strides = [1, 1]} : vector<2x128xf32> to vector<2x32xf32>
    %cst_9 = arith.constant 0.000000e+00 : f32
    %18 = vector.broadcast %cst_9 : f32 to vector<2x32xf32>
    %19 = arith.subf %18, %17 : vector<2x32xf32>
    %20 = math.exp %19 : vector<2x32xf32>
    %cst_10 = arith.constant 1.000000e+00 : f32
    %21 = vector.broadcast %cst_10 : f32 to vector<2x32xf32>
    %22 = arith.addf %21, %20 : vector<2x32xf32>
    %cst_11 = arith.constant 1.000000e+00 : f32
    %23 = vector.broadcast %cst_11 : f32 to vector<2x32xf32>
    %24 = arith.divf %23, %22 : vector<2x32xf32>
    %25 = vector.extract_strided_slice %13 {offsets = [0, 32], sizes = [2, 32], strides = [1, 1]} : vector<2x128xf32> to vector<2x32xf32>
    %cst_12 = arith.constant 0.000000e+00 : f32
    %26 = vector.broadcast %cst_12 : f32 to vector<2x32xf32>
    %27 = arith.subf %26, %25 : vector<2x32xf32>
    %28 = math.exp %27 : vector<2x32xf32>
    %cst_13 = arith.constant 1.000000e+00 : f32
    %29 = vector.broadcast %cst_13 : f32 to vector<2x32xf32>
    %30 = arith.addf %29, %28 : vector<2x32xf32>
    %cst_14 = arith.constant 1.000000e+00 : f32
    %31 = vector.broadcast %cst_14 : f32 to vector<2x32xf32>
    %32 = arith.divf %31, %30 : vector<2x32xf32>
    %33 = vector.extract_strided_slice %13 {offsets = [0, 64], sizes = [2, 32], strides = [1, 1]} : vector<2x128xf32> to vector<2x32xf32>
    %34 = math.tanh %33 : vector<2x32xf32>
    %35 = vector.extract_strided_slice %13 {offsets = [0, 96], sizes = [2, 32], strides = [1, 1]} : vector<2x128xf32> to vector<2x32xf32>
    %cst_15 = arith.constant 0.000000e+00 : f32
    %36 = vector.broadcast %cst_15 : f32 to vector<2x32xf32>
    %37 = arith.subf %36, %35 : vector<2x32xf32>
    %38 = math.exp %37 : vector<2x32xf32>
    %cst_16 = arith.constant 1.000000e+00 : f32
    %39 = vector.broadcast %cst_16 : f32 to vector<2x32xf32>
    %40 = arith.addf %39, %38 : vector<2x32xf32>
    %cst_17 = arith.constant 1.000000e+00 : f32
    %41 = vector.broadcast %cst_17 : f32 to vector<2x32xf32>
    %42 = arith.divf %41, %40 : vector<2x32xf32>
    %43 = arith.mulf %32, %8 : vector<2x32xf32>
    %44 = arith.mulf %24, %34 : vector<2x32xf32>
    %45 = arith.addf %43, %44 : vector<2x32xf32>
    %46 = math.tanh %45 : vector<2x32xf32>
    %47 = arith.mulf %42, %46 : vector<2x32xf32>
    %48 = vector.extract_strided_slice %16 {offsets = [0, 0], sizes = [2, 32], strides = [1, 1]} : vector<2x128xf32> to vector<2x32xf32>
    %cst_18 = arith.constant 0.000000e+00 : f32
    %49 = vector.broadcast %cst_18 : f32 to vector<2x32xf32>
    %50 = arith.subf %49, %48 : vector<2x32xf32>
    %51 = math.exp %50 : vector<2x32xf32>
    %cst_19 = arith.constant 1.000000e+00 : f32
    %52 = vector.broadcast %cst_19 : f32 to vector<2x32xf32>
    %53 = arith.addf %52, %51 : vector<2x32xf32>
    %cst_20 = arith.constant 1.000000e+00 : f32
    %54 = vector.broadcast %cst_20 : f32 to vector<2x32xf32>
    %55 = arith.divf %54, %53 : vector<2x32xf32>
    %56 = vector.extract_strided_slice %16 {offsets = [0, 32], sizes = [2, 32], strides = [1, 1]} : vector<2x128xf32> to vector<2x32xf32>
    %cst_21 = arith.constant 0.000000e+00 : f32
    %57 = vector.broadcast %cst_21 : f32 to vector<2x32xf32>
    %58 = arith.subf %57, %56 : vector<2x32xf32>
    %59 = math.exp %58 : vector<2x32xf32>
    %cst_22 = arith.constant 1.000000e+00 : f32
    %60 = vector.broadcast %cst_22 : f32 to vector<2x32xf32>
    %61 = arith.addf %60, %59 : vector<2x32xf32>
    %cst_23 = arith.constant 1.000000e+00 : f32
    %62 = vector.broadcast %cst_23 : f32 to vector<2x32xf32>
    %63 = arith.divf %62, %61 : vector<2x32xf32>
    %64 = vector.extract_strided_slice %16 {offsets = [0, 64], sizes = [2, 32], strides = [1, 1]} : vector<2x128xf32> to vector<2x32xf32>
    %65 = math.tanh %64 : vector<2x32xf32>
    %66 = vector.extract_strided_slice %16 {offsets = [0, 96], sizes = [2, 32], strides = [1, 1]} : vector<2x128xf32> to vector<2x32xf32>
    %cst_24 = arith.constant 0.000000e+00 : f32
    %67 = vector.broadcast %cst_24 : f32 to vector<2x32xf32>
    %68 = arith.subf %67, %66 : vector<2x32xf32>
    %69 = math.exp %68 : vector<2x32xf32>
    %cst_25 = arith.constant 1.000000e+00 : f32
    %70 = vector.broadcast %cst_25 : f32 to vector<2x32xf32>
    %71 = arith.addf %70, %69 : vector<2x32xf32>
    %cst_26 = arith.constant 1.000000e+00 : f32
    %72 = vector.broadcast %cst_26 : f32 to vector<2x32xf32>
    %73 = arith.divf %72, %71 : vector<2x32xf32>
    %74 = arith.mulf %63, %9 : vector<2x32xf32>
    %75 = arith.mulf %55, %65 : vector<2x32xf32>
    %76 = arith.addf %74, %75 : vector<2x32xf32>
    %77 = math.tanh %76 : vector<2x32xf32>
    %78 = arith.mulf %73, %77 : vector<2x32xf32>
    %79 = tpu.concatenate %47, %78 in 1 : vector<2x32xf32>, vector<2x32xf32> -> vector<2x64xf32>
    %c0_27 = arith.constant 0 : index
    %c0_28 = arith.constant 0 : index
    %80 = vector.load %arg3[%c0_27, %c0_28] : memref<16x32xf32, #tpu.memory_space<vmem>>, vector<2x32xf32>
    tpu.vector_store %arg3[%c0_27, %c0_28], %47 {strides = array<i32>} : memref<16x32xf32, #tpu.memory_space<vmem>>, vector<2x32xf32>,
    %c14 = arith.constant 14 : index
    %c0_29 = arith.constant 0 : index
    %81 = vector.load %arg4[%c14, %c0_29] : memref<16x32xf32, #tpu.memory_space<vmem>>, vector<2x32xf32>
    tpu.vector_store %arg4[%c14, %c0_29], %78 {strides = array<i32>} : memref<16x32xf32, #tpu.memory_space<vmem>>, vector<2x32xf32>,
    %cst_30 = arith.constant dense<0.000000e+00> : vector<2x256xf32>
    %82 = tpu.matmul %79, %6, %cst_30 {dimension_numbers = #tpu.dot_dimension_numbers<[1], [0], [0], [1], [0, 0, 1, 1], [], []>} : vector<2x64xf32>, vector<64x256xf32>, vector<2x256xf32> -> vector<2x256xf32>
    %83 = vector.extract_strided_slice %5 {offsets = [2, 0], sizes = [2, 128], strides = [1, 1]} : vector<16x256xf32> to vector<2x128xf32>
    %84 = vector.extract_strided_slice %82 {offsets = [0, 0], sizes = [2, 128], strides = [1, 1]} : vector<2x256xf32> to vector<2x128xf32>
    %85 = arith.addf %83, %84 : vector<2x128xf32>
    %86 = vector.extract_strided_slice %5 {offsets = [12, 128], sizes = [2, 128], strides = [1, 1]} : vector<16x256xf32> to vector<2x128xf32>
    %87 = vector.extract_strided_slice %82 {offsets = [0, 128], sizes = [2, 128], strides = [1, 1]} : vector<2x256xf32> to vector<2x128xf32>
    %88 = arith.addf %86, %87 : vector<2x128xf32>
    %89 = vector.extract_strided_slice %85 {offsets = [0, 0], sizes = [2, 32], strides = [1, 1]} : vector<2x128xf32> to vector<2x32xf32>
    %cst_31 = arith.constant 0.000000e+00 : f32
    %90 = vector.broadcast %cst_31 : f32 to vector<2x32xf32>
    %91 = arith.subf %90, %89 : vector<2x32xf32>
    %92 = math.exp %91 : vector<2x32xf32>
    %cst_32 = arith.constant 1.000000e+00 : f32
    %93 = vector.broadcast %cst_32 : f32 to vector<2x32xf32>
    %94 = arith.addf %93, %92 : vector<2x32xf32>
    %cst_33 = arith.constant 1.000000e+00 : f32
    %95 = vector.broadcast %cst_33 : f32 to vector<2x32xf32>
    %96 = arith.divf %95, %94 : vector<2x32xf32>
    %97 = vector.extract_strided_slice %85 {offsets = [0, 32], sizes = [2, 32], strides = [1, 1]} : vector<2x128xf32> to vector<2x32xf32>
    %cst_34 = arith.constant 0.000000e+00 : f32
    %98 = vector.broadcast %cst_34 : f32 to vector<2x32xf32>
    %99 = arith.subf %98, %97 : vector<2x32xf32>
    %100 = math.exp %99 : vector<2x32xf32>
    %cst_35 = arith.constant 1.000000e+00 : f32
    %101 = vector.broadcast %cst_35 : f32 to vector<2x32xf32>
    %102 = arith.addf %101, %100 : vector<2x32xf32>
    %cst_36 = arith.constant 1.000000e+00 : f32
    %103 = vector.broadcast %cst_36 : f32 to vector<2x32xf32>
    %104 = arith.divf %103, %102 : vector<2x32xf32>
    %105 = vector.extract_strided_slice %85 {offsets = [0, 64], sizes = [2, 32], strides = [1, 1]} : vector<2x128xf32> to vector<2x32xf32>
    %106 = math.tanh %105 : vector<2x32xf32>
    %107 = vector.extract_strided_slice %85 {offsets = [0, 96], sizes = [2, 32], strides = [1, 1]} : vector<2x128xf32> to vector<2x32xf32>
    %cst_37 = arith.constant 0.000000e+00 : f32
    %108 = vector.broadcast %cst_37 : f32 to vector<2x32xf32>
    %109 = arith.subf %108, %107 : vector<2x32xf32>
    %110 = math.exp %109 : vector<2x32xf32>
    %cst_38 = arith.constant 1.000000e+00 : f32
    %111 = vector.broadcast %cst_38 : f32 to vector<2x32xf32>
    %112 = arith.addf %111, %110 : vector<2x32xf32>
    %cst_39 = arith.constant 1.000000e+00 : f32
    %113 = vector.broadcast %cst_39 : f32 to vector<2x32xf32>
    %114 = arith.divf %113, %112 : vector<2x32xf32>
    %115 = arith.mulf %104, %45 : vector<2x32xf32>
    %116 = arith.mulf %96, %106 : vector<2x32xf32>
    %117 = arith.addf %115, %116 : vector<2x32xf32>
    %118 = math.tanh %117 : vector<2x32xf32>
    %119 = arith.mulf %114, %118 : vector<2x32xf32>
    %120 = vector.extract_strided_slice %88 {offsets = [0, 0], sizes = [2, 32], strides = [1, 1]} : vector<2x128xf32> to vector<2x32xf32>
    %cst_40 = arith.constant 0.000000e+00 : f32
    %121 = vector.broadcast %cst_40 : f32 to vector<2x32xf32>
    %122 = arith.subf %121, %120 : vector<2x32xf32>
    %123 = math.exp %122 : vector<2x32xf32>
    %cst_41 = arith.constant 1.000000e+00 : f32
    %124 = vector.broadcast %cst_41 : f32 to vector<2x32xf32>
    %125 = arith.addf %124, %123 : vector<2x32xf32>
    %cst_42 = arith.constant 1.000000e+00 : f32
    %126 = vector.broadcast %cst_42 : f32 to vector<2x32xf32>
    %127 = arith.divf %126, %125 : vector<2x32xf32>
    %128 = vector.extract_strided_slice %88 {offsets = [0, 32], sizes = [2, 32], strides = [1, 1]} : vector<2x128xf32> to vector<2x32xf32>
    %cst_43 = arith.constant 0.000000e+00 : f32
    %129 = vector.broadcast %cst_43 : f32 to vector<2x32xf32>
    %130 = arith.subf %129, %128 : vector<2x32xf32>
    %131 = math.exp %130 : vector<2x32xf32>
    %cst_44 = arith.constant 1.000000e+00 : f32
    %132 = vector.broadcast %cst_44 : f32 to vector<2x32xf32>
    %133 = arith.addf %132, %131 : vector<2x32xf32>
    %cst_45 = arith.constant 1.000000e+00 : f32
    %134 = vector.broadcast %cst_45 : f32 to vector<2x32xf32>
    %135 = arith.divf %134, %133 : vector<2x32xf32>
    %136 = vector.extract_strided_slice %88 {offsets = [0, 64], sizes = [2, 32], strides = [1, 1]} : vector<2x128xf32> to vector<2x32xf32>
    %137 = math.tanh %136 : vector<2x32xf32>
    %138 = vector.extract_strided_slice %88 {offsets = [0, 96], sizes = [2, 32], strides = [1, 1]} : vector<2x128xf32> to vector<2x32xf32>
    %cst_46 = arith.constant 0.000000e+00 : f32
    %139 = vector.broadcast %cst_46 : f32 to vector<2x32xf32>
    %140 = arith.subf %139, %138 : vector<2x32xf32>
    %141 = math.exp %140 : vector<2x32xf32>
    %cst_47 = arith.constant 1.000000e+00 : f32
    %142 = vector.broadcast %cst_47 : f32 to vector<2x32xf32>
    %143 = arith.addf %142, %141 : vector<2x32xf32>
    %cst_48 = arith.constant 1.000000e+00 : f32
    %144 = vector.broadcast %cst_48 : f32 to vector<2x32xf32>
    %145 = arith.divf %144, %143 : vector<2x32xf32>
    %146 = arith.mulf %135, %76 : vector<2x32xf32>
    %147 = arith.mulf %127, %137 : vector<2x32xf32>
    %148 = arith.addf %146, %147 : vector<2x32xf32>
    %149 = math.tanh %148 : vector<2x32xf32>
    %150 = arith.mulf %145, %149 : vector<2x32xf32>
    %151 = tpu.concatenate %119, %150 in 1 : vector<2x32xf32>, vector<2x32xf32> -> vector<2x64xf32>
    %c2 = arith.constant 2 : index
    %c0_49 = arith.constant 0 : index
    %152 = vector.load %arg3[%c2, %c0_49] : memref<16x32xf32, #tpu.memory_space<vmem>>, vector<2x32xf32>
    tpu.vector_store %arg3[%c2, %c0_49], %119 {strides = array<i32>} : memref<16x32xf32, #tpu.memory_space<vmem>>, vector<2x32xf32>,
    %c12 = arith.constant 12 : index
    %c0_50 = arith.constant 0 : index
    %153 = vector.load %arg4[%c12, %c0_50] : memref<16x32xf32, #tpu.memory_space<vmem>>, vector<2x32xf32>
    tpu.vector_store %arg4[%c12, %c0_50], %150 {strides = array<i32>} : memref<16x32xf32, #tpu.memory_space<vmem>>, vector<2x32xf32>,
    %cst_51 = arith.constant dense<0.000000e+00> : vector<2x256xf32>
    %154 = tpu.matmul %151, %6, %cst_51 {dimension_numbers = #tpu.dot_dimension_numbers<[1], [0], [0], [1], [0, 0, 1, 1], [], []>} : vector<2x64xf32>, vector<64x256xf32>, vector<2x256xf32> -> vector<2x256xf32>
    %155 = vector.extract_strided_slice %5 {offsets = [4, 0], sizes = [2, 128], strides = [1, 1]} : vector<16x256xf32> to vector<2x128xf32>
    %156 = vector.extract_strided_slice %154 {offsets = [0, 0], sizes = [2, 128], strides = [1, 1]} : vector<2x256xf32> to vector<2x128xf32>
    %157 = arith.addf %155, %156 : vector<2x128xf32>
    %158 = vector.extract_strided_slice %5 {offsets = [10, 128], sizes = [2, 128], strides = [1, 1]} : vector<16x256xf32> to vector<2x128xf32>
    %159 = vector.extract_strided_slice %154 {offsets = [0, 128], sizes = [2, 128], strides = [1, 1]} : vector<2x256xf32> to vector<2x128xf32>
    %160 = arith.addf %158, %159 : vector<2x128xf32>
    %161 = vector.extract_strided_slice %157 {offsets = [0, 0], sizes = [2, 32], strides = [1, 1]} : vector<2x128xf32> to vector<2x32xf32>
    %cst_52 = arith.constant 0.000000e+00 : f32
    %162 = vector.broadcast %cst_52 : f32 to vector<2x32xf32>
    %163 = arith.subf %162, %161 : vector<2x32xf32>
    %164 = math.exp %163 : vector<2x32xf32>
    %cst_53 = arith.constant 1.000000e+00 : f32
    %165 = vector.broadcast %cst_53 : f32 to vector<2x32xf32>
    %166 = arith.addf %165, %164 : vector<2x32xf32>
    %cst_54 = arith.constant 1.000000e+00 : f32
    %167 = vector.broadcast %cst_54 : f32 to vector<2x32xf32>
    %168 = arith.divf %167, %166 : vector<2x32xf32>
    %169 = vector.extract_strided_slice %157 {offsets = [0, 32], sizes = [2, 32], strides = [1, 1]} : vector<2x128xf32> to vector<2x32xf32>
    %cst_55 = arith.constant 0.000000e+00 : f32
    %170 = vector.broadcast %cst_55 : f32 to vector<2x32xf32>
    %171 = arith.subf %170, %169 : vector<2x32xf32>
    %172 = math.exp %171 : vector<2x32xf32>
    %cst_56 = arith.constant 1.000000e+00 : f32
    %173 = vector.broadcast %cst_56 : f32 to vector<2x32xf32>
    %174 = arith.addf %173, %172 : vector<2x32xf32>
    %cst_57 = arith.constant 1.000000e+00 : f32
    %175 = vector.broadcast %cst_57 : f32 to vector<2x32xf32>
    %176 = arith.divf %175, %174 : vector<2x32xf32>
    %177 = vector.extract_strided_slice %157 {offsets = [0, 64], sizes = [2, 32], strides = [1, 1]} : vector<2x128xf32> to vector<2x32xf32>
    %178 = math.tanh %177 : vector<2x32xf32>
    %179 = vector.extract_strided_slice %157 {offsets = [0, 96], sizes = [2, 32], strides = [1, 1]} : vector<2x128xf32> to vector<2x32xf32>
    %cst_58 = arith.constant 0.000000e+00 : f32
    %180 = vector.broadcast %cst_58 : f32 to vector<2x32xf32>
    %181 = arith.subf %180, %179 : vector<2x32xf32>
    %182 = math.exp %181 : vector<2x32xf32>
    %cst_59 = arith.constant 1.000000e+00 : f32
    %183 = vector.broadcast %cst_59 : f32 to vector<2x32xf32>
    %184 = arith.addf %183, %182 : vector<2x32xf32>
    %cst_60 = arith.constant 1.000000e+00 : f32
    %185 = vector.broadcast %cst_60 : f32 to vector<2x32xf32>
    %186 = arith.divf %185, %184 : vector<2x32xf32>
    %187 = arith.mulf %176, %117 : vector<2x32xf32>
    %188 = arith.mulf %168, %178 : vector<2x32xf32>
    %189 = arith.addf %187, %188 : vector<2x32xf32>
    %190 = math.tanh %189 : vector<2x32xf32>
    %191 = arith.mulf %186, %190 : vector<2x32xf32>
    %192 = vector.extract_strided_slice %160 {offsets = [0, 0], sizes = [2, 32], strides = [1, 1]} : vector<2x128xf32> to vector<2x32xf32>
    %cst_61 = arith.constant 0.000000e+00 : f32
    %193 = vector.broadcast %cst_61 : f32 to vector<2x32xf32>
    %194 = arith.subf %193, %192 : vector<2x32xf32>
    %195 = math.exp %194 : vector<2x32xf32>
    %cst_62 = arith.constant 1.000000e+00 : f32
    %196 = vector.broadcast %cst_62 : f32 to vector<2x32xf32>
    %197 = arith.addf %196, %195 : vector<2x32xf32>
    %cst_63 = arith.constant 1.000000e+00 : f32
    %198 = vector.broadcast %cst_63 : f32 to vector<2x32xf32>
    %199 = arith.divf %198, %197 : vector<2x32xf32>
    %200 = vector.extract_strided_slice %160 {offsets = [0, 32], sizes = [2, 32], strides = [1, 1]} : vector<2x128xf32> to vector<2x32xf32>
    %cst_64 = arith.constant 0.000000e+00 : f32
    %201 = vector.broadcast %cst_64 : f32 to vector<2x32xf32>
    %202 = arith.subf %201, %200 : vector<2x32xf32>
    %203 = math.exp %202 : vector<2x32xf32>
    %cst_65 = arith.constant 1.000000e+00 : f32
    %204 = vector.broadcast %cst_65 : f32 to vector<2x32xf32>
    %205 = arith.addf %204, %203 : vector<2x32xf32>
    %cst_66 = arith.constant 1.000000e+00 : f32
    %206 = vector.broadcast %cst_66 : f32 to vector<2x32xf32>
    %207 = arith.divf %206, %205 : vector<2x32xf32>
    %208 = vector.extract_strided_slice %160 {offsets = [0, 64], sizes = [2, 32], strides = [1, 1]} : vector<2x128xf32> to vector<2x32xf32>
    %209 = math.tanh %208 : vector<2x32xf32>
    %210 = vector.extract_strided_slice %160 {offsets = [0, 96], sizes = [2, 32], strides = [1, 1]} : vector<2x128xf32> to vector<2x32xf32>
    %cst_67 = arith.constant 0.000000e+00 : f32
    %211 = vector.broadcast %cst_67 : f32 to vector<2x32xf32>
    %212 = arith.subf %211, %210 : vector<2x32xf32>
    %213 = math.exp %212 : vector<2x32xf32>
    %cst_68 = arith.constant 1.000000e+00 : f32
    %214 = vector.broadcast %cst_68 : f32 to vector<2x32xf32>
    %215 = arith.addf %214, %213 : vector<2x32xf32>
    %cst_69 = arith.constant 1.000000e+00 : f32
    %216 = vector.broadcast %cst_69 : f32 to vector<2x32xf32>
    %217 = arith.divf %216, %215 : vector<2x32xf32>
    %218 = arith.mulf %207, %148 : vector<2x32xf32>
    %219 = arith.mulf %199, %209 : vector<2x32xf32>
    %220 = arith.addf %218, %219 : vector<2x32xf32>
    %221 = math.tanh %220 : vector<2x32xf32>
    %222 = arith.mulf %217, %221 : vector<2x32xf32>
    %223 = tpu.concatenate %191, %222 in 1 : vector<2x32xf32>, vector<2x32xf32> -> vector<2x64xf32>
    %c4 = arith.constant 4 : index
    %c0_70 = arith.constant 0 : index
    %224 = vector.load %arg3[%c4, %c0_70] : memref<16x32xf32, #tpu.memory_space<vmem>>, vector<2x32xf32>
    tpu.vector_store %arg3[%c4, %c0_70], %191 {strides = array<i32>} : memref<16x32xf32, #tpu.memory_space<vmem>>, vector<2x32xf32>,
    %c10 = arith.constant 10 : index
    %c0_71 = arith.constant 0 : index
    %225 = vector.load %arg4[%c10, %c0_71] : memref<16x32xf32, #tpu.memory_space<vmem>>, vector<2x32xf32>
    tpu.vector_store %arg4[%c10, %c0_71], %222 {strides = array<i32>} : memref<16x32xf32, #tpu.memory_space<vmem>>, vector<2x32xf32>,
    %cst_72 = arith.constant dense<0.000000e+00> : vector<2x256xf32>
    %226 = tpu.matmul %223, %6, %cst_72 {dimension_numbers = #tpu.dot_dimension_numbers<[1], [0], [0], [1], [0, 0, 1, 1], [], []>} : vector<2x64xf32>, vector<64x256xf32>, vector<2x256xf32> -> vector<2x256xf32>
    %227 = vector.extract_strided_slice %5 {offsets = [6, 0], sizes = [2, 128], strides = [1, 1]} : vector<16x256xf32> to vector<2x128xf32>
    %228 = vector.extract_strided_slice %226 {offsets = [0, 0], sizes = [2, 128], strides = [1, 1]} : vector<2x256xf32> to vector<2x128xf32>
    %229 = arith.addf %227, %228 : vector<2x128xf32>
    %230 = vector.extract_strided_slice %5 {offsets = [8, 128], sizes = [2, 128], strides = [1, 1]} : vector<16x256xf32> to vector<2x128xf32>
    %231 = vector.extract_strided_slice %226 {offsets = [0, 128], sizes = [2, 128], strides = [1, 1]} : vector<2x256xf32> to vector<2x128xf32>
    %232 = arith.addf %230, %231 : vector<2x128xf32>
    %233 = vector.extract_strided_slice %229 {offsets = [0, 0], sizes = [2, 32], strides = [1, 1]} : vector<2x128xf32> to vector<2x32xf32>
    %cst_73 = arith.constant 0.000000e+00 : f32
    %234 = vector.broadcast %cst_73 : f32 to vector<2x32xf32>
    %235 = arith.subf %234, %233 : vector<2x32xf32>
    %236 = math.exp %235 : vector<2x32xf32>
    %cst_74 = arith.constant 1.000000e+00 : f32
    %237 = vector.broadcast %cst_74 : f32 to vector<2x32xf32>
    %238 = arith.addf %237, %236 : vector<2x32xf32>
    %cst_75 = arith.constant 1.000000e+00 : f32
    %239 = vector.broadcast %cst_75 : f32 to vector<2x32xf32>
    %240 = arith.divf %239, %238 : vector<2x32xf32>
    %241 = vector.extract_strided_slice %229 {offsets = [0, 32], sizes = [2, 32], strides = [1, 1]} : vector<2x128xf32> to vector<2x32xf32>
    %cst_76 = arith.constant 0.000000e+00 : f32
    %242 = vector.broadcast %cst_76 : f32 to vector<2x32xf32>
    %243 = arith.subf %242, %241 : vector<2x32xf32>
    %244 = math.exp %243 : vector<2x32xf32>
    %cst_77 = arith.constant 1.000000e+00 : f32
    %245 = vector.broadcast %cst_77 : f32 to vector<2x32xf32>
    %246 = arith.addf %245, %244 : vector<2x32xf32>
    %cst_78 = arith.constant 1.000000e+00 : f32
    %247 = vector.broadcast %cst_78 : f32 to vector<2x32xf32>
    %248 = arith.divf %247, %246 : vector<2x32xf32>
    %249 = vector.extract_strided_slice %229 {offsets = [0, 64], sizes = [2, 32], strides = [1, 1]} : vector<2x128xf32> to vector<2x32xf32>
    %250 = math.tanh %249 : vector<2x32xf32>
    %251 = vector.extract_strided_slice %229 {offsets = [0, 96], sizes = [2, 32], strides = [1, 1]} : vector<2x128xf32> to vector<2x32xf32>
    %cst_79 = arith.constant 0.000000e+00 : f32
    %252 = vector.broadcast %cst_79 : f32 to vector<2x32xf32>
    %253 = arith.subf %252, %251 : vector<2x32xf32>
    %254 = math.exp %253 : vector<2x32xf32>
    %cst_80 = arith.constant 1.000000e+00 : f32
    %255 = vector.broadcast %cst_80 : f32 to vector<2x32xf32>
    %256 = arith.addf %255, %254 : vector<2x32xf32>
    %cst_81 = arith.constant 1.000000e+00 : f32
    %257 = vector.broadcast %cst_81 : f32 to vector<2x32xf32>
    %258 = arith.divf %257, %256 : vector<2x32xf32>
    %259 = arith.mulf %248, %189 : vector<2x32xf32>
    %260 = arith.mulf %240, %250 : vector<2x32xf32>
    %261 = arith.addf %259, %260 : vector<2x32xf32>
    %262 = math.tanh %261 : vector<2x32xf32>
    %263 = arith.mulf %258, %262 : vector<2x32xf32>
    %264 = vector.extract_strided_slice %232 {offsets = [0, 0], sizes = [2, 32], strides = [1, 1]} : vector<2x128xf32> to vector<2x32xf32>
    %cst_82 = arith.constant 0.000000e+00 : f32
    %265 = vector.broadcast %cst_82 : f32 to vector<2x32xf32>
    %266 = arith.subf %265, %264 : vector<2x32xf32>
    %267 = math.exp %266 : vector<2x32xf32>
    %cst_83 = arith.constant 1.000000e+00 : f32
    %268 = vector.broadcast %cst_83 : f32 to vector<2x32xf32>
    %269 = arith.addf %268, %267 : vector<2x32xf32>
    %cst_84 = arith.constant 1.000000e+00 : f32
    %270 = vector.broadcast %cst_84 : f32 to vector<2x32xf32>
    %271 = arith.divf %270, %269 : vector<2x32xf32>
    %272 = vector.extract_strided_slice %232 {offsets = [0, 32], sizes = [2, 32], strides = [1, 1]} : vector<2x128xf32> to vector<2x32xf32>
    %cst_85 = arith.constant 0.000000e+00 : f32
    %273 = vector.broadcast %cst_85 : f32 to vector<2x32xf32>
    %274 = arith.subf %273, %272 : vector<2x32xf32>
    %275 = math.exp %274 : vector<2x32xf32>
    %cst_86 = arith.constant 1.000000e+00 : f32
    %276 = vector.broadcast %cst_86 : f32 to vector<2x32xf32>
    %277 = arith.addf %276, %275 : vector<2x32xf32>
    %cst_87 = arith.constant 1.000000e+00 : f32
    %278 = vector.broadcast %cst_87 : f32 to vector<2x32xf32>
    %279 = arith.divf %278, %277 : vector<2x32xf32>
    %280 = vector.extract_strided_slice %232 {offsets = [0, 64], sizes = [2, 32], strides = [1, 1]} : vector<2x128xf32> to vector<2x32xf32>
    %281 = math.tanh %280 : vector<2x32xf32>
    %282 = vector.extract_strided_slice %232 {offsets = [0, 96], sizes = [2, 32], strides = [1, 1]} : vector<2x128xf32> to vector<2x32xf32>
    %cst_88 = arith.constant 0.000000e+00 : f32
    %283 = vector.broadcast %cst_88 : f32 to vector<2x32xf32>
    %284 = arith.subf %283, %282 : vector<2x32xf32>
    %285 = math.exp %284 : vector<2x32xf32>
    %cst_89 = arith.constant 1.000000e+00 : f32
    %286 = vector.broadcast %cst_89 : f32 to vector<2x32xf32>
    %287 = arith.addf %286, %285 : vector<2x32xf32>
    %cst_90 = arith.constant 1.000000e+00 : f32
    %288 = vector.broadcast %cst_90 : f32 to vector<2x32xf32>
    %289 = arith.divf %288, %287 : vector<2x32xf32>
    %290 = arith.mulf %279, %220 : vector<2x32xf32>
    %291 = arith.mulf %271, %281 : vector<2x32xf32>
    %292 = arith.addf %290, %291 : vector<2x32xf32>
    %293 = math.tanh %292 : vector<2x32xf32>
    %294 = arith.mulf %289, %293 : vector<2x32xf32>
    %295 = tpu.concatenate %263, %294 in 1 : vector<2x32xf32>, vector<2x32xf32> -> vector<2x64xf32>
    %c6 = arith.constant 6 : index
    %c0_91 = arith.constant 0 : index
    %296 = vector.load %arg3[%c6, %c0_91] : memref<16x32xf32, #tpu.memory_space<vmem>>, vector<2x32xf32>
    tpu.vector_store %arg3[%c6, %c0_91], %263 {strides = array<i32>} : memref<16x32xf32, #tpu.memory_space<vmem>>, vector<2x32xf32>,
    %c8 = arith.constant 8 : index
    %c0_92 = arith.constant 0 : index
    %297 = vector.load %arg4[%c8, %c0_92] : memref<16x32xf32, #tpu.memory_space<vmem>>, vector<2x32xf32>
    tpu.vector_store %arg4[%c8, %c0_92], %294 {strides = array<i32>} : memref<16x32xf32, #tpu.memory_space<vmem>>, vector<2x32xf32>,
    %cst_93 = arith.constant dense<0.000000e+00> : vector<2x256xf32>
    %298 = tpu.matmul %295, %6, %cst_93 {dimension_numbers = #tpu.dot_dimension_numbers<[1], [0], [0], [1], [0, 0, 1, 1], [], []>} : vector<2x64xf32>, vector<64x256xf32>, vector<2x256xf32> -> vector<2x256xf32>
    %299 = vector.extract_strided_slice %5 {offsets = [8, 0], sizes = [2, 128], strides = [1, 1]} : vector<16x256xf32> to vector<2x128xf32>
    %300 = vector.extract_strided_slice %298 {offsets = [0, 0], sizes = [2, 128], strides = [1, 1]} : vector<2x256xf32> to vector<2x128xf32>
    %301 = arith.addf %299, %300 : vector<2x128xf32>
    %302 = vector.extract_strided_slice %5 {offsets = [6, 128], sizes = [2, 128], strides = [1, 1]} : vector<16x256xf32> to vector<2x128xf32>
    %303 = vector.extract_strided_slice %298 {offsets = [0, 128], sizes = [2, 128], strides = [1, 1]} : vector<2x256xf32> to vector<2x128xf32>
    %304 = arith.addf %302, %303 : vector<2x128xf32>
    %305 = vector.extract_strided_slice %301 {offsets = [0, 0], sizes = [2, 32], strides = [1, 1]} : vector<2x128xf32> to vector<2x32xf32>
    %cst_94 = arith.constant 0.000000e+00 : f32
    %306 = vector.broadcast %cst_94 : f32 to vector<2x32xf32>
    %307 = arith.subf %306, %305 : vector<2x32xf32>
    %308 = math.exp %307 : vector<2x32xf32>
    %cst_95 = arith.constant 1.000000e+00 : f32
    %309 = vector.broadcast %cst_95 : f32 to vector<2x32xf32>
    %310 = arith.addf %309, %308 : vector<2x32xf32>
    %cst_96 = arith.constant 1.000000e+00 : f32
    %311 = vector.broadcast %cst_96 : f32 to vector<2x32xf32>
    %312 = arith.divf %311, %310 : vector<2x32xf32>
    %313 = vector.extract_strided_slice %301 {offsets = [0, 32], sizes = [2, 32], strides = [1, 1]} : vector<2x128xf32> to vector<2x32xf32>
    %cst_97 = arith.constant 0.000000e+00 : f32
    %314 = vector.broadcast %cst_97 : f32 to vector<2x32xf32>
    %315 = arith.subf %314, %313 : vector<2x32xf32>
    %316 = math.exp %315 : vector<2x32xf32>
    %cst_98 = arith.constant 1.000000e+00 : f32
    %317 = vector.broadcast %cst_98 : f32 to vector<2x32xf32>
    %318 = arith.addf %317, %316 : vector<2x32xf32>
    %cst_99 = arith.constant 1.000000e+00 : f32
    %319 = vector.broadcast %cst_99 : f32 to vector<2x32xf32>
    %320 = arith.divf %319, %318 : vector<2x32xf32>
    %321 = vector.extract_strided_slice %301 {offsets = [0, 64], sizes = [2, 32], strides = [1, 1]} : vector<2x128xf32> to vector<2x32xf32>
    %322 = math.tanh %321 : vector<2x32xf32>
    %323 = vector.extract_strided_slice %301 {offsets = [0, 96], sizes = [2, 32], strides = [1, 1]} : vector<2x128xf32> to vector<2x32xf32>
    %cst_100 = arith.constant 0.000000e+00 : f32
    %324 = vector.broadcast %cst_100 : f32 to vector<2x32xf32>
    %325 = arith.subf %324, %323 : vector<2x32xf32>
    %326 = math.exp %325 : vector<2x32xf32>
    %cst_101 = arith.constant 1.000000e+00 : f32
    %327 = vector.broadcast %cst_101 : f32 to vector<2x32xf32>
    %328 = arith.addf %327, %326 : vector<2x32xf32>
    %cst_102 = arith.constant 1.000000e+00 : f32
    %329 = vector.broadcast %cst_102 : f32 to vector<2x32xf32>
    %330 = arith.divf %329, %328 : vector<2x32xf32>
    %331 = arith.mulf %320, %261 : vector<2x32xf32>
    %332 = arith.mulf %312, %322 : vector<2x32xf32>
    %333 = arith.addf %331, %332 : vector<2x32xf32>
    %334 = math.tanh %333 : vector<2x32xf32>
    %335 = arith.mulf %330, %334 : vector<2x32xf32>
    %336 = vector.extract_strided_slice %304 {offsets = [0, 0], sizes = [2, 32], strides = [1, 1]} : vector<2x128xf32> to vector<2x32xf32>
    %cst_103 = arith.constant 0.000000e+00 : f32
    %337 = vector.broadcast %cst_103 : f32 to vector<2x32xf32>
    %338 = arith.subf %337, %336 : vector<2x32xf32>
    %339 = math.exp %338 : vector<2x32xf32>
    %cst_104 = arith.constant 1.000000e+00 : f32
    %340 = vector.broadcast %cst_104 : f32 to vector<2x32xf32>
    %341 = arith.addf %340, %339 : vector<2x32xf32>
    %cst_105 = arith.constant 1.000000e+00 : f32
    %342 = vector.broadcast %cst_105 : f32 to vector<2x32xf32>
    %343 = arith.divf %342, %341 : vector<2x32xf32>
    %344 = vector.extract_strided_slice %304 {offsets = [0, 32], sizes = [2, 32], strides = [1, 1]} : vector<2x128xf32> to vector<2x32xf32>
    %cst_106 = arith.constant 0.000000e+00 : f32
    %345 = vector.broadcast %cst_106 : f32 to vector<2x32xf32>
    %346 = arith.subf %345, %344 : vector<2x32xf32>
    %347 = math.exp %346 : vector<2x32xf32>
    %cst_107 = arith.constant 1.000000e+00 : f32
    %348 = vector.broadcast %cst_107 : f32 to vector<2x32xf32>
    %349 = arith.addf %348, %347 : vector<2x32xf32>
    %cst_108 = arith.constant 1.000000e+00 : f32
    %350 = vector.broadcast %cst_108 : f32 to vector<2x32xf32>
    %351 = arith.divf %350, %349 : vector<2x32xf32>
    %352 = vector.extract_strided_slice %304 {offsets = [0, 64], sizes = [2, 32], strides = [1, 1]} : vector<2x128xf32> to vector<2x32xf32>
    %353 = math.tanh %352 : vector<2x32xf32>
    %354 = vector.extract_strided_slice %304 {offsets = [0, 96], sizes = [2, 32], strides = [1, 1]} : vector<2x128xf32> to vector<2x32xf32>
    %cst_109 = arith.constant 0.000000e+00 : f32
    %355 = vector.broadcast %cst_109 : f32 to vector<2x32xf32>
    %356 = arith.subf %355, %354 : vector<2x32xf32>
    %357 = math.exp %356 : vector<2x32xf32>
    %cst_110 = arith.constant 1.000000e+00 : f32
    %358 = vector.broadcast %cst_110 : f32 to vector<2x32xf32>
    %359 = arith.addf %358, %357 : vector<2x32xf32>
    %cst_111 = arith.constant 1.000000e+00 : f32
    %360 = vector.broadcast %cst_111 : f32 to vector<2x32xf32>
    %361 = arith.divf %360, %359 : vector<2x32xf32>
    %362 = arith.mulf %351, %292 : vector<2x32xf32>
    %363 = arith.mulf %343, %353 : vector<2x32xf32>
    %364 = arith.addf %362, %363 : vector<2x32xf32>
    %365 = math.tanh %364 : vector<2x32xf32>
    %366 = arith.mulf %361, %365 : vector<2x32xf32>
    %367 = tpu.concatenate %335, %366 in 1 : vector<2x32xf32>, vector<2x32xf32> -> vector<2x64xf32>
    %c8_112 = arith.constant 8 : index
    %c0_113 = arith.constant 0 : index
    %368 = vector.load %arg3[%c8_112, %c0_113] : memref<16x32xf32, #tpu.memory_space<vmem>>, vector<2x32xf32>
    tpu.vector_store %arg3[%c8_112, %c0_113], %335 {strides = array<i32>} : memref<16x32xf32, #tpu.memory_space<vmem>>, vector<2x32xf32>,
    %c6_114 = arith.constant 6 : index
    %c0_115 = arith.constant 0 : index
    %369 = vector.load %arg4[%c6_114, %c0_115] : memref<16x32xf32, #tpu.memory_space<vmem>>, vector<2x32xf32>
    tpu.vector_store %arg4[%c6_114, %c0_115], %366 {strides = array<i32>} : memref<16x32xf32, #tpu.memory_space<vmem>>, vector<2x32xf32>,
    %cst_116 = arith.constant dense<0.000000e+00> : vector<2x256xf32>
    %370 = tpu.matmul %367, %6, %cst_116 {dimension_numbers = #tpu.dot_dimension_numbers<[1], [0], [0], [1], [0, 0, 1, 1], [], []>} : vector<2x64xf32>, vector<64x256xf32>, vector<2x256xf32> -> vector<2x256xf32>
    %371 = vector.extract_strided_slice %5 {offsets = [10, 0], sizes = [2, 128], strides = [1, 1]} : vector<16x256xf32> to vector<2x128xf32>
    %372 = vector.extract_strided_slice %370 {offsets = [0, 0], sizes = [2, 128], strides = [1, 1]} : vector<2x256xf32> to vector<2x128xf32>
    %373 = arith.addf %371, %372 : vector<2x128xf32>
    %374 = vector.extract_strided_slice %5 {offsets = [4, 128], sizes = [2, 128], strides = [1, 1]} : vector<16x256xf32> to vector<2x128xf32>
    %375 = vector.extract_strided_slice %370 {offsets = [0, 128], sizes = [2, 128], strides = [1, 1]} : vector<2x256xf32> to vector<2x128xf32>
    %376 = arith.addf %374, %375 : vector<2x128xf32>
    %377 = vector.extract_strided_slice %373 {offsets = [0, 0], sizes = [2, 32], strides = [1, 1]} : vector<2x128xf32> to vector<2x32xf32>
    %cst_117 = arith.constant 0.000000e+00 : f32
    %378 = vector.broadcast %cst_117 : f32 to vector<2x32xf32>
    %379 = arith.subf %378, %377 : vector<2x32xf32>
    %380 = math.exp %379 : vector<2x32xf32>
    %cst_118 = arith.constant 1.000000e+00 : f32
    %381 = vector.broadcast %cst_118 : f32 to vector<2x32xf32>
    %382 = arith.addf %381, %380 : vector<2x32xf32>
    %cst_119 = arith.constant 1.000000e+00 : f32
    %383 = vector.broadcast %cst_119 : f32 to vector<2x32xf32>
    %384 = arith.divf %383, %382 : vector<2x32xf32>
    %385 = vector.extract_strided_slice %373 {offsets = [0, 32], sizes = [2, 32], strides = [1, 1]} : vector<2x128xf32> to vector<2x32xf32>
    %cst_120 = arith.constant 0.000000e+00 : f32
    %386 = vector.broadcast %cst_120 : f32 to vector<2x32xf32>
    %387 = arith.subf %386, %385 : vector<2x32xf32>
    %388 = math.exp %387 : vector<2x32xf32>
    %cst_121 = arith.constant 1.000000e+00 : f32
    %389 = vector.broadcast %cst_121 : f32 to vector<2x32xf32>
    %390 = arith.addf %389, %388 : vector<2x32xf32>
    %cst_122 = arith.constant 1.000000e+00 : f32
    %391 = vector.broadcast %cst_122 : f32 to vector<2x32xf32>
    %392 = arith.divf %391, %390 : vector<2x32xf32>
    %393 = vector.extract_strided_slice %373 {offsets = [0, 64], sizes = [2, 32], strides = [1, 1]} : vector<2x128xf32> to vector<2x32xf32>
    %394 = math.tanh %393 : vector<2x32xf32>
    %395 = vector.extract_strided_slice %373 {offsets = [0, 96], sizes = [2, 32], strides = [1, 1]} : vector<2x128xf32> to vector<2x32xf32>
    %cst_123 = arith.constant 0.000000e+00 : f32
    %396 = vector.broadcast %cst_123 : f32 to vector<2x32xf32>
    %397 = arith.subf %396, %395 : vector<2x32xf32>
    %398 = math.exp %397 : vector<2x32xf32>
    %cst_124 = arith.constant 1.000000e+00 : f32
    %399 = vector.broadcast %cst_124 : f32 to vector<2x32xf32>
    %400 = arith.addf %399, %398 : vector<2x32xf32>
    %cst_125 = arith.constant 1.000000e+00 : f32
    %401 = vector.broadcast %cst_125 : f32 to vector<2x32xf32>
    %402 = arith.divf %401, %400 : vector<2x32xf32>
    %403 = arith.mulf %392, %333 : vector<2x32xf32>
    %404 = arith.mulf %384, %394 : vector<2x32xf32>
    %405 = arith.addf %403, %404 : vector<2x32xf32>
    %406 = math.tanh %405 : vector<2x32xf32>
    %407 = arith.mulf %402, %406 : vector<2x32xf32>
    %408 = vector.extract_strided_slice %376 {offsets = [0, 0], sizes = [2, 32], strides = [1, 1]} : vector<2x128xf32> to vector<2x32xf32>
    %cst_126 = arith.constant 0.000000e+00 : f32
    %409 = vector.broadcast %cst_126 : f32 to vector<2x32xf32>
    %410 = arith.subf %409, %408 : vector<2x32xf32>
    %411 = math.exp %410 : vector<2x32xf32>
    %cst_127 = arith.constant 1.000000e+00 : f32
    %412 = vector.broadcast %cst_127 : f32 to vector<2x32xf32>
    %413 = arith.addf %412, %411 : vector<2x32xf32>
    %cst_128 = arith.constant 1.000000e+00 : f32
    %414 = vector.broadcast %cst_128 : f32 to vector<2x32xf32>
    %415 = arith.divf %414, %413 : vector<2x32xf32>
    %416 = vector.extract_strided_slice %376 {offsets = [0, 32], sizes = [2, 32], strides = [1, 1]} : vector<2x128xf32> to vector<2x32xf32>
    %cst_129 = arith.constant 0.000000e+00 : f32
    %417 = vector.broadcast %cst_129 : f32 to vector<2x32xf32>
    %418 = arith.subf %417, %416 : vector<2x32xf32>
    %419 = math.exp %418 : vector<2x32xf32>
    %cst_130 = arith.constant 1.000000e+00 : f32
    %420 = vector.broadcast %cst_130 : f32 to vector<2x32xf32>
    %421 = arith.addf %420, %419 : vector<2x32xf32>
    %cst_131 = arith.constant 1.000000e+00 : f32
    %422 = vector.broadcast %cst_131 : f32 to vector<2x32xf32>
    %423 = arith.divf %422, %421 : vector<2x32xf32>
    %424 = vector.extract_strided_slice %376 {offsets = [0, 64], sizes = [2, 32], strides = [1, 1]} : vector<2x128xf32> to vector<2x32xf32>
    %425 = math.tanh %424 : vector<2x32xf32>
    %426 = vector.extract_strided_slice %376 {offsets = [0, 96], sizes = [2, 32], strides = [1, 1]} : vector<2x128xf32> to vector<2x32xf32>
    %cst_132 = arith.constant 0.000000e+00 : f32
    %427 = vector.broadcast %cst_132 : f32 to vector<2x32xf32>
    %428 = arith.subf %427, %426 : vector<2x32xf32>
    %429 = math.exp %428 : vector<2x32xf32>
    %cst_133 = arith.constant 1.000000e+00 : f32
    %430 = vector.broadcast %cst_133 : f32 to vector<2x32xf32>
    %431 = arith.addf %430, %429 : vector<2x32xf32>
    %cst_134 = arith.constant 1.000000e+00 : f32
    %432 = vector.broadcast %cst_134 : f32 to vector<2x32xf32>
    %433 = arith.divf %432, %431 : vector<2x32xf32>
    %434 = arith.mulf %423, %364 : vector<2x32xf32>
    %435 = arith.mulf %415, %425 : vector<2x32xf32>
    %436 = arith.addf %434, %435 : vector<2x32xf32>
    %437 = math.tanh %436 : vector<2x32xf32>
    %438 = arith.mulf %433, %437 : vector<2x32xf32>
    %439 = tpu.concatenate %407, %438 in 1 : vector<2x32xf32>, vector<2x32xf32> -> vector<2x64xf32>
    %c10_135 = arith.constant 10 : index
    %c0_136 = arith.constant 0 : index
    %440 = vector.load %arg3[%c10_135, %c0_136] : memref<16x32xf32, #tpu.memory_space<vmem>>, vector<2x32xf32>
    tpu.vector_store %arg3[%c10_135, %c0_136], %407 {strides = array<i32>} : memref<16x32xf32, #tpu.memory_space<vmem>>, vector<2x32xf32>,
    %c4_137 = arith.constant 4 : index
    %c0_138 = arith.constant 0 : index
    %441 = vector.load %arg4[%c4_137, %c0_138] : memref<16x32xf32, #tpu.memory_space<vmem>>, vector<2x32xf32>
    tpu.vector_store %arg4[%c4_137, %c0_138], %438 {strides = array<i32>} : memref<16x32xf32, #tpu.memory_space<vmem>>, vector<2x32xf32>,
    %cst_139 = arith.constant dense<0.000000e+00> : vector<2x256xf32>
    %442 = tpu.matmul %439, %6, %cst_139 {dimension_numbers = #tpu.dot_dimension_numbers<[1], [0], [0], [1], [0, 0, 1, 1], [], []>} : vector<2x64xf32>, vector<64x256xf32>, vector<2x256xf32> -> vector<2x256xf32>
    %443 = vector.extract_strided_slice %5 {offsets = [12, 0], sizes = [2, 128], strides = [1, 1]} : vector<16x256xf32> to vector<2x128xf32>
    %444 = vector.extract_strided_slice %442 {offsets = [0, 0], sizes = [2, 128], strides = [1, 1]} : vector<2x256xf32> to vector<2x128xf32>
    %445 = arith.addf %443, %444 : vector<2x128xf32>
    %446 = vector.extract_strided_slice %5 {offsets = [2, 128], sizes = [2, 128], strides = [1, 1]} : vector<16x256xf32> to vector<2x128xf32>
    %447 = vector.extract_strided_slice %442 {offsets = [0, 128], sizes = [2, 128], strides = [1, 1]} : vector<2x256xf32> to vector<2x128xf32>
    %448 = arith.addf %446, %447 : vector<2x128xf32>
    %449 = vector.extract_strided_slice %445 {offsets = [0, 0], sizes = [2, 32], strides = [1, 1]} : vector<2x128xf32> to vector<2x32xf32>
    %cst_140 = arith.constant 0.000000e+00 : f32
    %450 = vector.broadcast %cst_140 : f32 to vector<2x32xf32>
    %451 = arith.subf %450, %449 : vector<2x32xf32>
    %452 = math.exp %451 : vector<2x32xf32>
    %cst_141 = arith.constant 1.000000e+00 : f32
    %453 = vector.broadcast %cst_141 : f32 to vector<2x32xf32>
    %454 = arith.addf %453, %452 : vector<2x32xf32>
    %cst_142 = arith.constant 1.000000e+00 : f32
    %455 = vector.broadcast %cst_142 : f32 to vector<2x32xf32>
    %456 = arith.divf %455, %454 : vector<2x32xf32>
    %457 = vector.extract_strided_slice %445 {offsets = [0, 32], sizes = [2, 32], strides = [1, 1]} : vector<2x128xf32> to vector<2x32xf32>
    %cst_143 = arith.constant 0.000000e+00 : f32
    %458 = vector.broadcast %cst_143 : f32 to vector<2x32xf32>
    %459 = arith.subf %458, %457 : vector<2x32xf32>
    %460 = math.exp %459 : vector<2x32xf32>
    %cst_144 = arith.constant 1.000000e+00 : f32
    %461 = vector.broadcast %cst_144 : f32 to vector<2x32xf32>
    %462 = arith.addf %461, %460 : vector<2x32xf32>
    %cst_145 = arith.constant 1.000000e+00 : f32
    %463 = vector.broadcast %cst_145 : f32 to vector<2x32xf32>
    %464 = arith.divf %463, %462 : vector<2x32xf32>
    %465 = vector.extract_strided_slice %445 {offsets = [0, 64], sizes = [2, 32], strides = [1, 1]} : vector<2x128xf32> to vector<2x32xf32>
    %466 = math.tanh %465 : vector<2x32xf32>
    %467 = vector.extract_strided_slice %445 {offsets = [0, 96], sizes = [2, 32], strides = [1, 1]} : vector<2x128xf32> to vector<2x32xf32>
    %cst_146 = arith.constant 0.000000e+00 : f32
    %468 = vector.broadcast %cst_146 : f32 to vector<2x32xf32>
    %469 = arith.subf %468, %467 : vector<2x32xf32>
    %470 = math.exp %469 : vector<2x32xf32>
    %cst_147 = arith.constant 1.000000e+00 : f32
    %471 = vector.broadcast %cst_147 : f32 to vector<2x32xf32>
    %472 = arith.addf %471, %470 : vector<2x32xf32>
    %cst_148 = arith.constant 1.000000e+00 : f32
    %473 = vector.broadcast %cst_148 : f32 to vector<2x32xf32>
    %474 = arith.divf %473, %472 : vector<2x32xf32>
    %475 = arith.mulf %464, %405 : vector<2x32xf32>
    %476 = arith.mulf %456, %466 : vector<2x32xf32>
    %477 = arith.addf %475, %476 : vector<2x32xf32>
    %478 = math.tanh %477 : vector<2x32xf32>
    %479 = arith.mulf %474, %478 : vector<2x32xf32>
    %480 = vector.extract_strided_slice %448 {offsets = [0, 0], sizes = [2, 32], strides = [1, 1]} : vector<2x128xf32> to vector<2x32xf32>
    %cst_149 = arith.constant 0.000000e+00 : f32
    %481 = vector.broadcast %cst_149 : f32 to vector<2x32xf32>
    %482 = arith.subf %481, %480 : vector<2x32xf32>
    %483 = math.exp %482 : vector<2x32xf32>
    %cst_150 = arith.constant 1.000000e+00 : f32
    %484 = vector.broadcast %cst_150 : f32 to vector<2x32xf32>
    %485 = arith.addf %484, %483 : vector<2x32xf32>
    %cst_151 = arith.constant 1.000000e+00 : f32
    %486 = vector.broadcast %cst_151 : f32 to vector<2x32xf32>
    %487 = arith.divf %486, %485 : vector<2x32xf32>
    %488 = vector.extract_strided_slice %448 {offsets = [0, 32], sizes = [2, 32], strides = [1, 1]} : vector<2x128xf32> to vector<2x32xf32>
    %cst_152 = arith.constant 0.000000e+00 : f32
    %489 = vector.broadcast %cst_152 : f32 to vector<2x32xf32>
    %490 = arith.subf %489, %488 : vector<2x32xf32>
    %491 = math.exp %490 : vector<2x32xf32>
    %cst_153 = arith.constant 1.000000e+00 : f32
    %492 = vector.broadcast %cst_153 : f32 to vector<2x32xf32>
    %493 = arith.addf %492, %491 : vector<2x32xf32>
    %cst_154 = arith.constant 1.000000e+00 : f32
    %494 = vector.broadcast %cst_154 : f32 to vector<2x32xf32>
    %495 = arith.divf %494, %493 : vector<2x32xf32>
    %496 = vector.extract_strided_slice %448 {offsets = [0, 64], sizes = [2, 32], strides = [1, 1]} : vector<2x128xf32> to vector<2x32xf32>
    %497 = math.tanh %496 : vector<2x32xf32>
    %498 = vector.extract_strided_slice %448 {offsets = [0, 96], sizes = [2, 32], strides = [1, 1]} : vector<2x128xf32> to vector<2x32xf32>
    %cst_155 = arith.constant 0.000000e+00 : f32
    %499 = vector.broadcast %cst_155 : f32 to vector<2x32xf32>
    %500 = arith.subf %499, %498 : vector<2x32xf32>
    %501 = math.exp %500 : vector<2x32xf32>
    %cst_156 = arith.constant 1.000000e+00 : f32
    %502 = vector.broadcast %cst_156 : f32 to vector<2x32xf32>
    %503 = arith.addf %502, %501 : vector<2x32xf32>
    %cst_157 = arith.constant 1.000000e+00 : f32
    %504 = vector.broadcast %cst_157 : f32 to vector<2x32xf32>
    %505 = arith.divf %504, %503 : vector<2x32xf32>
    %506 = arith.mulf %495, %436 : vector<2x32xf32>
    %507 = arith.mulf %487, %497 : vector<2x32xf32>
    %508 = arith.addf %506, %507 : vector<2x32xf32>
    %509 = math.tanh %508 : vector<2x32xf32>
    %510 = arith.mulf %505, %509 : vector<2x32xf32>
    %511 = tpu.concatenate %479, %510 in 1 : vector<2x32xf32>, vector<2x32xf32> -> vector<2x64xf32>
    %c12_158 = arith.constant 12 : index
    %c0_159 = arith.constant 0 : index
    %512 = vector.load %arg3[%c12_158, %c0_159] : memref<16x32xf32, #tpu.memory_space<vmem>>, vector<2x32xf32>
    tpu.vector_store %arg3[%c12_158, %c0_159], %479 {strides = array<i32>} : memref<16x32xf32, #tpu.memory_space<vmem>>, vector<2x32xf32>,
    %c2_160 = arith.constant 2 : index
    %c0_161 = arith.constant 0 : index
    %513 = vector.load %arg4[%c2_160, %c0_161] : memref<16x32xf32, #tpu.memory_space<vmem>>, vector<2x32xf32>
    tpu.vector_store %arg4[%c2_160, %c0_161], %510 {strides = array<i32>} : memref<16x32xf32, #tpu.memory_space<vmem>>, vector<2x32xf32>,
    %cst_162 = arith.constant dense<0.000000e+00> : vector<2x256xf32>
    %514 = tpu.matmul %511, %6, %cst_162 {dimension_numbers = #tpu.dot_dimension_numbers<[1], [0], [0], [1], [0, 0, 1, 1], [], []>} : vector<2x64xf32>, vector<64x256xf32>, vector<2x256xf32> -> vector<2x256xf32>
    %515 = vector.extract_strided_slice %5 {offsets = [14, 0], sizes = [2, 128], strides = [1, 1]} : vector<16x256xf32> to vector<2x128xf32>
    %516 = vector.extract_strided_slice %514 {offsets = [0, 0], sizes = [2, 128], strides = [1, 1]} : vector<2x256xf32> to vector<2x128xf32>
    %517 = arith.addf %515, %516 : vector<2x128xf32>
    %518 = vector.extract_strided_slice %5 {offsets = [0, 128], sizes = [2, 128], strides = [1, 1]} : vector<16x256xf32> to vector<2x128xf32>
    %519 = vector.extract_strided_slice %514 {offsets = [0, 128], sizes = [2, 128], strides = [1, 1]} : vector<2x256xf32> to vector<2x128xf32>
    %520 = arith.addf %518, %519 : vector<2x128xf32>
    %521 = vector.extract_strided_slice %517 {offsets = [0, 0], sizes = [2, 32], strides = [1, 1]} : vector<2x128xf32> to vector<2x32xf32>
    %cst_163 = arith.constant 0.000000e+00 : f32
    %522 = vector.broadcast %cst_163 : f32 to vector<2x32xf32>
    %523 = arith.subf %522, %521 : vector<2x32xf32>
    %524 = math.exp %523 : vector<2x32xf32>
    %cst_164 = arith.constant 1.000000e+00 : f32
    %525 = vector.broadcast %cst_164 : f32 to vector<2x32xf32>
    %526 = arith.addf %525, %524 : vector<2x32xf32>
    %cst_165 = arith.constant 1.000000e+00 : f32
    %527 = vector.broadcast %cst_165 : f32 to vector<2x32xf32>
    %528 = arith.divf %527, %526 : vector<2x32xf32>
    %529 = vector.extract_strided_slice %517 {offsets = [0, 32], sizes = [2, 32], strides = [1, 1]} : vector<2x128xf32> to vector<2x32xf32>
    %cst_166 = arith.constant 0.000000e+00 : f32
    %530 = vector.broadcast %cst_166 : f32 to vector<2x32xf32>
    %531 = arith.subf %530, %529 : vector<2x32xf32>
    %532 = math.exp %531 : vector<2x32xf32>
    %cst_167 = arith.constant 1.000000e+00 : f32
    %533 = vector.broadcast %cst_167 : f32 to vector<2x32xf32>
    %534 = arith.addf %533, %532 : vector<2x32xf32>
    %cst_168 = arith.constant 1.000000e+00 : f32
    %535 = vector.broadcast %cst_168 : f32 to vector<2x32xf32>
    %536 = arith.divf %535, %534 : vector<2x32xf32>
    %537 = vector.extract_strided_slice %517 {offsets = [0, 64], sizes = [2, 32], strides = [1, 1]} : vector<2x128xf32> to vector<2x32xf32>
    %538 = math.tanh %537 : vector<2x32xf32>
    %539 = vector.extract_strided_slice %517 {offsets = [0, 96], sizes = [2, 32], strides = [1, 1]} : vector<2x128xf32> to vector<2x32xf32>
    %cst_169 = arith.constant 0.000000e+00 : f32
    %540 = vector.broadcast %cst_169 : f32 to vector<2x32xf32>
    %541 = arith.subf %540, %539 : vector<2x32xf32>
    %542 = math.exp %541 : vector<2x32xf32>
    %cst_170 = arith.constant 1.000000e+00 : f32
    %543 = vector.broadcast %cst_170 : f32 to vector<2x32xf32>
    %544 = arith.addf %543, %542 : vector<2x32xf32>
    %cst_171 = arith.constant 1.000000e+00 : f32
    %545 = vector.broadcast %cst_171 : f32 to vector<2x32xf32>
    %546 = arith.divf %545, %544 : vector<2x32xf32>
    %547 = arith.mulf %536, %477 : vector<2x32xf32>
    %548 = arith.mulf %528, %538 : vector<2x32xf32>
    %549 = arith.addf %547, %548 : vector<2x32xf32>
    %550 = math.tanh %549 : vector<2x32xf32>
    %551 = arith.mulf %546, %550 : vector<2x32xf32>
    %552 = vector.extract_strided_slice %520 {offsets = [0, 0], sizes = [2, 32], strides = [1, 1]} : vector<2x128xf32> to vector<2x32xf32>
    %cst_172 = arith.constant 0.000000e+00 : f32
    %553 = vector.broadcast %cst_172 : f32 to vector<2x32xf32>
    %554 = arith.subf %553, %552 : vector<2x32xf32>
    %555 = math.exp %554 : vector<2x32xf32>
    %cst_173 = arith.constant 1.000000e+00 : f32
    %556 = vector.broadcast %cst_173 : f32 to vector<2x32xf32>
    %557 = arith.addf %556, %555 : vector<2x32xf32>
    %cst_174 = arith.constant 1.000000e+00 : f32
    %558 = vector.broadcast %cst_174 : f32 to vector<2x32xf32>
    %559 = arith.divf %558, %557 : vector<2x32xf32>
    %560 = vector.extract_strided_slice %520 {offsets = [0, 32], sizes = [2, 32], strides = [1, 1]} : vector<2x128xf32> to vector<2x32xf32>
    %cst_175 = arith.constant 0.000000e+00 : f32
    %561 = vector.broadcast %cst_175 : f32 to vector<2x32xf32>
    %562 = arith.subf %561, %560 : vector<2x32xf32>
    %563 = math.exp %562 : vector<2x32xf32>
    %cst_176 = arith.constant 1.000000e+00 : f32
    %564 = vector.broadcast %cst_176 : f32 to vector<2x32xf32>
    %565 = arith.addf %564, %563 : vector<2x32xf32>
    %cst_177 = arith.constant 1.000000e+00 : f32
    %566 = vector.broadcast %cst_177 : f32 to vector<2x32xf32>
    %567 = arith.divf %566, %565 : vector<2x32xf32>
    %568 = vector.extract_strided_slice %520 {offsets = [0, 64], sizes = [2, 32], strides = [1, 1]} : vector<2x128xf32> to vector<2x32xf32>
    %569 = math.tanh %568 : vector<2x32xf32>
    %570 = vector.extract_strided_slice %520 {offsets = [0, 96], sizes = [2, 32], strides = [1, 1]} : vector<2x128xf32> to vector<2x32xf32>
    %cst_178 = arith.constant 0.000000e+00 : f32
    %571 = vector.broadcast %cst_178 : f32 to vector<2x32xf32>
    %572 = arith.subf %571, %570 : vector<2x32xf32>
    %573 = math.exp %572 : vector<2x32xf32>
    %cst_179 = arith.constant 1.000000e+00 : f32
    %574 = vector.broadcast %cst_179 : f32 to vector<2x32xf32>
    %575 = arith.addf %574, %573 : vector<2x32xf32>
    %cst_180 = arith.constant 1.000000e+00 : f32
    %576 = vector.broadcast %cst_180 : f32 to vector<2x32xf32>
    %577 = arith.divf %576, %575 : vector<2x32xf32>
    %578 = arith.mulf %567, %508 : vector<2x32xf32>
    %579 = arith.mulf %559, %569 : vector<2x32xf32>
    %580 = arith.addf %578, %579 : vector<2x32xf32>
    %581 = math.tanh %580 : vector<2x32xf32>
    %582 = arith.mulf %577, %581 : vector<2x32xf32>
    %c14_181 = arith.constant 14 : index
    %c0_182 = arith.constant 0 : index
    %583 = vector.load %arg3[%c14_181, %c0_182] : memref<16x32xf32, #tpu.memory_space<vmem>>, vector<2x32xf32>
    tpu.vector_store %arg3[%c14_181, %c0_182], %551 {strides = array<i32>} : memref<16x32xf32, #tpu.memory_space<vmem>>, vector<2x32xf32>,
    %c0_183 = arith.constant 0 : index
    %c0_184 = arith.constant 0 : index
    %584 = vector.load %arg4[%c0_183, %c0_184] : memref<16x32xf32, #tpu.memory_space<vmem>>, vector<2x32xf32>
    tpu.vector_store %arg4[%c0_183, %c0_184], %582 {strides = array<i32>} : memref<16x32xf32, #tpu.memory_space<vmem>>, vector<2x32xf32>,
    %c112 = arith.constant 112 : index
    %c0_185 = arith.constant 0 : index
    %585 = vector.load %arg1[%c112, %c0_185] : memref<568x256xf32, #tpu.memory_space<vmem>>, vector<64x256xf32>
    %c0_186 = arith.constant 0 : index
    %c0_187 = arith.constant 0 : index
    %586 = vector.load %arg3[%c0_186, %c0_187] : memref<16x32xf32, #tpu.memory_space<vmem>>, vector<16x32xf32>
    %587 = vector.extract_strided_slice %585 {offsets = [0, 0], sizes = [32, 256], strides = [1, 1]} : vector<64x256xf32> to vector<32x256xf32>
    %cst_188 = arith.constant dense<0.000000e+00> : vector<16x256xf32>
    %588 = tpu.matmul %586, %587, %cst_188 {dimension_numbers = #tpu.dot_dimension_numbers<[1], [0], [0], [1], [0, 0, 1, 1], [], []>} : vector<16x32xf32>, vector<32x256xf32>, vector<16x256xf32> -> vector<16x256xf32>
    %c0_189 = arith.constant 0 : index
    %c0_190 = arith.constant 0 : index
    %589 = vector.load %arg4[%c0_189, %c0_190] : memref<16x32xf32, #tpu.memory_space<vmem>>, vector<16x32xf32>
    %590 = vector.extract_strided_slice %585 {offsets = [32, 0], sizes = [32, 256], strides = [1, 1]} : vector<64x256xf32> to vector<32x256xf32>
    %cst_191 = arith.constant dense<0.000000e+00> : vector<16x256xf32>
    %591 = tpu.matmul %589, %590, %cst_191 {dimension_numbers = #tpu.dot_dimension_numbers<[1], [0], [0], [1], [0, 0, 1, 1], [], []>} : vector<16x32xf32>, vector<32x256xf32>, vector<16x256xf32> -> vector<16x256xf32>
    %592 = arith.addf %588, %591 : vector<16x256xf32>
    %c536 = arith.constant 536 : index
    %c0_192 = arith.constant 0 : index
    %593 = vector.load %arg1[%c536, %c0_192] : memref<568x256xf32, #tpu.memory_space<vmem>>, vector<1x256xf32>
    %594 = vector.broadcast %593 : vector<1x256xf32> to vector<16x256xf32>
    %595 = arith.addf %592, %594 : vector<16x256xf32>
    %c176 = arith.constant 176 : index
    %c0_193 = arith.constant 0 : index
    %596 = vector.load %arg1[%c176, %c0_193] : memref<568x256xf32, #tpu.memory_space<vmem>>, vector<64x256xf32>
    %cst_194 = arith.constant 0.000000e+00 : f32
    %597 = vector.broadcast %cst_194 : f32 to vector<2x64xf32>
    %cst_195 = arith.constant 0.000000e+00 : f32
    %598 = vector.broadcast %cst_195 : f32 to vector<2x32xf32>
    %cst_196 = arith.constant 0.000000e+00 : f32
    %599 = vector.broadcast %cst_196 : f32 to vector<2x32xf32>
    %cst_197 = arith.constant dense<0.000000e+00> : vector<2x256xf32>
    %600 = tpu.matmul %597, %596, %cst_197 {dimension_numbers = #tpu.dot_dimension_numbers<[1], [0], [0], [1], [0, 0, 1, 1], [], []>} : vector<2x64xf32>, vector<64x256xf32>, vector<2x256xf32> -> vector<2x256xf32>
    %601 = vector.extract_strided_slice %595 {offsets = [0, 0], sizes = [2, 128], strides = [1, 1]} : vector<16x256xf32> to vector<2x128xf32>
    %602 = vector.extract_strided_slice %600 {offsets = [0, 0], sizes = [2, 128], strides = [1, 1]} : vector<2x256xf32> to vector<2x128xf32>
    %603 = arith.addf %601, %602 : vector<2x128xf32>
    %604 = vector.extract_strided_slice %595 {offsets = [14, 128], sizes = [2, 128], strides = [1, 1]} : vector<16x256xf32> to vector<2x128xf32>
    %605 = vector.extract_strided_slice %600 {offsets = [0, 128], sizes = [2, 128], strides = [1, 1]} : vector<2x256xf32> to vector<2x128xf32>
    %606 = arith.addf %604, %605 : vector<2x128xf32>
    %607 = vector.extract_strided_slice %603 {offsets = [0, 0], sizes = [2, 32], strides = [1, 1]} : vector<2x128xf32> to vector<2x32xf32>
    %cst_198 = arith.constant 0.000000e+00 : f32
    %608 = vector.broadcast %cst_198 : f32 to vector<2x32xf32>
    %609 = arith.subf %608, %607 : vector<2x32xf32>
    %610 = math.exp %609 : vector<2x32xf32>
    %cst_199 = arith.constant 1.000000e+00 : f32
    %611 = vector.broadcast %cst_199 : f32 to vector<2x32xf32>
    %612 = arith.addf %611, %610 : vector<2x32xf32>
    %cst_200 = arith.constant 1.000000e+00 : f32
    %613 = vector.broadcast %cst_200 : f32 to vector<2x32xf32>
    %614 = arith.divf %613, %612 : vector<2x32xf32>
    %615 = vector.extract_strided_slice %603 {offsets = [0, 32], sizes = [2, 32], strides = [1, 1]} : vector<2x128xf32> to vector<2x32xf32>
    %cst_201 = arith.constant 0.000000e+00 : f32
    %616 = vector.broadcast %cst_201 : f32 to vector<2x32xf32>
    %617 = arith.subf %616, %615 : vector<2x32xf32>
    %618 = math.exp %617 : vector<2x32xf32>
    %cst_202 = arith.constant 1.000000e+00 : f32
    %619 = vector.broadcast %cst_202 : f32 to vector<2x32xf32>
    %620 = arith.addf %619, %618 : vector<2x32xf32>
    %cst_203 = arith.constant 1.000000e+00 : f32
    %621 = vector.broadcast %cst_203 : f32 to vector<2x32xf32>
    %622 = arith.divf %621, %620 : vector<2x32xf32>
    %623 = vector.extract_strided_slice %603 {offsets = [0, 64], sizes = [2, 32], strides = [1, 1]} : vector<2x128xf32> to vector<2x32xf32>
    %624 = math.tanh %623 : vector<2x32xf32>
    %625 = vector.extract_strided_slice %603 {offsets = [0, 96], sizes = [2, 32], strides = [1, 1]} : vector<2x128xf32> to vector<2x32xf32>
    %cst_204 = arith.constant 0.000000e+00 : f32
    %626 = vector.broadcast %cst_204 : f32 to vector<2x32xf32>
    %627 = arith.subf %626, %625 : vector<2x32xf32>
    %628 = math.exp %627 : vector<2x32xf32>
    %cst_205 = arith.constant 1.000000e+00 : f32
    %629 = vector.broadcast %cst_205 : f32 to vector<2x32xf32>
    %630 = arith.addf %629, %628 : vector<2x32xf32>
    %cst_206 = arith.constant 1.000000e+00 : f32
    %631 = vector.broadcast %cst_206 : f32 to vector<2x32xf32>
    %632 = arith.divf %631, %630 : vector<2x32xf32>
    %633 = arith.mulf %622, %598 : vector<2x32xf32>
    %634 = arith.mulf %614, %624 : vector<2x32xf32>
    %635 = arith.addf %633, %634 : vector<2x32xf32>
    %636 = math.tanh %635 : vector<2x32xf32>
    %637 = arith.mulf %632, %636 : vector<2x32xf32>
    %638 = vector.extract_strided_slice %606 {offsets = [0, 0], sizes = [2, 32], strides = [1, 1]} : vector<2x128xf32> to vector<2x32xf32>
    %cst_207 = arith.constant 0.000000e+00 : f32
    %639 = vector.broadcast %cst_207 : f32 to vector<2x32xf32>
    %640 = arith.subf %639, %638 : vector<2x32xf32>
    %641 = math.exp %640 : vector<2x32xf32>
    %cst_208 = arith.constant 1.000000e+00 : f32
    %642 = vector.broadcast %cst_208 : f32 to vector<2x32xf32>
    %643 = arith.addf %642, %641 : vector<2x32xf32>
    %cst_209 = arith.constant 1.000000e+00 : f32
    %644 = vector.broadcast %cst_209 : f32 to vector<2x32xf32>
    %645 = arith.divf %644, %643 : vector<2x32xf32>
    %646 = vector.extract_strided_slice %606 {offsets = [0, 32], sizes = [2, 32], strides = [1, 1]} : vector<2x128xf32> to vector<2x32xf32>
    %cst_210 = arith.constant 0.000000e+00 : f32
    %647 = vector.broadcast %cst_210 : f32 to vector<2x32xf32>
    %648 = arith.subf %647, %646 : vector<2x32xf32>
    %649 = math.exp %648 : vector<2x32xf32>
    %cst_211 = arith.constant 1.000000e+00 : f32
    %650 = vector.broadcast %cst_211 : f32 to vector<2x32xf32>
    %651 = arith.addf %650, %649 : vector<2x32xf32>
    %cst_212 = arith.constant 1.000000e+00 : f32
    %652 = vector.broadcast %cst_212 : f32 to vector<2x32xf32>
    %653 = arith.divf %652, %651 : vector<2x32xf32>
    %654 = vector.extract_strided_slice %606 {offsets = [0, 64], sizes = [2, 32], strides = [1, 1]} : vector<2x128xf32> to vector<2x32xf32>
    %655 = math.tanh %654 : vector<2x32xf32>
    %656 = vector.extract_strided_slice %606 {offsets = [0, 96], sizes = [2, 32], strides = [1, 1]} : vector<2x128xf32> to vector<2x32xf32>
    %cst_213 = arith.constant 0.000000e+00 : f32
    %657 = vector.broadcast %cst_213 : f32 to vector<2x32xf32>
    %658 = arith.subf %657, %656 : vector<2x32xf32>
    %659 = math.exp %658 : vector<2x32xf32>
    %cst_214 = arith.constant 1.000000e+00 : f32
    %660 = vector.broadcast %cst_214 : f32 to vector<2x32xf32>
    %661 = arith.addf %660, %659 : vector<2x32xf32>
    %cst_215 = arith.constant 1.000000e+00 : f32
    %662 = vector.broadcast %cst_215 : f32 to vector<2x32xf32>
    %663 = arith.divf %662, %661 : vector<2x32xf32>
    %664 = arith.mulf %653, %599 : vector<2x32xf32>
    %665 = arith.mulf %645, %655 : vector<2x32xf32>
    %666 = arith.addf %664, %665 : vector<2x32xf32>
    %667 = math.tanh %666 : vector<2x32xf32>
    %668 = arith.mulf %663, %667 : vector<2x32xf32>
    %669 = tpu.concatenate %637, %668 in 1 : vector<2x32xf32>, vector<2x32xf32> -> vector<2x64xf32>
    %c0_216 = arith.constant 0 : index
    %c0_217 = arith.constant 0 : index
    %670 = vector.load %arg5[%c0_216, %c0_217] : memref<16x32xf32, #tpu.memory_space<vmem>>, vector<2x32xf32>
    tpu.vector_store %arg5[%c0_216, %c0_217], %637 {strides = array<i32>} : memref<16x32xf32, #tpu.memory_space<vmem>>, vector<2x32xf32>,
    %c14_218 = arith.constant 14 : index
    %c0_219 = arith.constant 0 : index
    %671 = vector.load %arg6[%c14_218, %c0_219] : memref<16x32xf32, #tpu.memory_space<vmem>>, vector<2x32xf32>
    tpu.vector_store %arg6[%c14_218, %c0_219], %668 {strides = array<i32>} : memref<16x32xf32, #tpu.memory_space<vmem>>, vector<2x32xf32>,
    %cst_220 = arith.constant dense<0.000000e+00> : vector<2x256xf32>
    %672 = tpu.matmul %669, %596, %cst_220 {dimension_numbers = #tpu.dot_dimension_numbers<[1], [0], [0], [1], [0, 0, 1, 1], [], []>} : vector<2x64xf32>, vector<64x256xf32>, vector<2x256xf32> -> vector<2x256xf32>
    %673 = vector.extract_strided_slice %595 {offsets = [2, 0], sizes = [2, 128], strides = [1, 1]} : vector<16x256xf32> to vector<2x128xf32>
    %674 = vector.extract_strided_slice %672 {offsets = [0, 0], sizes = [2, 128], strides = [1, 1]} : vector<2x256xf32> to vector<2x128xf32>
    %675 = arith.addf %673, %674 : vector<2x128xf32>
    %676 = vector.extract_strided_slice %595 {offsets = [12, 128], sizes = [2, 128], strides = [1, 1]} : vector<16x256xf32> to vector<2x128xf32>
    %677 = vector.extract_strided_slice %672 {offsets = [0, 128], sizes = [2, 128], strides = [1, 1]} : vector<2x256xf32> to vector<2x128xf32>
    %678 = arith.addf %676, %677 : vector<2x128xf32>
    %679 = vector.extract_strided_slice %675 {offsets = [0, 0], sizes = [2, 32], strides = [1, 1]} : vector<2x128xf32> to vector<2x32xf32>
    %cst_221 = arith.constant 0.000000e+00 : f32
    %680 = vector.broadcast %cst_221 : f32 to vector<2x32xf32>
    %681 = arith.subf %680, %679 : vector<2x32xf32>
    %682 = math.exp %681 : vector<2x32xf32>
    %cst_222 = arith.constant 1.000000e+00 : f32
    %683 = vector.broadcast %cst_222 : f32 to vector<2x32xf32>
    %684 = arith.addf %683, %682 : vector<2x32xf32>
    %cst_223 = arith.constant 1.000000e+00 : f32
    %685 = vector.broadcast %cst_223 : f32 to vector<2x32xf32>
    %686 = arith.divf %685, %684 : vector<2x32xf32>
    %687 = vector.extract_strided_slice %675 {offsets = [0, 32], sizes = [2, 32], strides = [1, 1]} : vector<2x128xf32> to vector<2x32xf32>
    %cst_224 = arith.constant 0.000000e+00 : f32
    %688 = vector.broadcast %cst_224 : f32 to vector<2x32xf32>
    %689 = arith.subf %688, %687 : vector<2x32xf32>
    %690 = math.exp %689 : vector<2x32xf32>
    %cst_225 = arith.constant 1.000000e+00 : f32
    %691 = vector.broadcast %cst_225 : f32 to vector<2x32xf32>
    %692 = arith.addf %691, %690 : vector<2x32xf32>
    %cst_226 = arith.constant 1.000000e+00 : f32
    %693 = vector.broadcast %cst_226 : f32 to vector<2x32xf32>
    %694 = arith.divf %693, %692 : vector<2x32xf32>
    %695 = vector.extract_strided_slice %675 {offsets = [0, 64], sizes = [2, 32], strides = [1, 1]} : vector<2x128xf32> to vector<2x32xf32>
    %696 = math.tanh %695 : vector<2x32xf32>
    %697 = vector.extract_strided_slice %675 {offsets = [0, 96], sizes = [2, 32], strides = [1, 1]} : vector<2x128xf32> to vector<2x32xf32>
    %cst_227 = arith.constant 0.000000e+00 : f32
    %698 = vector.broadcast %cst_227 : f32 to vector<2x32xf32>
    %699 = arith.subf %698, %697 : vector<2x32xf32>
    %700 = math.exp %699 : vector<2x32xf32>
    %cst_228 = arith.constant 1.000000e+00 : f32
    %701 = vector.broadcast %cst_228 : f32 to vector<2x32xf32>
    %702 = arith.addf %701, %700 : vector<2x32xf32>
    %cst_229 = arith.constant 1.000000e+00 : f32
    %703 = vector.broadcast %cst_229 : f32 to vector<2x32xf32>
    %704 = arith.divf %703, %702 : vector<2x32xf32>
    %705 = arith.mulf %694, %635 : vector<2x32xf32>
    %706 = arith.mulf %686, %696 : vector<2x32xf32>
    %707 = arith.addf %705, %706 : vector<2x32xf32>
    %708 = math.tanh %707 : vector<2x32xf32>
    %709 = arith.mulf %704, %708 : vector<2x32xf32>
    %710 = vector.extract_strided_slice %678 {offsets = [0, 0], sizes = [2, 32], strides = [1, 1]} : vector<2x128xf32> to vector<2x32xf32>
    %cst_230 = arith.constant 0.000000e+00 : f32
    %711 = vector.broadcast %cst_230 : f32 to vector<2x32xf32>
    %712 = arith.subf %711, %710 : vector<2x32xf32>
    %713 = math.exp %712 : vector<2x32xf32>
    %cst_231 = arith.constant 1.000000e+00 : f32
    %714 = vector.broadcast %cst_231 : f32 to vector<2x32xf32>
    %715 = arith.addf %714, %713 : vector<2x32xf32>
    %cst_232 = arith.constant 1.000000e+00 : f32
    %716 = vector.broadcast %cst_232 : f32 to vector<2x32xf32>
    %717 = arith.divf %716, %715 : vector<2x32xf32>
    %718 = vector.extract_strided_slice %678 {offsets = [0, 32], sizes = [2, 32], strides = [1, 1]} : vector<2x128xf32> to vector<2x32xf32>
    %cst_233 = arith.constant 0.000000e+00 : f32
    %719 = vector.broadcast %cst_233 : f32 to vector<2x32xf32>
    %720 = arith.subf %719, %718 : vector<2x32xf32>
    %721 = math.exp %720 : vector<2x32xf32>
    %cst_234 = arith.constant 1.000000e+00 : f32
    %722 = vector.broadcast %cst_234 : f32 to vector<2x32xf32>
    %723 = arith.addf %722, %721 : vector<2x32xf32>
    %cst_235 = arith.constant 1.000000e+00 : f32
    %724 = vector.broadcast %cst_235 : f32 to vector<2x32xf32>
    %725 = arith.divf %724, %723 : vector<2x32xf32>
    %726 = vector.extract_strided_slice %678 {offsets = [0, 64], sizes = [2, 32], strides = [1, 1]} : vector<2x128xf32> to vector<2x32xf32>
    %727 = math.tanh %726 : vector<2x32xf32>
    %728 = vector.extract_strided_slice %678 {offsets = [0, 96], sizes = [2, 32], strides = [1, 1]} : vector<2x128xf32> to vector<2x32xf32>
    %cst_236 = arith.constant 0.000000e+00 : f32
    %729 = vector.broadcast %cst_236 : f32 to vector<2x32xf32>
    %730 = arith.subf %729, %728 : vector<2x32xf32>
    %731 = math.exp %730 : vector<2x32xf32>
    %cst_237 = arith.constant 1.000000e+00 : f32
    %732 = vector.broadcast %cst_237 : f32 to vector<2x32xf32>
    %733 = arith.addf %732, %731 : vector<2x32xf32>
    %cst_238 = arith.constant 1.000000e+00 : f32
    %734 = vector.broadcast %cst_238 : f32 to vector<2x32xf32>
    %735 = arith.divf %734, %733 : vector<2x32xf32>
    %736 = arith.mulf %725, %666 : vector<2x32xf32>
    %737 = arith.mulf %717, %727 : vector<2x32xf32>
    %738 = arith.addf %736, %737 : vector<2x32xf32>
    %739 = math.tanh %738 : vector<2x32xf32>
    %740 = arith.mulf %735, %739 : vector<2x32xf32>
    %741 = tpu.concatenate %709, %740 in 1 : vector<2x32xf32>, vector<2x32xf32> -> vector<2x64xf32>
    %c2_239 = arith.constant 2 : index
    %c0_240 = arith.constant 0 : index
    %742 = vector.load %arg5[%c2_239, %c0_240] : memref<16x32xf32, #tpu.memory_space<vmem>>, vector<2x32xf32>
    tpu.vector_store %arg5[%c2_239, %c0_240], %709 {strides = array<i32>} : memref<16x32xf32, #tpu.memory_space<vmem>>, vector<2x32xf32>,
    %c12_241 = arith.constant 12 : index
    %c0_242 = arith.constant 0 : index
    %743 = vector.load %arg6[%c12_241, %c0_242] : memref<16x32xf32, #tpu.memory_space<vmem>>, vector<2x32xf32>
    tpu.vector_store %arg6[%c12_241, %c0_242], %740 {strides = array<i32>} : memref<16x32xf32, #tpu.memory_space<vmem>>, vector<2x32xf32>,
    %cst_243 = arith.constant dense<0.000000e+00> : vector<2x256xf32>
    %744 = tpu.matmul %741, %596, %cst_243 {dimension_numbers = #tpu.dot_dimension_numbers<[1], [0], [0], [1], [0, 0, 1, 1], [], []>} : vector<2x64xf32>, vector<64x256xf32>, vector<2x256xf32> -> vector<2x256xf32>
    %745 = vector.extract_strided_slice %595 {offsets = [4, 0], sizes = [2, 128], strides = [1, 1]} : vector<16x256xf32> to vector<2x128xf32>
    %746 = vector.extract_strided_slice %744 {offsets = [0, 0], sizes = [2, 128], strides = [1, 1]} : vector<2x256xf32> to vector<2x128xf32>
    %747 = arith.addf %745, %746 : vector<2x128xf32>
    %748 = vector.extract_strided_slice %595 {offsets = [10, 128], sizes = [2, 128], strides = [1, 1]} : vector<16x256xf32> to vector<2x128xf32>
    %749 = vector.extract_strided_slice %744 {offsets = [0, 128], sizes = [2, 128], strides = [1, 1]} : vector<2x256xf32> to vector<2x128xf32>
    %750 = arith.addf %748, %749 : vector<2x128xf32>
    %751 = vector.extract_strided_slice %747 {offsets = [0, 0], sizes = [2, 32], strides = [1, 1]} : vector<2x128xf32> to vector<2x32xf32>
    %cst_244 = arith.constant 0.000000e+00 : f32
    %752 = vector.broadcast %cst_244 : f32 to vector<2x32xf32>
    %753 = arith.subf %752, %751 : vector<2x32xf32>
    %754 = math.exp %753 : vector<2x32xf32>
    %cst_245 = arith.constant 1.000000e+00 : f32
    %755 = vector.broadcast %cst_245 : f32 to vector<2x32xf32>
    %756 = arith.addf %755, %754 : vector<2x32xf32>
    %cst_246 = arith.constant 1.000000e+00 : f32
    %757 = vector.broadcast %cst_246 : f32 to vector<2x32xf32>
    %758 = arith.divf %757, %756 : vector<2x32xf32>
    %759 = vector.extract_strided_slice %747 {offsets = [0, 32], sizes = [2, 32], strides = [1, 1]} : vector<2x128xf32> to vector<2x32xf32>
    %cst_247 = arith.constant 0.000000e+00 : f32
    %760 = vector.broadcast %cst_247 : f32 to vector<2x32xf32>
    %761 = arith.subf %760, %759 : vector<2x32xf32>
    %762 = math.exp %761 : vector<2x32xf32>
    %cst_248 = arith.constant 1.000000e+00 : f32
    %763 = vector.broadcast %cst_248 : f32 to vector<2x32xf32>
    %764 = arith.addf %763, %762 : vector<2x32xf32>
    %cst_249 = arith.constant 1.000000e+00 : f32
    %765 = vector.broadcast %cst_249 : f32 to vector<2x32xf32>
    %766 = arith.divf %765, %764 : vector<2x32xf32>
    %767 = vector.extract_strided_slice %747 {offsets = [0, 64], sizes = [2, 32], strides = [1, 1]} : vector<2x128xf32> to vector<2x32xf32>
    %768 = math.tanh %767 : vector<2x32xf32>
    %769 = vector.extract_strided_slice %747 {offsets = [0, 96], sizes = [2, 32], strides = [1, 1]} : vector<2x128xf32> to vector<2x32xf32>
    %cst_250 = arith.constant 0.000000e+00 : f32
    %770 = vector.broadcast %cst_250 : f32 to vector<2x32xf32>
    %771 = arith.subf %770, %769 : vector<2x32xf32>
    %772 = math.exp %771 : vector<2x32xf32>
    %cst_251 = arith.constant 1.000000e+00 : f32
    %773 = vector.broadcast %cst_251 : f32 to vector<2x32xf32>
    %774 = arith.addf %773, %772 : vector<2x32xf32>
    %cst_252 = arith.constant 1.000000e+00 : f32
    %775 = vector.broadcast %cst_252 : f32 to vector<2x32xf32>
    %776 = arith.divf %775, %774 : vector<2x32xf32>
    %777 = arith.mulf %766, %707 : vector<2x32xf32>
    %778 = arith.mulf %758, %768 : vector<2x32xf32>
    %779 = arith.addf %777, %778 : vector<2x32xf32>
    %780 = math.tanh %779 : vector<2x32xf32>
    %781 = arith.mulf %776, %780 : vector<2x32xf32>
    %782 = vector.extract_strided_slice %750 {offsets = [0, 0], sizes = [2, 32], strides = [1, 1]} : vector<2x128xf32> to vector<2x32xf32>
    %cst_253 = arith.constant 0.000000e+00 : f32
    %783 = vector.broadcast %cst_253 : f32 to vector<2x32xf32>
    %784 = arith.subf %783, %782 : vector<2x32xf32>
    %785 = math.exp %784 : vector<2x32xf32>
    %cst_254 = arith.constant 1.000000e+00 : f32
    %786 = vector.broadcast %cst_254 : f32 to vector<2x32xf32>
    %787 = arith.addf %786, %785 : vector<2x32xf32>
    %cst_255 = arith.constant 1.000000e+00 : f32
    %788 = vector.broadcast %cst_255 : f32 to vector<2x32xf32>
    %789 = arith.divf %788, %787 : vector<2x32xf32>
    %790 = vector.extract_strided_slice %750 {offsets = [0, 32], sizes = [2, 32], strides = [1, 1]} : vector<2x128xf32> to vector<2x32xf32>
    %cst_256 = arith.constant 0.000000e+00 : f32
    %791 = vector.broadcast %cst_256 : f32 to vector<2x32xf32>
    %792 = arith.subf %791, %790 : vector<2x32xf32>
    %793 = math.exp %792 : vector<2x32xf32>
    %cst_257 = arith.constant 1.000000e+00 : f32
    %794 = vector.broadcast %cst_257 : f32 to vector<2x32xf32>
    %795 = arith.addf %794, %793 : vector<2x32xf32>
    %cst_258 = arith.constant 1.000000e+00 : f32
    %796 = vector.broadcast %cst_258 : f32 to vector<2x32xf32>
    %797 = arith.divf %796, %795 : vector<2x32xf32>
    %798 = vector.extract_strided_slice %750 {offsets = [0, 64], sizes = [2, 32], strides = [1, 1]} : vector<2x128xf32> to vector<2x32xf32>
    %799 = math.tanh %798 : vector<2x32xf32>
    %800 = vector.extract_strided_slice %750 {offsets = [0, 96], sizes = [2, 32], strides = [1, 1]} : vector<2x128xf32> to vector<2x32xf32>
    %cst_259 = arith.constant 0.000000e+00 : f32
    %801 = vector.broadcast %cst_259 : f32 to vector<2x32xf32>
    %802 = arith.subf %801, %800 : vector<2x32xf32>
    %803 = math.exp %802 : vector<2x32xf32>
    %cst_260 = arith.constant 1.000000e+00 : f32
    %804 = vector.broadcast %cst_260 : f32 to vector<2x32xf32>
    %805 = arith.addf %804, %803 : vector<2x32xf32>
    %cst_261 = arith.constant 1.000000e+00 : f32
    %806 = vector.broadcast %cst_261 : f32 to vector<2x32xf32>
    %807 = arith.divf %806, %805 : vector<2x32xf32>
    %808 = arith.mulf %797, %738 : vector<2x32xf32>
    %809 = arith.mulf %789, %799 : vector<2x32xf32>
    %810 = arith.addf %808, %809 : vector<2x32xf32>
    %811 = math.tanh %810 : vector<2x32xf32>
    %812 = arith.mulf %807, %811 : vector<2x32xf32>
    %813 = tpu.concatenate %781, %812 in 1 : vector<2x32xf32>, vector<2x32xf32> -> vector<2x64xf32>
    %c4_262 = arith.constant 4 : index
    %c0_263 = arith.constant 0 : index
    %814 = vector.load %arg5[%c4_262, %c0_263] : memref<16x32xf32, #tpu.memory_space<vmem>>, vector<2x32xf32>
    tpu.vector_store %arg5[%c4_262, %c0_263], %781 {strides = array<i32>} : memref<16x32xf32, #tpu.memory_space<vmem>>, vector<2x32xf32>,
    %c10_264 = arith.constant 10 : index
    %c0_265 = arith.constant 0 : index
    %815 = vector.load %arg6[%c10_264, %c0_265] : memref<16x32xf32, #tpu.memory_space<vmem>>, vector<2x32xf32>
    tpu.vector_store %arg6[%c10_264, %c0_265], %812 {strides = array<i32>} : memref<16x32xf32, #tpu.memory_space<vmem>>, vector<2x32xf32>,
    %cst_266 = arith.constant dense<0.000000e+00> : vector<2x256xf32>
    %816 = tpu.matmul %813, %596, %cst_266 {dimension_numbers = #tpu.dot_dimension_numbers<[1], [0], [0], [1], [0, 0, 1, 1], [], []>} : vector<2x64xf32>, vector<64x256xf32>, vector<2x256xf32> -> vector<2x256xf32>
    %817 = vector.extract_strided_slice %595 {offsets = [6, 0], sizes = [2, 128], strides = [1, 1]} : vector<16x256xf32> to vector<2x128xf32>
    %818 = vector.extract_strided_slice %816 {offsets = [0, 0], sizes = [2, 128], strides = [1, 1]} : vector<2x256xf32> to vector<2x128xf32>
    %819 = arith.addf %817, %818 : vector<2x128xf32>
    %820 = vector.extract_strided_slice %595 {offsets = [8, 128], sizes = [2, 128], strides = [1, 1]} : vector<16x256xf32> to vector<2x128xf32>
    %821 = vector.extract_strided_slice %816 {offsets = [0, 128], sizes = [2, 128], strides = [1, 1]} : vector<2x256xf32> to vector<2x128xf32>
    %822 = arith.addf %820, %821 : vector<2x128xf32>
    %823 = vector.extract_strided_slice %819 {offsets = [0, 0], sizes = [2, 32], strides = [1, 1]} : vector<2x128xf32> to vector<2x32xf32>
    %cst_267 = arith.constant 0.000000e+00 : f32
    %824 = vector.broadcast %cst_267 : f32 to vector<2x32xf32>
    %825 = arith.subf %824, %823 : vector<2x32xf32>
    %826 = math.exp %825 : vector<2x32xf32>
    %cst_268 = arith.constant 1.000000e+00 : f32
    %827 = vector.broadcast %cst_268 : f32 to vector<2x32xf32>
    %828 = arith.addf %827, %826 : vector<2x32xf32>
    %cst_269 = arith.constant 1.000000e+00 : f32
    %829 = vector.broadcast %cst_269 : f32 to vector<2x32xf32>
    %830 = arith.divf %829, %828 : vector<2x32xf32>
    %831 = vector.extract_strided_slice %819 {offsets = [0, 32], sizes = [2, 32], strides = [1, 1]} : vector<2x128xf32> to vector<2x32xf32>
    %cst_270 = arith.constant 0.000000e+00 : f32
    %832 = vector.broadcast %cst_270 : f32 to vector<2x32xf32>
    %833 = arith.subf %832, %831 : vector<2x32xf32>
    %834 = math.exp %833 : vector<2x32xf32>
    %cst_271 = arith.constant 1.000000e+00 : f32
    %835 = vector.broadcast %cst_271 : f32 to vector<2x32xf32>
    %836 = arith.addf %835, %834 : vector<2x32xf32>
    %cst_272 = arith.constant 1.000000e+00 : f32
    %837 = vector.broadcast %cst_272 : f32 to vector<2x32xf32>
    %838 = arith.divf %837, %836 : vector<2x32xf32>
    %839 = vector.extract_strided_slice %819 {offsets = [0, 64], sizes = [2, 32], strides = [1, 1]} : vector<2x128xf32> to vector<2x32xf32>
    %840 = math.tanh %839 : vector<2x32xf32>
    %841 = vector.extract_strided_slice %819 {offsets = [0, 96], sizes = [2, 32], strides = [1, 1]} : vector<2x128xf32> to vector<2x32xf32>
    %cst_273 = arith.constant 0.000000e+00 : f32
    %842 = vector.broadcast %cst_273 : f32 to vector<2x32xf32>
    %843 = arith.subf %842, %841 : vector<2x32xf32>
    %844 = math.exp %843 : vector<2x32xf32>
    %cst_274 = arith.constant 1.000000e+00 : f32
    %845 = vector.broadcast %cst_274 : f32 to vector<2x32xf32>
    %846 = arith.addf %845, %844 : vector<2x32xf32>
    %cst_275 = arith.constant 1.000000e+00 : f32
    %847 = vector.broadcast %cst_275 : f32 to vector<2x32xf32>
    %848 = arith.divf %847, %846 : vector<2x32xf32>
    %849 = arith.mulf %838, %779 : vector<2x32xf32>
    %850 = arith.mulf %830, %840 : vector<2x32xf32>
    %851 = arith.addf %849, %850 : vector<2x32xf32>
    %852 = math.tanh %851 : vector<2x32xf32>
    %853 = arith.mulf %848, %852 : vector<2x32xf32>
    %854 = vector.extract_strided_slice %822 {offsets = [0, 0], sizes = [2, 32], strides = [1, 1]} : vector<2x128xf32> to vector<2x32xf32>
    %cst_276 = arith.constant 0.000000e+00 : f32
    %855 = vector.broadcast %cst_276 : f32 to vector<2x32xf32>
    %856 = arith.subf %855, %854 : vector<2x32xf32>
    %857 = math.exp %856 : vector<2x32xf32>
    %cst_277 = arith.constant 1.000000e+00 : f32
    %858 = vector.broadcast %cst_277 : f32 to vector<2x32xf32>
    %859 = arith.addf %858, %857 : vector<2x32xf32>
    %cst_278 = arith.constant 1.000000e+00 : f32
    %860 = vector.broadcast %cst_278 : f32 to vector<2x32xf32>
    %861 = arith.divf %860, %859 : vector<2x32xf32>
    %862 = vector.extract_strided_slice %822 {offsets = [0, 32], sizes = [2, 32], strides = [1, 1]} : vector<2x128xf32> to vector<2x32xf32>
    %cst_279 = arith.constant 0.000000e+00 : f32
    %863 = vector.broadcast %cst_279 : f32 to vector<2x32xf32>
    %864 = arith.subf %863, %862 : vector<2x32xf32>
    %865 = math.exp %864 : vector<2x32xf32>
    %cst_280 = arith.constant 1.000000e+00 : f32
    %866 = vector.broadcast %cst_280 : f32 to vector<2x32xf32>
    %867 = arith.addf %866, %865 : vector<2x32xf32>
    %cst_281 = arith.constant 1.000000e+00 : f32
    %868 = vector.broadcast %cst_281 : f32 to vector<2x32xf32>
    %869 = arith.divf %868, %867 : vector<2x32xf32>
    %870 = vector.extract_strided_slice %822 {offsets = [0, 64], sizes = [2, 32], strides = [1, 1]} : vector<2x128xf32> to vector<2x32xf32>
    %871 = math.tanh %870 : vector<2x32xf32>
    %872 = vector.extract_strided_slice %822 {offsets = [0, 96], sizes = [2, 32], strides = [1, 1]} : vector<2x128xf32> to vector<2x32xf32>
    %cst_282 = arith.constant 0.000000e+00 : f32
    %873 = vector.broadcast %cst_282 : f32 to vector<2x32xf32>
    %874 = arith.subf %873, %872 : vector<2x32xf32>
    %875 = math.exp %874 : vector<2x32xf32>
    %cst_283 = arith.constant 1.000000e+00 : f32
    %876 = vector.broadcast %cst_283 : f32 to vector<2x32xf32>
    %877 = arith.addf %876, %875 : vector<2x32xf32>
    %cst_284 = arith.constant 1.000000e+00 : f32
    %878 = vector.broadcast %cst_284 : f32 to vector<2x32xf32>
    %879 = arith.divf %878, %877 : vector<2x32xf32>
    %880 = arith.mulf %869, %810 : vector<2x32xf32>
    %881 = arith.mulf %861, %871 : vector<2x32xf32>
    %882 = arith.addf %880, %881 : vector<2x32xf32>
    %883 = math.tanh %882 : vector<2x32xf32>
    %884 = arith.mulf %879, %883 : vector<2x32xf32>
    %885 = tpu.concatenate %853, %884 in 1 : vector<2x32xf32>, vector<2x32xf32> -> vector<2x64xf32>
    %c6_285 = arith.constant 6 : index
    %c0_286 = arith.constant 0 : index
    %886 = vector.load %arg5[%c6_285, %c0_286] : memref<16x32xf32, #tpu.memory_space<vmem>>, vector<2x32xf32>
    tpu.vector_store %arg5[%c6_285, %c0_286], %853 {strides = array<i32>} : memref<16x32xf32, #tpu.memory_space<vmem>>, vector<2x32xf32>,
    %c8_287 = arith.constant 8 : index
    %c0_288 = arith.constant 0 : index
    %887 = vector.load %arg6[%c8_287, %c0_288] : memref<16x32xf32, #tpu.memory_space<vmem>>, vector<2x32xf32>
    tpu.vector_store %arg6[%c8_287, %c0_288], %884 {strides = array<i32>} : memref<16x32xf32, #tpu.memory_space<vmem>>, vector<2x32xf32>,
    %cst_289 = arith.constant dense<0.000000e+00> : vector<2x256xf32>
    %888 = tpu.matmul %885, %596, %cst_289 {dimension_numbers = #tpu.dot_dimension_numbers<[1], [0], [0], [1], [0, 0, 1, 1], [], []>} : vector<2x64xf32>, vector<64x256xf32>, vector<2x256xf32> -> vector<2x256xf32>
    %889 = vector.extract_strided_slice %595 {offsets = [8, 0], sizes = [2, 128], strides = [1, 1]} : vector<16x256xf32> to vector<2x128xf32>
    %890 = vector.extract_strided_slice %888 {offsets = [0, 0], sizes = [2, 128], strides = [1, 1]} : vector<2x256xf32> to vector<2x128xf32>
    %891 = arith.addf %889, %890 : vector<2x128xf32>
    %892 = vector.extract_strided_slice %595 {offsets = [6, 128], sizes = [2, 128], strides = [1, 1]} : vector<16x256xf32> to vector<2x128xf32>
    %893 = vector.extract_strided_slice %888 {offsets = [0, 128], sizes = [2, 128], strides = [1, 1]} : vector<2x256xf32> to vector<2x128xf32>
    %894 = arith.addf %892, %893 : vector<2x128xf32>
    %895 = vector.extract_strided_slice %891 {offsets = [0, 0], sizes = [2, 32], strides = [1, 1]} : vector<2x128xf32> to vector<2x32xf32>
    %cst_290 = arith.constant 0.000000e+00 : f32
    %896 = vector.broadcast %cst_290 : f32 to vector<2x32xf32>
    %897 = arith.subf %896, %895 : vector<2x32xf32>
    %898 = math.exp %897 : vector<2x32xf32>
    %cst_291 = arith.constant 1.000000e+00 : f32
    %899 = vector.broadcast %cst_291 : f32 to vector<2x32xf32>
    %900 = arith.addf %899, %898 : vector<2x32xf32>
    %cst_292 = arith.constant 1.000000e+00 : f32
    %901 = vector.broadcast %cst_292 : f32 to vector<2x32xf32>
    %902 = arith.divf %901, %900 : vector<2x32xf32>
    %903 = vector.extract_strided_slice %891 {offsets = [0, 32], sizes = [2, 32], strides = [1, 1]} : vector<2x128xf32> to vector<2x32xf32>
    %cst_293 = arith.constant 0.000000e+00 : f32
    %904 = vector.broadcast %cst_293 : f32 to vector<2x32xf32>
    %905 = arith.subf %904, %903 : vector<2x32xf32>
    %906 = math.exp %905 : vector<2x32xf32>
    %cst_294 = arith.constant 1.000000e+00 : f32
    %907 = vector.broadcast %cst_294 : f32 to vector<2x32xf32>
    %908 = arith.addf %907, %906 : vector<2x32xf32>
    %cst_295 = arith.constant 1.000000e+00 : f32
    %909 = vector.broadcast %cst_295 : f32 to vector<2x32xf32>
    %910 = arith.divf %909, %908 : vector<2x32xf32>
    %911 = vector.extract_strided_slice %891 {offsets = [0, 64], sizes = [2, 32], strides = [1, 1]} : vector<2x128xf32> to vector<2x32xf32>
    %912 = math.tanh %911 : vector<2x32xf32>
    %913 = vector.extract_strided_slice %891 {offsets = [0, 96], sizes = [2, 32], strides = [1, 1]} : vector<2x128xf32> to vector<2x32xf32>
    %cst_296 = arith.constant 0.000000e+00 : f32
    %914 = vector.broadcast %cst_296 : f32 to vector<2x32xf32>
    %915 = arith.subf %914, %913 : vector<2x32xf32>
    %916 = math.exp %915 : vector<2x32xf32>
    %cst_297 = arith.constant 1.000000e+00 : f32
    %917 = vector.broadcast %cst_297 : f32 to vector<2x32xf32>
    %918 = arith.addf %917, %916 : vector<2x32xf32>
    %cst_298 = arith.constant 1.000000e+00 : f32
    %919 = vector.broadcast %cst_298 : f32 to vector<2x32xf32>
    %920 = arith.divf %919, %918 : vector<2x32xf32>
    %921 = arith.mulf %910, %851 : vector<2x32xf32>
    %922 = arith.mulf %902, %912 : vector<2x32xf32>
    %923 = arith.addf %921, %922 : vector<2x32xf32>
    %924 = math.tanh %923 : vector<2x32xf32>
    %925 = arith.mulf %920, %924 : vector<2x32xf32>
    %926 = vector.extract_strided_slice %894 {offsets = [0, 0], sizes = [2, 32], strides = [1, 1]} : vector<2x128xf32> to vector<2x32xf32>
    %cst_299 = arith.constant 0.000000e+00 : f32
    %927 = vector.broadcast %cst_299 : f32 to vector<2x32xf32>
    %928 = arith.subf %927, %926 : vector<2x32xf32>
    %929 = math.exp %928 : vector<2x32xf32>
    %cst_300 = arith.constant 1.000000e+00 : f32
    %930 = vector.broadcast %cst_300 : f32 to vector<2x32xf32>
    %931 = arith.addf %930, %929 : vector<2x32xf32>
    %cst_301 = arith.constant 1.000000e+00 : f32
    %932 = vector.broadcast %cst_301 : f32 to vector<2x32xf32>
    %933 = arith.divf %932, %931 : vector<2x32xf32>
    %934 = vector.extract_strided_slice %894 {offsets = [0, 32], sizes = [2, 32], strides = [1, 1]} : vector<2x128xf32> to vector<2x32xf32>
    %cst_302 = arith.constant 0.000000e+00 : f32
    %935 = vector.broadcast %cst_302 : f32 to vector<2x32xf32>
    %936 = arith.subf %935, %934 : vector<2x32xf32>
    %937 = math.exp %936 : vector<2x32xf32>
    %cst_303 = arith.constant 1.000000e+00 : f32
    %938 = vector.broadcast %cst_303 : f32 to vector<2x32xf32>
    %939 = arith.addf %938, %937 : vector<2x32xf32>
    %cst_304 = arith.constant 1.000000e+00 : f32
    %940 = vector.broadcast %cst_304 : f32 to vector<2x32xf32>
    %941 = arith.divf %940, %939 : vector<2x32xf32>
    %942 = vector.extract_strided_slice %894 {offsets = [0, 64], sizes = [2, 32], strides = [1, 1]} : vector<2x128xf32> to vector<2x32xf32>
    %943 = math.tanh %942 : vector<2x32xf32>
    %944 = vector.extract_strided_slice %894 {offsets = [0, 96], sizes = [2, 32], strides = [1, 1]} : vector<2x128xf32> to vector<2x32xf32>
    %cst_305 = arith.constant 0.000000e+00 : f32
    %945 = vector.broadcast %cst_305 : f32 to vector<2x32xf32>
    %946 = arith.subf %945, %944 : vector<2x32xf32>
    %947 = math.exp %946 : vector<2x32xf32>
    %cst_306 = arith.constant 1.000000e+00 : f32
    %948 = vector.broadcast %cst_306 : f32 to vector<2x32xf32>
    %949 = arith.addf %948, %947 : vector<2x32xf32>
    %cst_307 = arith.constant 1.000000e+00 : f32
    %950 = vector.broadcast %cst_307 : f32 to vector<2x32xf32>
    %951 = arith.divf %950, %949 : vector<2x32xf32>
    %952 = arith.mulf %941, %882 : vector<2x32xf32>
    %953 = arith.mulf %933, %943 : vector<2x32xf32>
    %954 = arith.addf %952, %953 : vector<2x32xf32>
    %955 = math.tanh %954 : vector<2x32xf32>
    %956 = arith.mulf %951, %955 : vector<2x32xf32>
    %957 = tpu.concatenate %925, %956 in 1 : vector<2x32xf32>, vector<2x32xf32> -> vector<2x64xf32>
    %c8_308 = arith.constant 8 : index
    %c0_309 = arith.constant 0 : index
    %958 = vector.load %arg5[%c8_308, %c0_309] : memref<16x32xf32, #tpu.memory_space<vmem>>, vector<2x32xf32>
    tpu.vector_store %arg5[%c8_308, %c0_309], %925 {strides = array<i32>} : memref<16x32xf32, #tpu.memory_space<vmem>>, vector<2x32xf32>,
    %c6_310 = arith.constant 6 : index
    %c0_311 = arith.constant 0 : index
    %959 = vector.load %arg6[%c6_310, %c0_311] : memref<16x32xf32, #tpu.memory_space<vmem>>, vector<2x32xf32>
    tpu.vector_store %arg6[%c6_310, %c0_311], %956 {strides = array<i32>} : memref<16x32xf32, #tpu.memory_space<vmem>>, vector<2x32xf32>,
    %cst_312 = arith.constant dense<0.000000e+00> : vector<2x256xf32>
    %960 = tpu.matmul %957, %596, %cst_312 {dimension_numbers = #tpu.dot_dimension_numbers<[1], [0], [0], [1], [0, 0, 1, 1], [], []>} : vector<2x64xf32>, vector<64x256xf32>, vector<2x256xf32> -> vector<2x256xf32>
    %961 = vector.extract_strided_slice %595 {offsets = [10, 0], sizes = [2, 128], strides = [1, 1]} : vector<16x256xf32> to vector<2x128xf32>
    %962 = vector.extract_strided_slice %960 {offsets = [0, 0], sizes = [2, 128], strides = [1, 1]} : vector<2x256xf32> to vector<2x128xf32>
    %963 = arith.addf %961, %962 : vector<2x128xf32>
    %964 = vector.extract_strided_slice %595 {offsets = [4, 128], sizes = [2, 128], strides = [1, 1]} : vector<16x256xf32> to vector<2x128xf32>
    %965 = vector.extract_strided_slice %960 {offsets = [0, 128], sizes = [2, 128], strides = [1, 1]} : vector<2x256xf32> to vector<2x128xf32>
    %966 = arith.addf %964, %965 : vector<2x128xf32>
    %967 = vector.extract_strided_slice %963 {offsets = [0, 0], sizes = [2, 32], strides = [1, 1]} : vector<2x128xf32> to vector<2x32xf32>
    %cst_313 = arith.constant 0.000000e+00 : f32
    %968 = vector.broadcast %cst_313 : f32 to vector<2x32xf32>
    %969 = arith.subf %968, %967 : vector<2x32xf32>
    %970 = math.exp %969 : vector<2x32xf32>
    %cst_314 = arith.constant 1.000000e+00 : f32
    %971 = vector.broadcast %cst_314 : f32 to vector<2x32xf32>
    %972 = arith.addf %971, %970 : vector<2x32xf32>
    %cst_315 = arith.constant 1.000000e+00 : f32
    %973 = vector.broadcast %cst_315 : f32 to vector<2x32xf32>
    %974 = arith.divf %973, %972 : vector<2x32xf32>
    %975 = vector.extract_strided_slice %963 {offsets = [0, 32], sizes = [2, 32], strides = [1, 1]} : vector<2x128xf32> to vector<2x32xf32>
    %cst_316 = arith.constant 0.000000e+00 : f32
    %976 = vector.broadcast %cst_316 : f32 to vector<2x32xf32>
    %977 = arith.subf %976, %975 : vector<2x32xf32>
    %978 = math.exp %977 : vector<2x32xf32>
    %cst_317 = arith.constant 1.000000e+00 : f32
    %979 = vector.broadcast %cst_317 : f32 to vector<2x32xf32>
    %980 = arith.addf %979, %978 : vector<2x32xf32>
    %cst_318 = arith.constant 1.000000e+00 : f32
    %981 = vector.broadcast %cst_318 : f32 to vector<2x32xf32>
    %982 = arith.divf %981, %980 : vector<2x32xf32>
    %983 = vector.extract_strided_slice %963 {offsets = [0, 64], sizes = [2, 32], strides = [1, 1]} : vector<2x128xf32> to vector<2x32xf32>
    %984 = math.tanh %983 : vector<2x32xf32>
    %985 = vector.extract_strided_slice %963 {offsets = [0, 96], sizes = [2, 32], strides = [1, 1]} : vector<2x128xf32> to vector<2x32xf32>
    %cst_319 = arith.constant 0.000000e+00 : f32
    %986 = vector.broadcast %cst_319 : f32 to vector<2x32xf32>
    %987 = arith.subf %986, %985 : vector<2x32xf32>
    %988 = math.exp %987 : vector<2x32xf32>
    %cst_320 = arith.constant 1.000000e+00 : f32
    %989 = vector.broadcast %cst_320 : f32 to vector<2x32xf32>
    %990 = arith.addf %989, %988 : vector<2x32xf32>
    %cst_321 = arith.constant 1.000000e+00 : f32
    %991 = vector.broadcast %cst_321 : f32 to vector<2x32xf32>
    %992 = arith.divf %991, %990 : vector<2x32xf32>
    %993 = arith.mulf %982, %923 : vector<2x32xf32>
    %994 = arith.mulf %974, %984 : vector<2x32xf32>
    %995 = arith.addf %993, %994 : vector<2x32xf32>
    %996 = math.tanh %995 : vector<2x32xf32>
    %997 = arith.mulf %992, %996 : vector<2x32xf32>
    %998 = vector.extract_strided_slice %966 {offsets = [0, 0], sizes = [2, 32], strides = [1, 1]} : vector<2x128xf32> to vector<2x32xf32>
    %cst_322 = arith.constant 0.000000e+00 : f32
    %999 = vector.broadcast %cst_322 : f32 to vector<2x32xf32>
    %1000 = arith.subf %999, %998 : vector<2x32xf32>
    %1001 = math.exp %1000 : vector<2x32xf32>
    %cst_323 = arith.constant 1.000000e+00 : f32
    %1002 = vector.broadcast %cst_323 : f32 to vector<2x32xf32>
    %1003 = arith.addf %1002, %1001 : vector<2x32xf32>
    %cst_324 = arith.constant 1.000000e+00 : f32
    %1004 = vector.broadcast %cst_324 : f32 to vector<2x32xf32>
    %1005 = arith.divf %1004, %1003 : vector<2x32xf32>
    %1006 = vector.extract_strided_slice %966 {offsets = [0, 32], sizes = [2, 32], strides = [1, 1]} : vector<2x128xf32> to vector<2x32xf32>
    %cst_325 = arith.constant 0.000000e+00 : f32
    %1007 = vector.broadcast %cst_325 : f32 to vector<2x32xf32>
    %1008 = arith.subf %1007, %1006 : vector<2x32xf32>
    %1009 = math.exp %1008 : vector<2x32xf32>
    %cst_326 = arith.constant 1.000000e+00 : f32
    %1010 = vector.broadcast %cst_326 : f32 to vector<2x32xf32>
    %1011 = arith.addf %1010, %1009 : vector<2x32xf32>
    %cst_327 = arith.constant 1.000000e+00 : f32
    %1012 = vector.broadcast %cst_327 : f32 to vector<2x32xf32>
    %1013 = arith.divf %1012, %1011 : vector<2x32xf32>
    %1014 = vector.extract_strided_slice %966 {offsets = [0, 64], sizes = [2, 32], strides = [1, 1]} : vector<2x128xf32> to vector<2x32xf32>
    %1015 = math.tanh %1014 : vector<2x32xf32>
    %1016 = vector.extract_strided_slice %966 {offsets = [0, 96], sizes = [2, 32], strides = [1, 1]} : vector<2x128xf32> to vector<2x32xf32>
    %cst_328 = arith.constant 0.000000e+00 : f32
    %1017 = vector.broadcast %cst_328 : f32 to vector<2x32xf32>
    %1018 = arith.subf %1017, %1016 : vector<2x32xf32>
    %1019 = math.exp %1018 : vector<2x32xf32>
    %cst_329 = arith.constant 1.000000e+00 : f32
    %1020 = vector.broadcast %cst_329 : f32 to vector<2x32xf32>
    %1021 = arith.addf %1020, %1019 : vector<2x32xf32>
    %cst_330 = arith.constant 1.000000e+00 : f32
    %1022 = vector.broadcast %cst_330 : f32 to vector<2x32xf32>
    %1023 = arith.divf %1022, %1021 : vector<2x32xf32>
    %1024 = arith.mulf %1013, %954 : vector<2x32xf32>
    %1025 = arith.mulf %1005, %1015 : vector<2x32xf32>
    %1026 = arith.addf %1024, %1025 : vector<2x32xf32>
    %1027 = math.tanh %1026 : vector<2x32xf32>
    %1028 = arith.mulf %1023, %1027 : vector<2x32xf32>
    %1029 = tpu.concatenate %997, %1028 in 1 : vector<2x32xf32>, vector<2x32xf32> -> vector<2x64xf32>
    %c10_331 = arith.constant 10 : index
    %c0_332 = arith.constant 0 : index
    %1030 = vector.load %arg5[%c10_331, %c0_332] : memref<16x32xf32, #tpu.memory_space<vmem>>, vector<2x32xf32>
    tpu.vector_store %arg5[%c10_331, %c0_332], %997 {strides = array<i32>} : memref<16x32xf32, #tpu.memory_space<vmem>>, vector<2x32xf32>,
    %c4_333 = arith.constant 4 : index
    %c0_334 = arith.constant 0 : index
    %1031 = vector.load %arg6[%c4_333, %c0_334] : memref<16x32xf32, #tpu.memory_space<vmem>>, vector<2x32xf32>
    tpu.vector_store %arg6[%c4_333, %c0_334], %1028 {strides = array<i32>} : memref<16x32xf32, #tpu.memory_space<vmem>>, vector<2x32xf32>,
    %cst_335 = arith.constant dense<0.000000e+00> : vector<2x256xf32>
    %1032 = tpu.matmul %1029, %596, %cst_335 {dimension_numbers = #tpu.dot_dimension_numbers<[1], [0], [0], [1], [0, 0, 1, 1], [], []>} : vector<2x64xf32>, vector<64x256xf32>, vector<2x256xf32> -> vector<2x256xf32>
    %1033 = vector.extract_strided_slice %595 {offsets = [12, 0], sizes = [2, 128], strides = [1, 1]} : vector<16x256xf32> to vector<2x128xf32>
    %1034 = vector.extract_strided_slice %1032 {offsets = [0, 0], sizes = [2, 128], strides = [1, 1]} : vector<2x256xf32> to vector<2x128xf32>
    %1035 = arith.addf %1033, %1034 : vector<2x128xf32>
    %1036 = vector.extract_strided_slice %595 {offsets = [2, 128], sizes = [2, 128], strides = [1, 1]} : vector<16x256xf32> to vector<2x128xf32>
    %1037 = vector.extract_strided_slice %1032 {offsets = [0, 128], sizes = [2, 128], strides = [1, 1]} : vector<2x256xf32> to vector<2x128xf32>
    %1038 = arith.addf %1036, %1037 : vector<2x128xf32>
    %1039 = vector.extract_strided_slice %1035 {offsets = [0, 0], sizes = [2, 32], strides = [1, 1]} : vector<2x128xf32> to vector<2x32xf32>
    %cst_336 = arith.constant 0.000000e+00 : f32
    %1040 = vector.broadcast %cst_336 : f32 to vector<2x32xf32>
    %1041 = arith.subf %1040, %1039 : vector<2x32xf32>
    %1042 = math.exp %1041 : vector<2x32xf32>
    %cst_337 = arith.constant 1.000000e+00 : f32
    %1043 = vector.broadcast %cst_337 : f32 to vector<2x32xf32>
    %1044 = arith.addf %1043, %1042 : vector<2x32xf32>
    %cst_338 = arith.constant 1.000000e+00 : f32
    %1045 = vector.broadcast %cst_338 : f32 to vector<2x32xf32>
    %1046 = arith.divf %1045, %1044 : vector<2x32xf32>
    %1047 = vector.extract_strided_slice %1035 {offsets = [0, 32], sizes = [2, 32], strides = [1, 1]} : vector<2x128xf32> to vector<2x32xf32>
    %cst_339 = arith.constant 0.000000e+00 : f32
    %1048 = vector.broadcast %cst_339 : f32 to vector<2x32xf32>
    %1049 = arith.subf %1048, %1047 : vector<2x32xf32>
    %1050 = math.exp %1049 : vector<2x32xf32>
    %cst_340 = arith.constant 1.000000e+00 : f32
    %1051 = vector.broadcast %cst_340 : f32 to vector<2x32xf32>
    %1052 = arith.addf %1051, %1050 : vector<2x32xf32>
    %cst_341 = arith.constant 1.000000e+00 : f32
    %1053 = vector.broadcast %cst_341 : f32 to vector<2x32xf32>
    %1054 = arith.divf %1053, %1052 : vector<2x32xf32>
    %1055 = vector.extract_strided_slice %1035 {offsets = [0, 64], sizes = [2, 32], strides = [1, 1]} : vector<2x128xf32> to vector<2x32xf32>
    %1056 = math.tanh %1055 : vector<2x32xf32>
    %1057 = vector.extract_strided_slice %1035 {offsets = [0, 96], sizes = [2, 32], strides = [1, 1]} : vector<2x128xf32> to vector<2x32xf32>
    %cst_342 = arith.constant 0.000000e+00 : f32
    %1058 = vector.broadcast %cst_342 : f32 to vector<2x32xf32>
    %1059 = arith.subf %1058, %1057 : vector<2x32xf32>
    %1060 = math.exp %1059 : vector<2x32xf32>
    %cst_343 = arith.constant 1.000000e+00 : f32
    %1061 = vector.broadcast %cst_343 : f32 to vector<2x32xf32>
    %1062 = arith.addf %1061, %1060 : vector<2x32xf32>
    %cst_344 = arith.constant 1.000000e+00 : f32
    %1063 = vector.broadcast %cst_344 : f32 to vector<2x32xf32>
    %1064 = arith.divf %1063, %1062 : vector<2x32xf32>
    %1065 = arith.mulf %1054, %995 : vector<2x32xf32>
    %1066 = arith.mulf %1046, %1056 : vector<2x32xf32>
    %1067 = arith.addf %1065, %1066 : vector<2x32xf32>
    %1068 = math.tanh %1067 : vector<2x32xf32>
    %1069 = arith.mulf %1064, %1068 : vector<2x32xf32>
    %1070 = vector.extract_strided_slice %1038 {offsets = [0, 0], sizes = [2, 32], strides = [1, 1]} : vector<2x128xf32> to vector<2x32xf32>
    %cst_345 = arith.constant 0.000000e+00 : f32
    %1071 = vector.broadcast %cst_345 : f32 to vector<2x32xf32>
    %1072 = arith.subf %1071, %1070 : vector<2x32xf32>
    %1073 = math.exp %1072 : vector<2x32xf32>
    %cst_346 = arith.constant 1.000000e+00 : f32
    %1074 = vector.broadcast %cst_346 : f32 to vector<2x32xf32>
    %1075 = arith.addf %1074, %1073 : vector<2x32xf32>
    %cst_347 = arith.constant 1.000000e+00 : f32
    %1076 = vector.broadcast %cst_347 : f32 to vector<2x32xf32>
    %1077 = arith.divf %1076, %1075 : vector<2x32xf32>
    %1078 = vector.extract_strided_slice %1038 {offsets = [0, 32], sizes = [2, 32], strides = [1, 1]} : vector<2x128xf32> to vector<2x32xf32>
    %cst_348 = arith.constant 0.000000e+00 : f32
    %1079 = vector.broadcast %cst_348 : f32 to vector<2x32xf32>
    %1080 = arith.subf %1079, %1078 : vector<2x32xf32>
    %1081 = math.exp %1080 : vector<2x32xf32>
    %cst_349 = arith.constant 1.000000e+00 : f32
    %1082 = vector.broadcast %cst_349 : f32 to vector<2x32xf32>
    %1083 = arith.addf %1082, %1081 : vector<2x32xf32>
    %cst_350 = arith.constant 1.000000e+00 : f32
    %1084 = vector.broadcast %cst_350 : f32 to vector<2x32xf32>
    %1085 = arith.divf %1084, %1083 : vector<2x32xf32>
    %1086 = vector.extract_strided_slice %1038 {offsets = [0, 64], sizes = [2, 32], strides = [1, 1]} : vector<2x128xf32> to vector<2x32xf32>
    %1087 = math.tanh %1086 : vector<2x32xf32>
    %1088 = vector.extract_strided_slice %1038 {offsets = [0, 96], sizes = [2, 32], strides = [1, 1]} : vector<2x128xf32> to vector<2x32xf32>
    %cst_351 = arith.constant 0.000000e+00 : f32
    %1089 = vector.broadcast %cst_351 : f32 to vector<2x32xf32>
    %1090 = arith.subf %1089, %1088 : vector<2x32xf32>
    %1091 = math.exp %1090 : vector<2x32xf32>
    %cst_352 = arith.constant 1.000000e+00 : f32
    %1092 = vector.broadcast %cst_352 : f32 to vector<2x32xf32>
    %1093 = arith.addf %1092, %1091 : vector<2x32xf32>
    %cst_353 = arith.constant 1.000000e+00 : f32
    %1094 = vector.broadcast %cst_353 : f32 to vector<2x32xf32>
    %1095 = arith.divf %1094, %1093 : vector<2x32xf32>
    %1096 = arith.mulf %1085, %1026 : vector<2x32xf32>
    %1097 = arith.mulf %1077, %1087 : vector<2x32xf32>
    %1098 = arith.addf %1096, %1097 : vector<2x32xf32>
    %1099 = math.tanh %1098 : vector<2x32xf32>
    %1100 = arith.mulf %1095, %1099 : vector<2x32xf32>
    %1101 = tpu.concatenate %1069, %1100 in 1 : vector<2x32xf32>, vector<2x32xf32> -> vector<2x64xf32>
    %c12_354 = arith.constant 12 : index
    %c0_355 = arith.constant 0 : index
    %1102 = vector.load %arg5[%c12_354, %c0_355] : memref<16x32xf32, #tpu.memory_space<vmem>>, vector<2x32xf32>
    tpu.vector_store %arg5[%c12_354, %c0_355], %1069 {strides = array<i32>} : memref<16x32xf32, #tpu.memory_space<vmem>>, vector<2x32xf32>,
    %c2_356 = arith.constant 2 : index
    %c0_357 = arith.constant 0 : index
    %1103 = vector.load %arg6[%c2_356, %c0_357] : memref<16x32xf32, #tpu.memory_space<vmem>>, vector<2x32xf32>
    tpu.vector_store %arg6[%c2_356, %c0_357], %1100 {strides = array<i32>} : memref<16x32xf32, #tpu.memory_space<vmem>>, vector<2x32xf32>,
    %cst_358 = arith.constant dense<0.000000e+00> : vector<2x256xf32>
    %1104 = tpu.matmul %1101, %596, %cst_358 {dimension_numbers = #tpu.dot_dimension_numbers<[1], [0], [0], [1], [0, 0, 1, 1], [], []>} : vector<2x64xf32>, vector<64x256xf32>, vector<2x256xf32> -> vector<2x256xf32>
    %1105 = vector.extract_strided_slice %595 {offsets = [14, 0], sizes = [2, 128], strides = [1, 1]} : vector<16x256xf32> to vector<2x128xf32>
    %1106 = vector.extract_strided_slice %1104 {offsets = [0, 0], sizes = [2, 128], strides = [1, 1]} : vector<2x256xf32> to vector<2x128xf32>
    %1107 = arith.addf %1105, %1106 : vector<2x128xf32>
    %1108 = vector.extract_strided_slice %595 {offsets = [0, 128], sizes = [2, 128], strides = [1, 1]} : vector<16x256xf32> to vector<2x128xf32>
    %1109 = vector.extract_strided_slice %1104 {offsets = [0, 128], sizes = [2, 128], strides = [1, 1]} : vector<2x256xf32> to vector<2x128xf32>
    %1110 = arith.addf %1108, %1109 : vector<2x128xf32>
    %1111 = vector.extract_strided_slice %1107 {offsets = [0, 0], sizes = [2, 32], strides = [1, 1]} : vector<2x128xf32> to vector<2x32xf32>
    %cst_359 = arith.constant 0.000000e+00 : f32
    %1112 = vector.broadcast %cst_359 : f32 to vector<2x32xf32>
    %1113 = arith.subf %1112, %1111 : vector<2x32xf32>
    %1114 = math.exp %1113 : vector<2x32xf32>
    %cst_360 = arith.constant 1.000000e+00 : f32
    %1115 = vector.broadcast %cst_360 : f32 to vector<2x32xf32>
    %1116 = arith.addf %1115, %1114 : vector<2x32xf32>
    %cst_361 = arith.constant 1.000000e+00 : f32
    %1117 = vector.broadcast %cst_361 : f32 to vector<2x32xf32>
    %1118 = arith.divf %1117, %1116 : vector<2x32xf32>
    %1119 = vector.extract_strided_slice %1107 {offsets = [0, 32], sizes = [2, 32], strides = [1, 1]} : vector<2x128xf32> to vector<2x32xf32>
    %cst_362 = arith.constant 0.000000e+00 : f32
    %1120 = vector.broadcast %cst_362 : f32 to vector<2x32xf32>
    %1121 = arith.subf %1120, %1119 : vector<2x32xf32>
    %1122 = math.exp %1121 : vector<2x32xf32>
    %cst_363 = arith.constant 1.000000e+00 : f32
    %1123 = vector.broadcast %cst_363 : f32 to vector<2x32xf32>
    %1124 = arith.addf %1123, %1122 : vector<2x32xf32>
    %cst_364 = arith.constant 1.000000e+00 : f32
    %1125 = vector.broadcast %cst_364 : f32 to vector<2x32xf32>
    %1126 = arith.divf %1125, %1124 : vector<2x32xf32>
    %1127 = vector.extract_strided_slice %1107 {offsets = [0, 64], sizes = [2, 32], strides = [1, 1]} : vector<2x128xf32> to vector<2x32xf32>
    %1128 = math.tanh %1127 : vector<2x32xf32>
    %1129 = vector.extract_strided_slice %1107 {offsets = [0, 96], sizes = [2, 32], strides = [1, 1]} : vector<2x128xf32> to vector<2x32xf32>
    %cst_365 = arith.constant 0.000000e+00 : f32
    %1130 = vector.broadcast %cst_365 : f32 to vector<2x32xf32>
    %1131 = arith.subf %1130, %1129 : vector<2x32xf32>
    %1132 = math.exp %1131 : vector<2x32xf32>
    %cst_366 = arith.constant 1.000000e+00 : f32
    %1133 = vector.broadcast %cst_366 : f32 to vector<2x32xf32>
    %1134 = arith.addf %1133, %1132 : vector<2x32xf32>
    %cst_367 = arith.constant 1.000000e+00 : f32
    %1135 = vector.broadcast %cst_367 : f32 to vector<2x32xf32>
    %1136 = arith.divf %1135, %1134 : vector<2x32xf32>
    %1137 = arith.mulf %1126, %1067 : vector<2x32xf32>
    %1138 = arith.mulf %1118, %1128 : vector<2x32xf32>
    %1139 = arith.addf %1137, %1138 : vector<2x32xf32>
    %1140 = math.tanh %1139 : vector<2x32xf32>
    %1141 = arith.mulf %1136, %1140 : vector<2x32xf32>
    %1142 = vector.extract_strided_slice %1110 {offsets = [0, 0], sizes = [2, 32], strides = [1, 1]} : vector<2x128xf32> to vector<2x32xf32>
    %cst_368 = arith.constant 0.000000e+00 : f32
    %1143 = vector.broadcast %cst_368 : f32 to vector<2x32xf32>
    %1144 = arith.subf %1143, %1142 : vector<2x32xf32>
    %1145 = math.exp %1144 : vector<2x32xf32>
    %cst_369 = arith.constant 1.000000e+00 : f32
    %1146 = vector.broadcast %cst_369 : f32 to vector<2x32xf32>
    %1147 = arith.addf %1146, %1145 : vector<2x32xf32>
    %cst_370 = arith.constant 1.000000e+00 : f32
    %1148 = vector.broadcast %cst_370 : f32 to vector<2x32xf32>
    %1149 = arith.divf %1148, %1147 : vector<2x32xf32>
    %1150 = vector.extract_strided_slice %1110 {offsets = [0, 32], sizes = [2, 32], strides = [1, 1]} : vector<2x128xf32> to vector<2x32xf32>
    %cst_371 = arith.constant 0.000000e+00 : f32
    %1151 = vector.broadcast %cst_371 : f32 to vector<2x32xf32>
    %1152 = arith.subf %1151, %1150 : vector<2x32xf32>
    %1153 = math.exp %1152 : vector<2x32xf32>
    %cst_372 = arith.constant 1.000000e+00 : f32
    %1154 = vector.broadcast %cst_372 : f32 to vector<2x32xf32>
    %1155 = arith.addf %1154, %1153 : vector<2x32xf32>
    %cst_373 = arith.constant 1.000000e+00 : f32
    %1156 = vector.broadcast %cst_373 : f32 to vector<2x32xf32>
    %1157 = arith.divf %1156, %1155 : vector<2x32xf32>
    %1158 = vector.extract_strided_slice %1110 {offsets = [0, 64], sizes = [2, 32], strides = [1, 1]} : vector<2x128xf32> to vector<2x32xf32>
    %1159 = math.tanh %1158 : vector<2x32xf32>
    %1160 = vector.extract_strided_slice %1110 {offsets = [0, 96], sizes = [2, 32], strides = [1, 1]} : vector<2x128xf32> to vector<2x32xf32>
    %cst_374 = arith.constant 0.000000e+00 : f32
    %1161 = vector.broadcast %cst_374 : f32 to vector<2x32xf32>
    %1162 = arith.subf %1161, %1160 : vector<2x32xf32>
    %1163 = math.exp %1162 : vector<2x32xf32>
    %cst_375 = arith.constant 1.000000e+00 : f32
    %1164 = vector.broadcast %cst_375 : f32 to vector<2x32xf32>
    %1165 = arith.addf %1164, %1163 : vector<2x32xf32>
    %cst_376 = arith.constant 1.000000e+00 : f32
    %1166 = vector.broadcast %cst_376 : f32 to vector<2x32xf32>
    %1167 = arith.divf %1166, %1165 : vector<2x32xf32>
    %1168 = arith.mulf %1157, %1098 : vector<2x32xf32>
    %1169 = arith.mulf %1149, %1159 : vector<2x32xf32>
    %1170 = arith.addf %1168, %1169 : vector<2x32xf32>
    %1171 = math.tanh %1170 : vector<2x32xf32>
    %1172 = arith.mulf %1167, %1171 : vector<2x32xf32>
    %c14_377 = arith.constant 14 : index
    %c0_378 = arith.constant 0 : index
    %1173 = vector.load %arg5[%c14_377, %c0_378] : memref<16x32xf32, #tpu.memory_space<vmem>>, vector<2x32xf32>
    tpu.vector_store %arg5[%c14_377, %c0_378], %1141 {strides = array<i32>} : memref<16x32xf32, #tpu.memory_space<vmem>>, vector<2x32xf32>,
    %c0_379 = arith.constant 0 : index
    %c0_380 = arith.constant 0 : index
    %1174 = vector.load %arg6[%c0_379, %c0_380] : memref<16x32xf32, #tpu.memory_space<vmem>>, vector<2x32xf32>
    tpu.vector_store %arg6[%c0_379, %c0_380], %1172 {strides = array<i32>} : memref<16x32xf32, #tpu.memory_space<vmem>>, vector<2x32xf32>,
    %c240 = arith.constant 240 : index
    %c0_381 = arith.constant 0 : index
    %1175 = vector.load %arg1[%c240, %c0_381] : memref<568x256xf32, #tpu.memory_space<vmem>>, vector<64x128xf32>
    %c0_382 = arith.constant 0 : index
    %c0_383 = arith.constant 0 : index
    %1176 = vector.load %arg5[%c0_382, %c0_383] : memref<16x32xf32, #tpu.memory_space<vmem>>, vector<16x32xf32>
    %1177 = vector.extract_strided_slice %1175 {offsets = [0, 0], sizes = [32, 128], strides = [1, 1]} : vector<64x128xf32> to vector<32x128xf32>
    %cst_384 = arith.constant dense<0.000000e+00> : vector<16x128xf32>
    %1178 = tpu.matmul %1176, %1177, %cst_384 {dimension_numbers = #tpu.dot_dimension_numbers<[1], [0], [0], [1], [0, 0, 1, 1], [], []>} : vector<16x32xf32>, vector<32x128xf32>, vector<16x128xf32> -> vector<16x128xf32>
    %c0_385 = arith.constant 0 : index
    %c0_386 = arith.constant 0 : index
    %1179 = vector.load %arg6[%c0_385, %c0_386] : memref<16x32xf32, #tpu.memory_space<vmem>>, vector<16x32xf32>
    %1180 = vector.extract_strided_slice %1175 {offsets = [32, 0], sizes = [32, 128], strides = [1, 1]} : vector<64x128xf32> to vector<32x128xf32>
    %cst_387 = arith.constant dense<0.000000e+00> : vector<16x128xf32>
    %1181 = tpu.matmul %1179, %1180, %cst_387 {dimension_numbers = #tpu.dot_dimension_numbers<[1], [0], [0], [1], [0, 0, 1, 1], [], []>} : vector<16x32xf32>, vector<32x128xf32>, vector<16x128xf32> -> vector<16x128xf32>
    %1182 = arith.addf %1178, %1181 : vector<16x128xf32>
    %c544 = arith.constant 544 : index
    %c0_388 = arith.constant 0 : index
    %1183 = vector.load %arg1[%c544, %c0_388] : memref<568x256xf32, #tpu.memory_space<vmem>>, vector<1x128xf32>
    %1184 = vector.broadcast %1183 : vector<1x128xf32> to vector<16x128xf32>
    %1185 = arith.addf %1182, %1184 : vector<16x128xf32>
    %1186 = vector.extract_strided_slice %1185 {offsets = [0, 0], sizes = [16, 64], strides = [1, 1]} : vector<16x128xf32> to vector<16x64xf32>
    %1187 = vector.extract_strided_slice %1185 {offsets = [0, 64], sizes = [16, 64], strides = [1, 1]} : vector<16x128xf32> to vector<16x64xf32>
    %1188 = math.tanh %1187 : vector<16x64xf32>
    %c432 = arith.constant 432 : index
    %c0_389 = arith.constant 0 : index
    %1189 = vector.load %arg1[%c432, %c0_389] : memref<568x256xf32, #tpu.memory_space<vmem>>, vector<64x8xf32>
    %cst_390 = arith.constant dense<0.000000e+00> : vector<16x8xf32>
    %1190 = tpu.matmul %1188, %1189, %cst_390 {dimension_numbers = #tpu.dot_dimension_numbers<[1], [0], [0], [1], [0, 0, 1, 1], [], []>} : vector<16x64xf32>, vector<64x8xf32>, vector<16x8xf32> -> vector<16x8xf32>
    %c504 = arith.constant 504 : index
    %c0_391 = arith.constant 0 : index
    %1191 = vector.load %arg1[%c504, %c0_391] : memref<568x256xf32, #tpu.memory_space<vmem>>, vector<16x2xf32>
    %cst_392 = arith.constant 0.000000e+00 : f32
    %1192 = vector.broadcast %cst_392 : f32 to vector<16x8xf32>
    %1193 = vector.extract_strided_slice %1191 {offsets = [0, 0], sizes = [16, 1], strides = [1, 1]} : vector<16x2xf32> to vector<16x1xf32>
    %cst_393 = arith.constant 5.000000e-01 : f32
    %1194 = vector.broadcast %cst_393 : f32 to vector<16x1xf32>
    %1195 = arith.cmpf ogt, %1193, %1194 : vector<16x1xf32>
    %cst_394 = arith.constant -3.000000e+38 : f32
    %1196 = vector.shape_cast %1195 : vector<16x1xi1> to vector<16x1xi1>
    %1197 = vector.broadcast %1196 : vector<16x1xi1> to vector<16x8xi1>
    %1198 = vector.broadcast %cst_394 : f32 to vector<16x8xf32>
    %1199 = arith.select %1197, %1190, %1198 : vector<16x8xi1>, vector<16x8xf32>
    %cst_395 = arith.constant dense<0xFF800000> : vector<8xf32>
    %1200 = vector.multi_reduction <maximumf>, %1199, %cst_395 [0] : vector<16x8xf32> to vector<8xf32>
    %1201 = vector.shape_cast %1200 : vector<8xf32> to vector<1x8xf32>
    %1202 = vector.shape_cast %1195 : vector<16x1xi1> to vector<16x1xi1>
    %1203 = vector.broadcast %1202 : vector<16x1xi1> to vector<16x8xi1>
    %1204 = vector.shape_cast %1201 : vector<1x8xf32> to vector<1x8xf32>
    %1205 = vector.broadcast %1204 : vector<1x8xf32> to vector<16x8xf32>
    %1206 = arith.select %1203, %1205, %1192 : vector<16x8xi1>, vector<16x8xf32>
    %1207 = vector.extract_strided_slice %1191 {offsets = [0, 1], sizes = [16, 1], strides = [1, 1]} : vector<16x2xf32> to vector<16x1xf32>
    %cst_396 = arith.constant 5.000000e-01 : f32
    %1208 = vector.broadcast %cst_396 : f32 to vector<16x1xf32>
    %1209 = arith.cmpf ogt, %1207, %1208 : vector<16x1xf32>
    %cst_397 = arith.constant -3.000000e+38 : f32
    %1210 = vector.shape_cast %1209 : vector<16x1xi1> to vector<16x1xi1>
    %1211 = vector.broadcast %1210 : vector<16x1xi1> to vector<16x8xi1>
    %1212 = vector.broadcast %cst_397 : f32 to vector<16x8xf32>
    %1213 = arith.select %1211, %1190, %1212 : vector<16x8xi1>, vector<16x8xf32>
    %cst_398 = arith.constant dense<0xFF800000> : vector<8xf32>
    %1214 = vector.multi_reduction <maximumf>, %1213, %cst_398 [0] : vector<16x8xf32> to vector<8xf32>
    %1215 = vector.shape_cast %1214 : vector<8xf32> to vector<1x8xf32>
    %1216 = vector.shape_cast %1209 : vector<16x1xi1> to vector<16x1xi1>
    %1217 = vector.broadcast %1216 : vector<16x1xi1> to vector<16x8xi1>
    %1218 = vector.shape_cast %1215 : vector<1x8xf32> to vector<1x8xf32>
    %1219 = vector.broadcast %1218 : vector<1x8xf32> to vector<16x8xf32>
    %1220 = arith.select %1217, %1219, %1206 : vector<16x8xi1>, vector<16x8xf32>
    %1221 = arith.subf %1190, %1220 : vector<16x8xf32>
    %1222 = math.exp %1221 : vector<16x8xf32>
    %c520 = arith.constant 520 : index
    %c0_399 = arith.constant 0 : index
    %1223 = vector.load %arg1[%c520, %c0_399] : memref<568x256xf32, #tpu.memory_space<vmem>>, vector<2x16xf32>
    %c496 = arith.constant 496 : index
    %c0_400 = arith.constant 0 : index
    %1224 = vector.load %arg1[%c496, %c0_400] : memref<568x256xf32, #tpu.memory_space<vmem>>, vector<8x64xf32>
    %cst_401 = arith.constant dense<0.000000e+00> : vector<16x64xf32>
    %1225 = tpu.matmul %1222, %1224, %cst_401 {dimension_numbers = #tpu.dot_dimension_numbers<[1], [0], [0], [1], [0, 0, 1, 1], [], []>} : vector<16x8xf32>, vector<8x64xf32>, vector<16x64xf32> -> vector<16x64xf32>
    %1226 = arith.mulf %1186, %1225 : vector<16x64xf32>
    %cst_402 = arith.constant dense<0.000000e+00> : vector<2x64xf32>
    %1227 = tpu.matmul %1223, %1226, %cst_402 {dimension_numbers = #tpu.dot_dimension_numbers<[1], [0], [0], [1], [0, 0, 1, 1], [], []>} : vector<2x16xf32>, vector<16x64xf32>, vector<2x64xf32> -> vector<2x64xf32>
    %cst_403 = arith.constant dense<0.000000e+00> : vector<2x8xf32>
    %1228 = tpu.matmul %1223, %1222, %cst_403 {dimension_numbers = #tpu.dot_dimension_numbers<[1], [0], [0], [1], [0, 0, 1, 1], [], []>} : vector<2x16xf32>, vector<16x8xf32>, vector<2x8xf32> -> vector<2x8xf32>
    %cst_404 = arith.constant dense<0.000000e+00> : vector<2x64xf32>
    %1229 = tpu.matmul %1228, %1224, %cst_404 {dimension_numbers = #tpu.dot_dimension_numbers<[1], [0], [0], [1], [0, 0, 1, 1], [], []>} : vector<2x8xf32>, vector<8x64xf32>, vector<2x64xf32> -> vector<2x64xf32>
    %1230 = arith.divf %1227, %1229 : vector<2x64xf32>
    %c304 = arith.constant 304 : index
    %c0_405 = arith.constant 0 : index
    %1231 = vector.load %arg1[%c304, %c0_405] : memref<568x256xf32, #tpu.memory_space<vmem>>, vector<64x64xf32>
    %cst_406 = arith.constant dense<0.000000e+00> : vector<2x64xf32>
    %1232 = tpu.matmul %1230, %1231, %cst_406 {dimension_numbers = #tpu.dot_dimension_numbers<[1], [0], [0], [1], [0, 0, 1, 1], [], []>} : vector<2x64xf32>, vector<64x64xf32>, vector<2x64xf32> -> vector<2x64xf32>
    %c552 = arith.constant 552 : index
    %c0_407 = arith.constant 0 : index
    %1233 = vector.load %arg1[%c552, %c0_407] : memref<568x256xf32, #tpu.memory_space<vmem>>, vector<1x64xf32>
    %1234 = vector.broadcast %1233 : vector<1x64xf32> to vector<2x64xf32>
    %1235 = arith.addf %1232, %1234 : vector<2x64xf32>
    %cst_408 = arith.constant 5.000000e-01 : f32
    %1236 = vector.broadcast %cst_408 : f32 to vector<2x64xf32>
    %1237 = arith.mulf %1236, %1235 : vector<2x64xf32>
    %cst_409 = arith.constant 0.707106769 : f32
    %1238 = vector.broadcast %cst_409 : f32 to vector<2x64xf32>
    %1239 = arith.mulf %1235, %1238 : vector<2x64xf32>
    %1240 = math.erf %1239 : vector<2x64xf32>
    %cst_410 = arith.constant 1.000000e+00 : f32
    %1241 = vector.broadcast %cst_410 : f32 to vector<2x64xf32>
    %1242 = arith.addf %1241, %1240 : vector<2x64xf32>
    %1243 = arith.mulf %1237, %1242 : vector<2x64xf32>
    %c368 = arith.constant 368 : index
    %c0_411 = arith.constant 0 : index
    %1244 = vector.load %arg1[%c368, %c0_411] : memref<568x256xf32, #tpu.memory_space<vmem>>, vector<64x16xf32>
    %cst_412 = arith.constant dense<0.000000e+00> : vector<2x16xf32>
    %1245 = tpu.matmul %1243, %1244, %cst_412 {dimension_numbers = #tpu.dot_dimension_numbers<[1], [0], [0], [1], [0, 0, 1, 1], [], []>} : vector<2x64xf32>, vector<64x16xf32>, vector<2x16xf32> -> vector<2x16xf32>
    %c560 = arith.constant 560 : index
    %c0_413 = arith.constant 0 : index
    %1246 = vector.load %arg1[%c560, %c0_413] : memref<568x256xf32, #tpu.memory_space<vmem>>, vector<1x16xf32>
    %1247 = vector.broadcast %1246 : vector<1x16xf32> to vector<2x16xf32>
    %1248 = arith.addf %1245, %1247 : vector<2x16xf32>
    %c0_414 = arith.constant 0 : index
    %c0_415 = arith.constant 0 : index
    %1249 = vector.load %arg2[%c0_414, %c0_415] : memref<2x16xf32, #tpu.memory_space<vmem>>, vector<2x16xf32>
    tpu.vector_store %arg2[%c0_414, %c0_415], %1248 {strides = array<i32>} : memref<2x16xf32, #tpu.memory_space<vmem>>, vector<2x16xf32>,
    return
  }
}

</mosaic_0001>

<llo_original>
// kernel: virtuoso_forward.1
$region0: #{virtuoso_forward.1}
  #allocation0 [shape = 'u32[]', space=smem, size = 0x4, offset = 0x4, fixed_abs, tag = 'smem constant byte address 0x4 - core index']
  #allocation1 [shape = 'u32[144,128]{1,0:T(1,128)}', space=vmem, size = 0x12000, scoped, tag = 'internal scratch']
  #allocation2 [shape = 'f32[16,32]{1,0:T(8,128)}', space=vmem, size = 0x2000, scoped, tag = 'scratch operand']
  #allocation3 [shape = 'f32[16,32]{1,0:T(8,128)}', space=vmem, size = 0x2000, scoped, tag = 'scratch operand']
  #allocation4 [shape = 'f32[16,32]{1,0:T(8,128)}', space=vmem, size = 0x2000, scoped, tag = 'scratch operand']
  #allocation5 [shape = 'f32[16,32]{1,0:T(8,128)}', space=vmem, size = 0x2000, scoped, tag = 'scratch operand']
  %s0 = inlined_call_operand.vmem [shape: f32[16,48], index: 0, kind: input, shape index: {}]
  %s1 = inlined_call_operand.hbm [shape: f32[568,256], index: 1, kind: input, shape index: {}]
  %s2 = inlined_call_operand.hbm [shape: f32[2,16], index: 2, kind: output, shape index: {}]
  %s3 = sld [smem:[#allocation0]]
  $region22: #{virtuoso_forward.1} parent=0
    _
  %s5 = ssub.s32 1, %s3
  %s6 = scalar_select 0, %s5, %s3
  $region1: #{virtuoso_forward.1} parent=0
    #allocation6 [shape = 'u8[581632]{0}', space=vmem, size = 0x8e000, scoped, tag = 'input window, operand 1, single buffered']
    #allocation7 [shape = 's32[1]{0}', space=sflag, size = 0x4, scoped, tag = 'scoped memory for virtuoso_forward.1']
    #allocation8 [shape = 's32[1]{0}', space=sflag, size = 0x4, scoped, tag = 'scoped memory for virtuoso_forward.1']
    #allocation9 [shape = 'u8[1024]{0}', space=vmem, size = 0x400, scoped, tag = 'output window, operand 0, single buffered']
    %7 = vsyncpa [#allocation7], 0
    %8 = vsyncpa [#allocation8], 0
    // Predicated region
    $region2: #{virtuoso_forward.1} parent=1 // pred_check
      _
    $region3: #{virtuoso_forward.1} parent=1 // pred_check_branch
      %10 = sbr.rel (0) target = $region5
    $region4: #{virtuoso_forward.1} parent=1 // pred_region
      _
    $region5: #{virtuoso_forward.1} parent=1 // pred_fallthru
      _
    // Predicated region
    $region6: #{virtuoso_forward.1} parent=1 // pred_check
      _
    $region7: #{virtuoso_forward.1} parent=1 // pred_check_branch
      %12 = sbr.rel (0) target = $region9
    $region8: #{virtuoso_forward.1} parent=1 // pred_region
      %s14 = ssub.s32 18176, 18176
      %15 = vsyncadd [#allocation7], %s14
      %s16 = sshll.u32 [#allocation6], 4
      %s17 = int_to_ptr.vmem [resolvable:$true] %s16
      %22 = dma.hbm_to_vmem [thread:$0]  %s1, 18176, %s17, [#allocation7], 256, 256, 16
    $region9: #{virtuoso_forward.1} parent=1 // pred_fallthru
      _
    // Predicated region
    $region10: #{virtuoso_forward.1} parent=1 // pred_check
      _
    $region11: #{virtuoso_forward.1} parent=1 // pred_check_branch
      %24 = sbr.rel (0) target = $region13
    $region12: #{virtuoso_forward.1} parent=1 // pred_region
      %25 = dma.done [#allocation7], 18176
    $region13: #{virtuoso_forward.1} parent=1 // pred_fallthru
      _
    %v26 = vld [vmem:[%s0] sm:$0xff]
    %v27 = vld [vmem:[%s0 + $0x8] sm:$0xff]
    %v28 = vld [vmem:[#allocation6] sm:$0xff]
    %v29 = vld [vmem:[#allocation6 + $0x8] sm:$0xff]
    %v30 = vld [vmem:[#allocation6 + $0x10] sm:$0xff]
    %v31 = vld [vmem:[#allocation6 + $0x18] sm:$0xff]
    %v32 = vld [vmem:[#allocation6 + $0x20] sm:$0xff]
    %v33 = vld [vmem:[#allocation6 + $0x28] sm:$0xff]
    %v34 = vld [vmem:[#allocation6 + $0x30] sm:$0xff]
    %v35 = vld [vmem:[#allocation6 + $0x38] sm:$0xff]
    %v36 = vld [vmem:[#allocation6 + $0x40] sm:$0xff]
    %v37 = vld [vmem:[#allocation6 + $0x48] sm:$0xff]
    %v38 = vld [vmem:[#allocation6 + $0x50] sm:$0xff]
    %v39 = vld [vmem:[#allocation6 + $0x58] sm:$0xff]
    %s40 = scalar_lea.vmem [#allocation6], 1056
    %v41 = vld [vmem:[%s40] ss:$8 sm:$0x3]
    %v43 = vlaneseq
    %v44 = vshrl.u32 %v43, 7
    %v45 = vsub.s32 0, %v44
    %v46 = vrot.slane %v41, %v45
    %v47 = vlaneseq
    %v48 = vshrl.u32 %v47, 7
    %v49 = vsub.s32 1, %v48
    %v50 = vrot.slane %v41, %v49
    %vm53 = vcmask 392192
    %v55 = vsel %vm53, %v26, 0
    %v58 = vsel %vm53, %v27, 0
    %60 = vmatprep.subr.mxu0 0.0
    %61 = vmatpush1.msra.mxu0 0.0
    %62 = vmatprep.subr.mxu0 0.0
    %63 = vmatpush1.msra.mxu0 0.0
    %64 = vmatprep.subr.mxu0 0.0
    %65 = vmatpush1.msra.mxu0 0.0
    %66 = vmatprep.subr.mxu0 0.0
    %67 = vmatpush1.msra.mxu0 0.0
    %68 = vmatprep.subr.mxu0 0.0
    %69 = vmatpush1.msra.mxu0 0.0
    %70 = vmatprep.subr.mxu0 0.0
    %71 = vmatpush1.msra.mxu0 0.0
    %72 = vmatprep.subr.mxu0 0.0
    %73 = vmatpush1.msra.mxu0 0.0
    %74 = vmatprep.subr.mxu0 0.0
    %75 = vmatpush1.msra.mxu0 0.0
    %76 = vmatprep.subr.mxu0 0.0
    %77 = vmatpush1.msra.mxu0 0.0
    %78 = vmatprep.subr.mxu0 0.0
    %79 = vmatpush1.msra.mxu0 0.0
    %80 = vmatprep.subr.mxu0 %v39
    %81 = vmatpush1.msra.mxu0 %v38
    %82 = vmatprep.subr.mxu0 %v37
    %83 = vmatpush1.msra.mxu0 %v36
    %84 = vmatprep.subr.mxu0 %v35
    %85 = vmatpush1.msra.mxu0 %v34
    %86 = vmatprep.subr.mxu0 %v33
    %87 = vmatpush1.msra.mxu0 %v32
    %88 = vmatprep.subr.mxu0 %v31
    %89 = vmatpush1.msra.mxu0 %v30
    %90 = vmatprep.subr.mxu0 %v29
    %91 = vmatpush1.msra.mxu0 %v28
    %92 = vmatprep.subr.mxu0 0.0
    %93 = vmatpush2.msra.mxu0 0.0
    %94 = vmatprep.subr.mxu0 0.0
    %95 = vmatpush2.msra.mxu0 0.0
    %96 = vmatprep.subr.mxu0 0.0
    %97 = vmatpush2.msra.mxu0 0.0
    %98 = vmatprep.subr.mxu0 0.0
    %99 = vmatpush2.msra.mxu0 0.0
    %100 = vmatprep.subr.mxu0 0.0
    %101 = vmatpush2.msra.mxu0 0.0
    %102 = vmatprep.subr.mxu0 0.0
    %103 = vmatpush2.msra.mxu0 0.0
    %104 = vmatprep.subr.mxu0 0.0
    %105 = vmatpush2.msra.mxu0 0.0
    %106 = vmatprep.subr.mxu0 0.0
    %107 = vmatpush2.msra.mxu0 0.0
    %108 = vmatprep.subr.mxu0 0.0
    %109 = vmatpush2.msra.mxu0 0.0
    %110 = vmatprep.subr.mxu0 0.0
    %111 = vmatpush2.msra.mxu0 0.0
    %112 = vmatprep.subr.mxu0 0.0
    %113 = vmatpush2.msra.mxu0 0.0
    %114 = vmatprep.subr.mxu0 0.0
    %115 = vmatpush2.msra.mxu0 0.0
    %116 = vmatprep.subr.mxu0 0.0
    %117 = vmatpush2.msra.mxu0 0.0
    %118 = vmatprep.subr.mxu0 0.0
    %119 = vmatpush2.msra.mxu0 0.0
    %120 = vmatprep.subr.mxu0 0.0
    %121 = vmatpush2.msra.mxu0 0.0
    %122 = vmatprep.subr.mxu0 0.0
    %123 = vmatpush2.msra.mxu0 0.0
    %124 = vmatprep.mubr.f32.mxu0 0.0
    %125 = vmatmul.mubr.f32.gmra.mxu0 %v55
    %v126 = vpop.f32.mrf.mxu0
    %v127 = vadd.f32 %v46, %v126
    %v128 = vpop.f32.mrf.mxu0
    %v129 = vadd.f32 %v50, %v128
    %130 = vmatprep.mubr.f32.mxu0 0.0
    %131 = vmatmul.mubr.f32.gmra.mxu0 %v58
    %v132 = vpop.f32.mrf.mxu0
    %v133 = vadd.f32 %v46, %v132
    %v134 = vpop.f32.mrf.mxu0
    %v135 = vadd.f32 %v50, %v134
    %136 = vdwg.mxu0
    %v137 = vld [vmem:[#allocation6 + $0x60] sm:$0xff]
    %v138 = vld [vmem:[#allocation6 + $0x68] sm:$0xff]
    %v139 = vld [vmem:[#allocation6 + $0x70] sm:$0xff]
    %v140 = vld [vmem:[#allocation6 + $0x78] sm:$0xff]
    %v141 = vld [vmem:[#allocation6 + $0x80] sm:$0xff]
    %v142 = vld [vmem:[#allocation6 + $0x88] sm:$0xff]
    %v143 = vld [vmem:[#allocation6 + $0x90] sm:$0xff]
    %v144 = vld [vmem:[#allocation6 + $0x98] sm:$0xff]
    %v145 = vld [vmem:[#allocation6 + $0xa0] sm:$0xff]
    %v146 = vld [vmem:[#allocation6 + $0xa8] sm:$0xff]
    %v147 = vld [vmem:[#allocation6 + $0xb0] sm:$0xff]
    %v148 = vld [vmem:[#allocation6 + $0xb8] sm:$0xff]
    %v149 = vld [vmem:[#allocation6 + $0xc0] sm:$0xff]
    %v150 = vld [vmem:[#allocation6 + $0xc8] sm:$0xff]
    %v151 = vld [vmem:[#allocation6 + $0xd0] sm:$0xff]
    %v152 = vld [vmem:[#allocation6 + $0xd8] sm:$0xff]
    %vm153 = vcmask 523264
    %v155 = vsel %vm153, 0.0, 0
    %157 = vmatprep.subr.mxu0 0.0
    %158 = vmatpush1.msra.mxu0 0.0
    %159 = vmatprep.subr.mxu0 0.0
    %160 = vmatpush1.msra.mxu0 0.0
    %161 = vmatprep.subr.mxu0 0.0
    %162 = vmatpush1.msra.mxu0 0.0
    %163 = vmatprep.subr.mxu0 0.0
    %164 = vmatpush1.msra.mxu0 0.0
    %165 = vmatprep.subr.mxu0 0.0
    %166 = vmatpush1.msra.mxu0 0.0
    %167 = vmatprep.subr.mxu0 0.0
    %168 = vmatpush1.msra.mxu0 0.0
    %169 = vmatprep.subr.mxu0 0.0
    %170 = vmatpush1.msra.mxu0 0.0
    %171 = vmatprep.subr.mxu0 0.0
    %172 = vmatpush1.msra.mxu0 0.0
    %173 = vmatprep.subr.mxu0 %v152
    %174 = vmatpush1.msra.mxu0 %v151
    %175 = vmatprep.subr.mxu0 %v150
    %176 = vmatpush1.msra.mxu0 %v149
    %177 = vmatprep.subr.mxu0 %v148
    %178 = vmatpush1.msra.mxu0 %v147
    %179 = vmatprep.subr.mxu0 %v146
    %180 = vmatpush1.msra.mxu0 %v145
    %181 = vmatprep.subr.mxu0 %v144
    %182 = vmatpush1.msra.mxu0 %v143
    %183 = vmatprep.subr.mxu0 %v142
    %184 = vmatpush1.msra.mxu0 %v141
    %185 = vmatprep.subr.mxu0 %v140
    %186 = vmatpush1.msra.mxu0 %v139
    %187 = vmatprep.subr.mxu0 %v138
    %188 = vmatpush1.msra.mxu0 %v137
    %189 = vmatprep.subr.mxu0 0.0
    %190 = vmatpush2.msra.mxu0 0.0
    %191 = vmatprep.subr.mxu0 0.0
    %192 = vmatpush2.msra.mxu0 0.0
    %193 = vmatprep.subr.mxu0 0.0
    %194 = vmatpush2.msra.mxu0 0.0
    %195 = vmatprep.subr.mxu0 0.0
    %196 = vmatpush2.msra.mxu0 0.0
    %197 = vmatprep.subr.mxu0 0.0
    %198 = vmatpush2.msra.mxu0 0.0
    %199 = vmatprep.subr.mxu0 0.0
    %200 = vmatpush2.msra.mxu0 0.0
    %201 = vmatprep.subr.mxu0 0.0
    %202 = vmatpush2.msra.mxu0 0.0
    %203 = vmatprep.subr.mxu0 0.0
    %204 = vmatpush2.msra.mxu0 0.0
    %205 = vmatprep.subr.mxu0 0.0
    %206 = vmatpush2.msra.mxu0 0.0
    %207 = vmatprep.subr.mxu0 0.0
    %208 = vmatpush2.msra.mxu0 0.0
    %209 = vmatprep.subr.mxu0 0.0
    %210 = vmatpush2.msra.mxu0 0.0
    %211 = vmatprep.subr.mxu0 0.0
    %212 = vmatpush2.msra.mxu0 0.0
    %213 = vmatprep.subr.mxu0 0.0
    %214 = vmatpush2.msra.mxu0 0.0
    %215 = vmatprep.subr.mxu0 0.0
    %216 = vmatpush2.msra.mxu0 0.0
    %217 = vmatprep.subr.mxu0 0.0
    %218 = vmatpush2.msra.mxu0 0.0
    %219 = vmatprep.subr.mxu0 0.0
    %220 = vmatpush2.msra.mxu0 0.0
    %221 = vmatprep.mubr.f32.mxu0 0.0
    %222 = vmatmul.mubr.f32.gmra.mxu0 %v155
    %v223 = vpop.f32.mrf.mxu0
    %v224 = vadd.f32 0.0, %v223
    %v225 = vpop.f32.mrf.mxu0
    %v226 = vadd.f32 0.0, %v225
    %227 = vdwg.mxu0
    %v228 = vadd.f32 %v127, %v224
    %v230 = vrot.slane %v226, 2
    %v232 = vadd.f32 %v135, %v230
    %v233 = vsub.f32 0.0, %v228
    %v234 = vmul.f32 %v233, 1.442695
    %v235 = vpow.pop %v234
    %v236 = vadd.f32 %v235, 1.0
    %v237 = vrcp.pop %v236
    %v238 = vmul.f32 1.0, %v237
    %v239 = vtanh.pop %v228
    %v240 = vmul.f32 %v238, 0.0
    %242 = vrot.lane.b32.xlu0 %v239, 64
    %v243 = vpop.permute.xlu0 %242
    %v245 = vmul.f32 %v238, %v243
    %247 = vrot.lane.b32.xlu0 %v245, 32
    %v248 = vpop.permute.xlu0 %247
    %v250 = vadd.f32 %v240, %v248
    %v251 = vtanh.pop %v250
    %253 = vrot.lane.b32.xlu0 %v251, 64
    %v254 = vpop.permute.xlu0 %253
    %v256 = vmul.f32 %v238, %v254
    %v257 = vsub.f32 0.0, %v232
    %v258 = vmul.f32 %v257, 1.442695
    %v259 = vpow.pop %v258
    %v260 = vadd.f32 %v259, 1.0
    %v261 = vrcp.pop %v260
    %v262 = vmul.f32 1.0, %v261
    %v263 = vtanh.pop %v232
    %v264 = vmul.f32 %v262, 0.0
    %266 = vrot.lane.b32.xlu0 %v263, 64
    %v267 = vpop.permute.xlu0 %266
    %v269 = vmul.f32 %v262, %v267
    %271 = vrot.lane.b32.xlu0 %v269, 32
    %v272 = vpop.permute.xlu0 %271
    %v274 = vadd.f32 %v264, %v272
    %v275 = vtanh.pop %v274
    %277 = vrot.lane.b32.xlu0 %v275, 64
    %v278 = vpop.permute.xlu0 %277
    %v280 = vmul.f32 %v262, %v278
    %282 = vrot.lane.b32.xlu0 %v256, 32
    %v283 = vpop.permute.xlu0 %282
    %v286 = vrot.slane %v280, 6
    %287 = vrot.lane.b32.xlu0 %v286, 64
    %v288 = vpop.permute.xlu0 %287
    %vm290 = vcmask 261120
    %v291 = vsel %vm290, %v283, %v288
    %vm292 = vcmask 254976
    %293 = vst.msk [vmem:[#allocation2] sm:$0x3] %vm292, %v283
    %294 = vrot.lane.b32.xlu0 %v280, 32
    %v295 = vpop.permute.xlu0 %294
    %vm297 = vcmask 261126
    %298 = vst.msk [vmem:[#allocation3 + $0x8] sm:$0xc0] %vm297, %v295
    %v300 = vsel %vm153, %v291, 0
    %302 = vmatprep.subr.mxu0 0.0
    %303 = vmatpush1.msra.mxu0 0.0
    %304 = vmatprep.subr.mxu0 0.0
    %305 = vmatpush1.msra.mxu0 0.0
    %306 = vmatprep.subr.mxu0 0.0
    %307 = vmatpush1.msra.mxu0 0.0
    %308 = vmatprep.subr.mxu0 0.0
    %309 = vmatpush1.msra.mxu0 0.0
    %310 = vmatprep.subr.mxu0 0.0
    %311 = vmatpush1.msra.mxu0 0.0
    %312 = vmatprep.subr.mxu0 0.0
    %313 = vmatpush1.msra.mxu0 0.0
    %314 = vmatprep.subr.mxu0 0.0
    %315 = vmatpush1.msra.mxu0 0.0
    %316 = vmatprep.subr.mxu0 0.0
    %317 = vmatpush1.msra.mxu0 0.0
    %318 = vmatprep.subr.mxu0 %v152
    %319 = vmatpush1.msra.mxu0 %v151
    %320 = vmatprep.subr.mxu0 %v150
    %321 = vmatpush1.msra.mxu0 %v149
    %322 = vmatprep.subr.mxu0 %v148
    %323 = vmatpush1.msra.mxu0 %v147
    %324 = vmatprep.subr.mxu0 %v146
    %325 = vmatpush1.msra.mxu0 %v145
    %326 = vmatprep.subr.mxu0 %v144
    %327 = vmatpush1.msra.mxu0 %v143
    %328 = vmatprep.subr.mxu0 %v142
    %329 = vmatpush1.msra.mxu0 %v141
    %330 = vmatprep.subr.mxu0 %v140
    %331 = vmatpush1.msra.mxu0 %v139
    %332 = vmatprep.subr.mxu0 %v138
    %333 = vmatpush1.msra.mxu0 %v137
    %334 = vmatprep.subr.mxu0 0.0
    %335 = vmatpush2.msra.mxu0 0.0
    %336 = vmatprep.subr.mxu0 0.0
    %337 = vmatpush2.msra.mxu0 0.0
    %338 = vmatprep.subr.mxu0 0.0
    %339 = vmatpush2.msra.mxu0 0.0
    %340 = vmatprep.subr.mxu0 0.0
    %341 = vmatpush2.msra.mxu0 0.0
    %342 = vmatprep.subr.mxu0 0.0
    %343 = vmatpush2.msra.mxu0 0.0
    %344 = vmatprep.subr.mxu0 0.0
    %345 = vmatpush2.msra.mxu0 0.0
    %346 = vmatprep.subr.mxu0 0.0
    %347 = vmatpush2.msra.mxu0 0.0
    %348 = vmatprep.subr.mxu0 0.0
    %349 = vmatpush2.msra.mxu0 0.0
    %350 = vmatprep.subr.mxu0 0.0
    %351 = vmatpush2.msra.mxu0 0.0
    %352 = vmatprep.subr.mxu0 0.0
    %353 = vmatpush2.msra.mxu0 0.0
    %354 = vmatprep.subr.mxu0 0.0
    %355 = vmatpush2.msra.mxu0 0.0
    %356 = vmatprep.subr.mxu0 0.0
    %357 = vmatpush2.msra.mxu0 0.0
    %358 = vmatprep.subr.mxu0 0.0
    %359 = vmatpush2.msra.mxu0 0.0
    %360 = vmatprep.subr.mxu0 0.0
    %361 = vmatpush2.msra.mxu0 0.0
    %362 = vmatprep.subr.mxu0 0.0
    %363 = vmatpush2.msra.mxu0 0.0
    %364 = vmatprep.subr.mxu0 0.0
    %365 = vmatpush2.msra.mxu0 0.0
    %366 = vmatprep.mubr.f32.mxu0 0.0
    %367 = vmatmul.mubr.f32.gmra.mxu0 %v300
    %v368 = vpop.f32.mrf.mxu0
    %v369 = vadd.f32 0.0, %v368
    %v370 = vpop.f32.mrf.mxu0
    %v371 = vadd.f32 0.0, %v370
    %372 = vdwg.mxu0
    %v374 = vrot.slane %v369, 6
    %v376 = vadd.f32 %v127, %v374
    %v378 = vrot.slane %v371, 4
    %v380 = vadd.f32 %v135, %v378
    %v381 = vsub.f32 0.0, %v376
    %v382 = vmul.f32 %v381, 1.442695
    %v383 = vpow.pop %v382
    %v384 = vadd.f32 %v383, 1.0
    %v385 = vrcp.pop %v384
    %v386 = vmul.f32 1.0, %v385
    %v387 = vtanh.pop %v376
    %v389 = vrot.slane %v250, 6
    %v391 = vmul.f32 %v386, %v389
    %393 = vrot.lane.b32.xlu0 %v387, 64
    %v394 = vpop.permute.xlu0 %393
    %v396 = vmul.f32 %v386, %v394
    %398 = vrot.lane.b32.xlu0 %v396, 32
    %v399 = vpop.permute.xlu0 %398
    %v401 = vadd.f32 %v391, %v399
    %v402 = vtanh.pop %v401
    %404 = vrot.lane.b32.xlu0 %v402, 64
    %v405 = vpop.permute.xlu0 %404
    %v407 = vmul.f32 %v386, %v405
    %v408 = vsub.f32 0.0, %v380
    %v409 = vmul.f32 %v408, 1.442695
    %v410 = vpow.pop %v409
    %v411 = vadd.f32 %v410, 1.0
    %v412 = vrcp.pop %v411
    %v413 = vmul.f32 1.0, %v412
    %v414 = vtanh.pop %v380
    %v416 = vrot.slane %v274, 2
    %v418 = vmul.f32 %v413, %v416
    %420 = vrot.lane.b32.xlu0 %v414, 64
    %v421 = vpop.permute.xlu0 %420
    %v423 = vmul.f32 %v413, %v421
    %425 = vrot.lane.b32.xlu0 %v423, 32
    %v426 = vpop.permute.xlu0 %425
    %v428 = vadd.f32 %v418, %v426
    %v429 = vtanh.pop %v428
    %431 = vrot.lane.b32.xlu0 %v429, 64
    %v432 = vpop.permute.xlu0 %431
    %v434 = vmul.f32 %v413, %v432
    %436 = vrot.lane.b32.xlu0 %v407, 32
    %v437 = vpop.permute.xlu0 %436
    %v440 = vrot.slane %v434, 2
    %441 = vrot.lane.b32.xlu0 %v440, 64
    %v442 = vpop.permute.xlu0 %441
    %v444 = vsel %vm290, %v437, %v442
    %vm445 = vcmask 257026
    %446 = vst.msk [vmem:[#allocation2] sm:$0xc] %vm445, %v437
    %447 = vrot.lane.b32.xlu0 %v434, 32
    %v448 = vpop.permute.xlu0 %447
    %vm450 = vcmask 259076
    %451 = vst.msk [vmem:[#allocation3 + $0x8] sm:$0x30] %vm450, %v448
    %v453 = vrot.slane %v444, 2
    %v454 = vsel %vm153, %v453, 0
    %456 = vmatprep.subr.mxu0 0.0
    %457 = vmatpush1.msra.mxu0 0.0
    %458 = vmatprep.subr.mxu0 0.0
    %459 = vmatpush1.msra.mxu0 0.0
    %460 = vmatprep.subr.mxu0 0.0
    %461 = vmatpush1.msra.mxu0 0.0
    %462 = vmatprep.subr.mxu0 0.0
    %463 = vmatpush1.msra.mxu0 0.0
    %464 = vmatprep.subr.mxu0 0.0
    %465 = vmatpush1.msra.mxu0 0.0
    %466 = vmatprep.subr.mxu0 0.0
    %467 = vmatpush1.msra.mxu0 0.0
    %468 = vmatprep.subr.mxu0 0.0
    %469 = vmatpush1.msra.mxu0 0.0
    %470 = vmatprep.subr.mxu0 0.0
    %471 = vmatpush1.msra.mxu0 0.0
    %472 = vmatprep.subr.mxu0 %v152
    %473 = vmatpush1.msra.mxu0 %v151
    %474 = vmatprep.subr.mxu0 %v150
    %475 = vmatpush1.msra.mxu0 %v149
    %476 = vmatprep.subr.mxu0 %v148
    %477 = vmatpush1.msra.mxu0 %v147
    %478 = vmatprep.subr.mxu0 %v146
    %479 = vmatpush1.msra.mxu0 %v145
    %480 = vmatprep.subr.mxu0 %v144
    %481 = vmatpush1.msra.mxu0 %v143
    %482 = vmatprep.subr.mxu0 %v142
    %483 = vmatpush1.msra.mxu0 %v141
    %484 = vmatprep.subr.mxu0 %v140
    %485 = vmatpush1.msra.mxu0 %v139
    %486 = vmatprep.subr.mxu0 %v138
    %487 = vmatpush1.msra.mxu0 %v137
    %488 = vmatprep.subr.mxu0 0.0
    %489 = vmatpush2.msra.mxu0 0.0
    %490 = vmatprep.subr.mxu0 0.0
    %491 = vmatpush2.msra.mxu0 0.0
    %492 = vmatprep.subr.mxu0 0.0
    %493 = vmatpush2.msra.mxu0 0.0
    %494 = vmatprep.subr.mxu0 0.0
    %495 = vmatpush2.msra.mxu0 0.0
    %496 = vmatprep.subr.mxu0 0.0
    %497 = vmatpush2.msra.mxu0 0.0
    %498 = vmatprep.subr.mxu0 0.0
    %499 = vmatpush2.msra.mxu0 0.0
    %500 = vmatprep.subr.mxu0 0.0
    %501 = vmatpush2.msra.mxu0 0.0
    %502 = vmatprep.subr.mxu0 0.0
    %503 = vmatpush2.msra.mxu0 0.0
    %504 = vmatprep.subr.mxu0 0.0
    %505 = vmatpush2.msra.mxu0 0.0
    %506 = vmatprep.subr.mxu0 0.0
    %507 = vmatpush2.msra.mxu0 0.0
    %508 = vmatprep.subr.mxu0 0.0
    %509 = vmatpush2.msra.mxu0 0.0
    %510 = vmatprep.subr.mxu0 0.0
    %511 = vmatpush2.msra.mxu0 0.0
    %512 = vmatprep.subr.mxu0 0.0
    %513 = vmatpush2.msra.mxu0 0.0
    %514 = vmatprep.subr.mxu0 0.0
    %515 = vmatpush2.msra.mxu0 0.0
    %516 = vmatprep.subr.mxu0 0.0
    %517 = vmatpush2.msra.mxu0 0.0
    %518 = vmatprep.subr.mxu0 0.0
    %519 = vmatpush2.msra.mxu0 0.0
    %520 = vmatprep.mubr.f32.mxu0 0.0
    %521 = vmatmul.mubr.f32.gmra.mxu0 %v454
    %v522 = vpop.f32.mrf.mxu0
    %v523 = vadd.f32 0.0, %v522
    %v524 = vpop.f32.mrf.mxu0
    %v525 = vadd.f32 0.0, %v524
    %526 = vdwg.mxu0
    %v528 = vrot.slane %v523, 4
    %v530 = vadd.f32 %v127, %v528
    %v532 = vrot.slane %v525, 6
    %v534 = vadd.f32 %v135, %v532
    %v535 = vsub.f32 0.0, %v530
    %v536 = vmul.f32 %v535, 1.442695
    %v537 = vpow.pop %v536
    %v538 = vadd.f32 %v537, 1.0
    %v539 = vrcp.pop %v538
    %v540 = vmul.f32 1.0, %v539
    %v541 = vtanh.pop %v530
    %v543 = vrot.slane %v401, 6
    %v545 = vmul.f32 %v540, %v543
    %547 = vrot.lane.b32.xlu0 %v541, 64
    %v548 = vpop.permute.xlu0 %547
    %v550 = vmul.f32 %v540, %v548
    %552 = vrot.lane.b32.xlu0 %v550, 32
    %v553 = vpop.permute.xlu0 %552
    %v555 = vadd.f32 %v545, %v553
    %v556 = vtanh.pop %v555
    %558 = vrot.lane.b32.xlu0 %v556, 64
    %v559 = vpop.permute.xlu0 %558
    %v561 = vmul.f32 %v540, %v559
    %v562 = vsub.f32 0.0, %v534
    %v563 = vmul.f32 %v562, 1.442695
    %v564 = vpow.pop %v563
    %v565 = vadd.f32 %v564, 1.0
    %v566 = vrcp.pop %v565
    %v567 = vmul.f32 1.0, %v566
    %v568 = vtanh.pop %v534
    %v570 = vrot.slane %v428, 2
    %v572 = vmul.f32 %v567, %v570
    %574 = vrot.lane.b32.xlu0 %v568, 64
    %v575 = vpop.permute.xlu0 %574
    %v577 = vmul.f32 %v567, %v575
    %579 = vrot.lane.b32.xlu0 %v577, 32
    %v580 = vpop.permute.xlu0 %579
    %v582 = vadd.f32 %v572, %v580
    %v583 = vtanh.pop %v582
    %585 = vrot.lane.b32.xlu0 %v583, 64
    %v586 = vpop.permute.xlu0 %585
    %v588 = vmul.f32 %v567, %v586
    %590 = vrot.lane.b32.xlu0 %v561, 32
    %v591 = vpop.permute.xlu0 %590
    %v594 = vrot.slane %v588, 6
    %595 = vrot.lane.b32.xlu0 %v594, 64
    %v596 = vpop.permute.xlu0 %595
    %v598 = vsel %vm290, %v591, %v596
    %599 = vst.msk [vmem:[#allocation2] sm:$0x30] %vm450, %v591
    %600 = vrot.lane.b32.xlu0 %v588, 32
    %v601 = vpop.permute.xlu0 %600
    %603 = vst.msk [vmem:[#allocation3 + $0x8] sm:$0xc] %vm445, %v601
    %v605 = vrot.slane %v598, 4
    %v606 = vsel %vm153, %v605, 0
    %608 = vmatprep.subr.mxu0 0.0
    %609 = vmatpush1.msra.mxu0 0.0
    %610 = vmatprep.subr.mxu0 0.0
    %611 = vmatpush1.msra.mxu0 0.0
    %612 = vmatprep.subr.mxu0 0.0
    %613 = vmatpush1.msra.mxu0 0.0
    %614 = vmatprep.subr.mxu0 0.0
    %615 = vmatpush1.msra.mxu0 0.0
    %616 = vmatprep.subr.mxu0 0.0
    %617 = vmatpush1.msra.mxu0 0.0
    %618 = vmatprep.subr.mxu0 0.0
    %619 = vmatpush1.msra.mxu0 0.0
    %620 = vmatprep.subr.mxu0 0.0
    %621 = vmatpush1.msra.mxu0 0.0
    %622 = vmatprep.subr.mxu0 0.0
    %623 = vmatpush1.msra.mxu0 0.0
    %624 = vmatprep.subr.mxu0 %v152
    %625 = vmatpush1.msra.mxu0 %v151
    %626 = vmatprep.subr.mxu0 %v150
    %627 = vmatpush1.msra.mxu0 %v149
    %628 = vmatprep.subr.mxu0 %v148
    %629 = vmatpush1.msra.mxu0 %v147
    %630 = vmatprep.subr.mxu0 %v146
    %631 = vmatpush1.msra.mxu0 %v145
    %632 = vmatprep.subr.mxu0 %v144
    %633 = vmatpush1.msra.mxu0 %v143
    %634 = vmatprep.subr.mxu0 %v142
    %635 = vmatpush1.msra.mxu0 %v141
    %636 = vmatprep.subr.mxu0 %v140
    %637 = vmatpush1.msra.mxu0 %v139
    %638 = vmatprep.subr.mxu0 %v138
    %639 = vmatpush1.msra.mxu0 %v137
    %640 = vmatprep.subr.mxu0 0.0
    %641 = vmatpush2.msra.mxu0 0.0
    %642 = vmatprep.subr.mxu0 0.0
    %643 = vmatpush2.msra.mxu0 0.0
    %644 = vmatprep.subr.mxu0 0.0
    %645 = vmatpush2.msra.mxu0 0.0
    %646 = vmatprep.subr.mxu0 0.0
    %647 = vmatpush2.msra.mxu0 0.0
    %648 = vmatprep.subr.mxu0 0.0
    %649 = vmatpush2.msra.mxu0 0.0
    %650 = vmatprep.subr.mxu0 0.0
    %651 = vmatpush2.msra.mxu0 0.0
    %652 = vmatprep.subr.mxu0 0.0
    %653 = vmatpush2.msra.mxu0 0.0
    %654 = vmatprep.subr.mxu0 0.0
    %655 = vmatpush2.msra.mxu0 0.0
    %656 = vmatprep.subr.mxu0 0.0
    %657 = vmatpush2.msra.mxu0 0.0
    %658 = vmatprep.subr.mxu0 0.0
    %659 = vmatpush2.msra.mxu0 0.0
    %660 = vmatprep.subr.mxu0 0.0
    %661 = vmatpush2.msra.mxu0 0.0
    %662 = vmatprep.subr.mxu0 0.0
    %663 = vmatpush2.msra.mxu0 0.0
    %664 = vmatprep.subr.mxu0 0.0
    %665 = vmatpush2.msra.mxu0 0.0
    %666 = vmatprep.subr.mxu0 0.0
    %667 = vmatpush2.msra.mxu0 0.0
    %668 = vmatprep.subr.mxu0 0.0
    %669 = vmatpush2.msra.mxu0 0.0
    %670 = vmatprep.subr.mxu0 0.0
    %671 = vmatpush2.msra.mxu0 0.0
    %672 = vmatprep.mubr.f32.mxu0 0.0
    %673 = vmatmul.mubr.f32.gmra.mxu0 %v606
    %v674 = vpop.f32.mrf.mxu0
    %v675 = vadd.f32 0.0, %v674
    %v676 = vpop.f32.mrf.mxu0
    %v677 = vadd.f32 0.0, %v676
    %678 = vdwg.mxu0
    %v680 = vrot.slane %v675, 2
    %v682 = vadd.f32 %v127, %v680
    %v683 = vadd.f32 %v135, %v677
    %v684 = vsub.f32 0.0, %v682
    %v685 = vmul.f32 %v684, 1.442695
    %v686 = vpow.pop %v685
    %v687 = vadd.f32 %v686, 1.0
    %v688 = vrcp.pop %v687
    %v689 = vmul.f32 1.0, %v688
    %v690 = vtanh.pop %v682
    %v692 = vrot.slane %v555, 6
    %v694 = vmul.f32 %v689, %v692
    %696 = vrot.lane.b32.xlu0 %v690, 64
    %v697 = vpop.permute.xlu0 %696
    %v699 = vmul.f32 %v689, %v697
    %701 = vrot.lane.b32.xlu0 %v699, 32
    %v702 = vpop.permute.xlu0 %701
    %v704 = vadd.f32 %v694, %v702
    %v705 = vtanh.pop %v704
    %707 = vrot.lane.b32.xlu0 %v705, 64
    %v708 = vpop.permute.xlu0 %707
    %v710 = vmul.f32 %v689, %v708
    %v711 = vsub.f32 0.0, %v683
    %v712 = vmul.f32 %v711, 1.442695
    %v713 = vpow.pop %v712
    %v714 = vadd.f32 %v713, 1.0
    %v715 = vrcp.pop %v714
    %v716 = vmul.f32 1.0, %v715
    %v717 = vtanh.pop %v683
    %v719 = vrot.slane %v582, 2
    %v721 = vmul.f32 %v716, %v719
    %723 = vrot.lane.b32.xlu0 %v717, 64
    %v724 = vpop.permute.xlu0 %723
    %v726 = vmul.f32 %v716, %v724
    %728 = vrot.lane.b32.xlu0 %v726, 32
    %v729 = vpop.permute.xlu0 %728
    %v731 = vadd.f32 %v721, %v729
    %v732 = vtanh.pop %v731
    %734 = vrot.lane.b32.xlu0 %v732, 64
    %v735 = vpop.permute.xlu0 %734
    %v737 = vmul.f32 %v716, %v735
    %739 = vrot.lane.b32.xlu0 %v710, 32
    %v740 = vpop.permute.xlu0 %739
    %v743 = vrot.slane %v737, 2
    %744 = vrot.lane.b32.xlu0 %v743, 64
    %v745 = vpop.permute.xlu0 %744
    %v747 = vsel %vm290, %v740, %v745
    %748 = vst.msk [vmem:[#allocation2] sm:$0xc0] %vm297, %v740
    %749 = vrot.lane.b32.xlu0 %v737, 32
    %v750 = vpop.permute.xlu0 %749
    %752 = vst.msk [vmem:[#allocation3 + $0x8] sm:$0x3] %vm292, %v750
    %v754 = vrot.slane %v747, 6
    %v755 = vsel %vm153, %v754, 0
    %757 = vmatprep.subr.mxu0 0.0
    %758 = vmatpush1.msra.mxu0 0.0
    %759 = vmatprep.subr.mxu0 0.0
    %760 = vmatpush1.msra.mxu0 0.0
    %761 = vmatprep.subr.mxu0 0.0
    %762 = vmatpush1.msra.mxu0 0.0
    %763 = vmatprep.subr.mxu0 0.0
    %764 = vmatpush1.msra.mxu0 0.0
    %765 = vmatprep.subr.mxu0 0.0
    %766 = vmatpush1.msra.mxu0 0.0
    %767 = vmatprep.subr.mxu0 0.0
    %768 = vmatpush1.msra.mxu0 0.0
    %769 = vmatprep.subr.mxu0 0.0
    %770 = vmatpush1.msra.mxu0 0.0
    %771 = vmatprep.subr.mxu0 0.0
    %772 = vmatpush1.msra.mxu0 0.0
    %773 = vmatprep.subr.mxu0 %v152
    %774 = vmatpush1.msra.mxu0 %v151
    %775 = vmatprep.subr.mxu0 %v150
    %776 = vmatpush1.msra.mxu0 %v149
    %777 = vmatprep.subr.mxu0 %v148
    %778 = vmatpush1.msra.mxu0 %v147
    %779 = vmatprep.subr.mxu0 %v146
    %780 = vmatpush1.msra.mxu0 %v145
    %781 = vmatprep.subr.mxu0 %v144
    %782 = vmatpush1.msra.mxu0 %v143
    %783 = vmatprep.subr.mxu0 %v142
    %784 = vmatpush1.msra.mxu0 %v141
    %785 = vmatprep.subr.mxu0 %v140
    %786 = vmatpush1.msra.mxu0 %v139
    %787 = vmatprep.subr.mxu0 %v138
    %788 = vmatpush1.msra.mxu0 %v137
    %789 = vmatprep.subr.mxu0 0.0
    %790 = vmatpush2.msra.mxu0 0.0
    %791 = vmatprep.subr.mxu0 0.0
    %792 = vmatpush2.msra.mxu0 0.0
    %793 = vmatprep.subr.mxu0 0.0
    %794 = vmatpush2.msra.mxu0 0.0
    %795 = vmatprep.subr.mxu0 0.0
    %796 = vmatpush2.msra.mxu0 0.0
    %797 = vmatprep.subr.mxu0 0.0
    %798 = vmatpush2.msra.mxu0 0.0
    %799 = vmatprep.subr.mxu0 0.0
    %800 = vmatpush2.msra.mxu0 0.0
    %801 = vmatprep.subr.mxu0 0.0
    %802 = vmatpush2.msra.mxu0 0.0
    %803 = vmatprep.subr.mxu0 0.0
    %804 = vmatpush2.msra.mxu0 0.0
    %805 = vmatprep.subr.mxu0 0.0
    %806 = vmatpush2.msra.mxu0 0.0
    %807 = vmatprep.subr.mxu0 0.0
    %808 = vmatpush2.msra.mxu0 0.0
    %809 = vmatprep.subr.mxu0 0.0
    %810 = vmatpush2.msra.mxu0 0.0
    %811 = vmatprep.subr.mxu0 0.0
    %812 = vmatpush2.msra.mxu0 0.0
    %813 = vmatprep.subr.mxu0 0.0
    %814 = vmatpush2.msra.mxu0 0.0
    %815 = vmatprep.subr.mxu0 0.0
    %816 = vmatpush2.msra.mxu0 0.0
    %817 = vmatprep.subr.mxu0 0.0
    %818 = vmatpush2.msra.mxu0 0.0
    %819 = vmatprep.subr.mxu0 0.0
    %820 = vmatpush2.msra.mxu0 0.0
    %821 = vmatprep.mubr.f32.mxu0 0.0
    %822 = vmatmul.mubr.f32.gmra.mxu0 %v755
    %v823 = vpop.f32.mrf.mxu0
    %v824 = vadd.f32 0.0, %v823
    %v825 = vpop.f32.mrf.mxu0
    %v826 = vadd.f32 0.0, %v825
    %827 = vdwg.mxu0
    %v828 = vadd.f32 %v133, %v824
    %v830 = vrot.slane %v826, 2
    %v832 = vadd.f32 %v129, %v830
    %v833 = vsub.f32 0.0, %v828
    %v834 = vmul.f32 %v833, 1.442695
    %v835 = vpow.pop %v834
    %v836 = vadd.f32 %v835, 1.0
    %v837 = vrcp.pop %v836
    %v838 = vmul.f32 1.0, %v837
    %v839 = vtanh.pop %v828
    %v841 = vrot.slane %v704, 6
    %v843 = vmul.f32 %v838, %v841
    %845 = vrot.lane.b32.xlu0 %v839, 64
    %v846 = vpop.permute.xlu0 %845
    %v848 = vmul.f32 %v838, %v846
    %850 = vrot.lane.b32.xlu0 %v848, 32
    %v851 = vpop.permute.xlu0 %850
    %v853 = vadd.f32 %v843, %v851
    %v854 = vtanh.pop %v853
    %856 = vrot.lane.b32.xlu0 %v854, 64
    %v857 = vpop.permute.xlu0 %856
    %v859 = vmul.f32 %v838, %v857
    %v860 = vsub.f32 0.0, %v832
    %v861 = vmul.f32 %v860, 1.442695
    %v862 = vpow.pop %v861
    %v863 = vadd.f32 %v862, 1.0
    %v864 = vrcp.pop %v863
    %v865 = vmul.f32 1.0, %v864
    %v866 = vtanh.pop %v832
    %v868 = vrot.slane %v731, 2
    %v870 = vmul.f32 %v865, %v868
    %872 = vrot.lane.b32.xlu0 %v866, 64
    %v873 = vpop.permute.xlu0 %872
    %v875 = vmul.f32 %v865, %v873
    %877 = vrot.lane.b32.xlu0 %v875, 32
    %v878 = vpop.permute.xlu0 %877
    %v880 = vadd.f32 %v870, %v878
    %v881 = vtanh.pop %v880
    %883 = vrot.lane.b32.xlu0 %v881, 64
    %v884 = vpop.permute.xlu0 %883
    %v886 = vmul.f32 %v865, %v884
    %888 = vrot.lane.b32.xlu0 %v859, 32
    %v889 = vpop.permute.xlu0 %888
    %v892 = vrot.slane %v886, 6
    %893 = vrot.lane.b32.xlu0 %v892, 64
    %v894 = vpop.permute.xlu0 %893
    %v896 = vsel %vm290, %v889, %v894
    %897 = vst.msk [vmem:[#allocation2 + $0x8] sm:$0x3] %vm292, %v889
    %898 = vrot.lane.b32.xlu0 %v886, 32
    %v899 = vpop.permute.xlu0 %898
    %901 = vst.msk [vmem:[#allocation3] sm:$0xc0] %vm297, %v899
    %v903 = vsel %vm153, %v896, 0
    %905 = vmatprep.subr.mxu0 0.0
    %906 = vmatpush1.msra.mxu0 0.0
    %907 = vmatprep.subr.mxu0 0.0
    %908 = vmatpush1.msra.mxu0 0.0
    %909 = vmatprep.subr.mxu0 0.0
    %910 = vmatpush1.msra.mxu0 0.0
    %911 = vmatprep.subr.mxu0 0.0
    %912 = vmatpush1.msra.mxu0 0.0
    %913 = vmatprep.subr.mxu0 0.0
    %914 = vmatpush1.msra.mxu0 0.0
    %915 = vmatprep.subr.mxu0 0.0
    %916 = vmatpush1.msra.mxu0 0.0
    %917 = vmatprep.subr.mxu0 0.0
    %918 = vmatpush1.msra.mxu0 0.0
    %919 = vmatprep.subr.mxu0 0.0
    %920 = vmatpush1.msra.mxu0 0.0
    %921 = vmatprep.subr.mxu0 %v152
    %922 = vmatpush1.msra.mxu0 %v151
    %923 = vmatprep.subr.mxu0 %v150
    %924 = vmatpush1.msra.mxu0 %v149
    %925 = vmatprep.subr.mxu0 %v148
    %926 = vmatpush1.msra.mxu0 %v147
    %927 = vmatprep.subr.mxu0 %v146
    %928 = vmatpush1.msra.mxu0 %v145
    %929 = vmatprep.subr.mxu0 %v144
    %930 = vmatpush1.msra.mxu0 %v143
    %931 = vmatprep.subr.mxu0 %v142
    %932 = vmatpush1.msra.mxu0 %v141
    %933 = vmatprep.subr.mxu0 %v140
    %934 = vmatpush1.msra.mxu0 %v139
    %935 = vmatprep.subr.mxu0 %v138
    %936 = vmatpush1.msra.mxu0 %v137
    %937 = vmatprep.subr.mxu0 0.0
    %938 = vmatpush2.msra.mxu0 0.0
    %939 = vmatprep.subr.mxu0 0.0
    %940 = vmatpush2.msra.mxu0 0.0
    %941 = vmatprep.subr.mxu0 0.0
    %942 = vmatpush2.msra.mxu0 0.0
    %943 = vmatprep.subr.mxu0 0.0
    %944 = vmatpush2.msra.mxu0 0.0
    %945 = vmatprep.subr.mxu0 0.0
    %946 = vmatpush2.msra.mxu0 0.0
    %947 = vmatprep.subr.mxu0 0.0
    %948 = vmatpush2.msra.mxu0 0.0
    %949 = vmatprep.subr.mxu0 0.0
    %950 = vmatpush2.msra.mxu0 0.0
    %951 = vmatprep.subr.mxu0 0.0
    %952 = vmatpush2.msra.mxu0 0.0
    %953 = vmatprep.subr.mxu0 0.0
    %954 = vmatpush2.msra.mxu0 0.0
    %955 = vmatprep.subr.mxu0 0.0
    %956 = vmatpush2.msra.mxu0 0.0
    %957 = vmatprep.subr.mxu0 0.0
    %958 = vmatpush2.msra.mxu0 0.0
    %959 = vmatprep.subr.mxu0 0.0
    %960 = vmatpush2.msra.mxu0 0.0
    %961 = vmatprep.subr.mxu0 0.0
    %962 = vmatpush2.msra.mxu0 0.0
    %963 = vmatprep.subr.mxu0 0.0
    %964 = vmatpush2.msra.mxu0 0.0
    %965 = vmatprep.subr.mxu0 0.0
    %966 = vmatpush2.msra.mxu0 0.0
    %967 = vmatprep.subr.mxu0 0.0
    %968 = vmatpush2.msra.mxu0 0.0
    %969 = vmatprep.mubr.f32.mxu0 0.0
    %970 = vmatmul.mubr.f32.gmra.mxu0 %v903
    %v971 = vpop.f32.mrf.mxu0
    %v972 = vadd.f32 0.0, %v971
    %v973 = vpop.f32.mrf.mxu0
    %v974 = vadd.f32 0.0, %v973
    %975 = vdwg.mxu0
    %v977 = vrot.slane %v972, 6
    %v979 = vadd.f32 %v133, %v977
    %v981 = vrot.slane %v974, 4
    %v983 = vadd.f32 %v129, %v981
    %v984 = vsub.f32 0.0, %v979
    %v985 = vmul.f32 %v984, 1.442695
    %v986 = vpow.pop %v985
    %v987 = vadd.f32 %v986, 1.0
    %v988 = vrcp.pop %v987
    %v989 = vmul.f32 1.0, %v988
    %v990 = vtanh.pop %v979
    %v992 = vrot.slane %v853, 6
    %v994 = vmul.f32 %v989, %v992
    %996 = vrot.lane.b32.xlu0 %v990, 64
    %v997 = vpop.permute.xlu0 %996
    %v999 = vmul.f32 %v989, %v997
    %1001 = vrot.lane.b32.xlu0 %v999, 32
    %v1002 = vpop.permute.xlu0 %1001
    %v1004 = vadd.f32 %v994, %v1002
    %v1005 = vtanh.pop %v1004
    %1007 = vrot.lane.b32.xlu0 %v1005, 64
    %v1008 = vpop.permute.xlu0 %1007
    %v1010 = vmul.f32 %v989, %v1008
    %v1011 = vsub.f32 0.0, %v983
    %v1012 = vmul.f32 %v1011, 1.442695
    %v1013 = vpow.pop %v1012
    %v1014 = vadd.f32 %v1013, 1.0
    %v1015 = vrcp.pop %v1014
    %v1016 = vmul.f32 1.0, %v1015
    %v1017 = vtanh.pop %v983
    %v1019 = vrot.slane %v880, 2
    %v1021 = vmul.f32 %v1016, %v1019
    %1023 = vrot.lane.b32.xlu0 %v1017, 64
    %v1024 = vpop.permute.xlu0 %1023
    %v1026 = vmul.f32 %v1016, %v1024
    %1028 = vrot.lane.b32.xlu0 %v1026, 32
    %v1029 = vpop.permute.xlu0 %1028
    %v1031 = vadd.f32 %v1021, %v1029
    %v1032 = vtanh.pop %v1031
    %1034 = vrot.lane.b32.xlu0 %v1032, 64
    %v1035 = vpop.permute.xlu0 %1034
    %v1037 = vmul.f32 %v1016, %v1035
    %1039 = vrot.lane.b32.xlu0 %v1010, 32
    %v1040 = vpop.permute.xlu0 %1039
    %v1043 = vrot.slane %v1037, 2
    %1044 = vrot.lane.b32.xlu0 %v1043, 64
    %v1045 = vpop.permute.xlu0 %1044
    %v1047 = vsel %vm290, %v1040, %v1045
    %1048 = vst.msk [vmem:[#allocation2 + $0x8] sm:$0xc] %vm445, %v1040
    %1049 = vrot.lane.b32.xlu0 %v1037, 32
    %v1050 = vpop.permute.xlu0 %1049
    %1052 = vst.msk [vmem:[#allocation3] sm:$0x30] %vm450, %v1050
    %v1054 = vrot.slane %v1047, 2
    %v1055 = vsel %vm153, %v1054, 0
    %1057 = vmatprep.subr.mxu0 0.0
    %1058 = vmatpush1.msra.mxu0 0.0
    %1059 = vmatprep.subr.mxu0 0.0
    %1060 = vmatpush1.msra.mxu0 0.0
    %1061 = vmatprep.subr.mxu0 0.0
    %1062 = vmatpush1.msra.mxu0 0.0
    %1063 = vmatprep.subr.mxu0 0.0
    %1064 = vmatpush1.msra.mxu0 0.0
    %1065 = vmatprep.subr.mxu0 0.0
    %1066 = vmatpush1.msra.mxu0 0.0
    %1067 = vmatprep.subr.mxu0 0.0
    %1068 = vmatpush1.msra.mxu0 0.0
    %1069 = vmatprep.subr.mxu0 0.0
    %1070 = vmatpush1.msra.mxu0 0.0
    %1071 = vmatprep.subr.mxu0 0.0
    %1072 = vmatpush1.msra.mxu0 0.0
    %1073 = vmatprep.subr.mxu0 %v152
    %1074 = vmatpush1.msra.mxu0 %v151
    %1075 = vmatprep.subr.mxu0 %v150
    %1076 = vmatpush1.msra.mxu0 %v149
    %1077 = vmatprep.subr.mxu0 %v148
    %1078 = vmatpush1.msra.mxu0 %v147
    %1079 = vmatprep.subr.mxu0 %v146
    %1080 = vmatpush1.msra.mxu0 %v145
    %1081 = vmatprep.subr.mxu0 %v144
    %1082 = vmatpush1.msra.mxu0 %v143
    %1083 = vmatprep.subr.mxu0 %v142
    %1084 = vmatpush1.msra.mxu0 %v141
    %1085 = vmatprep.subr.mxu0 %v140
    %1086 = vmatpush1.msra.mxu0 %v139
    %1087 = vmatprep.subr.mxu0 %v138
    %1088 = vmatpush1.msra.mxu0 %v137
    %1089 = vmatprep.subr.mxu0 0.0
    %1090 = vmatpush2.msra.mxu0 0.0
    %1091 = vmatprep.subr.mxu0 0.0
    %1092 = vmatpush2.msra.mxu0 0.0
    %1093 = vmatprep.subr.mxu0 0.0
    %1094 = vmatpush2.msra.mxu0 0.0
    %1095 = vmatprep.subr.mxu0 0.0
    %1096 = vmatpush2.msra.mxu0 0.0
    %1097 = vmatprep.subr.mxu0 0.0
    %1098 = vmatpush2.msra.mxu0 0.0
    %1099 = vmatprep.subr.mxu0 0.0
    %1100 = vmatpush2.msra.mxu0 0.0
    %1101 = vmatprep.subr.mxu0 0.0
    %1102 = vmatpush2.msra.mxu0 0.0
    %1103 = vmatprep.subr.mxu0 0.0
    %1104 = vmatpush2.msra.mxu0 0.0
    %1105 = vmatprep.subr.mxu0 0.0
    %1106 = vmatpush2.msra.mxu0 0.0
    %1107 = vmatprep.subr.mxu0 0.0
    %1108 = vmatpush2.msra.mxu0 0.0
    %1109 = vmatprep.subr.mxu0 0.0
    %1110 = vmatpush2.msra.mxu0 0.0
    %1111 = vmatprep.subr.mxu0 0.0
    %1112 = vmatpush2.msra.mxu0 0.0
    %1113 = vmatprep.subr.mxu0 0.0
    %1114 = vmatpush2.msra.mxu0 0.0
    %1115 = vmatprep.subr.mxu0 0.0
    %1116 = vmatpush2.msra.mxu0 0.0
    %1117 = vmatprep.subr.mxu0 0.0
    %1118 = vmatpush2.msra.mxu0 0.0
    %1119 = vmatprep.subr.mxu0 0.0
    %1120 = vmatpush2.msra.mxu0 0.0
    %1121 = vmatprep.mubr.f32.mxu0 0.0
    %1122 = vmatmul.mubr.f32.gmra.mxu0 %v1055
    %v1123 = vpop.f32.mrf.mxu0
    %v1124 = vadd.f32 0.0, %v1123
    %v1125 = vpop.f32.mrf.mxu0
    %v1126 = vadd.f32 0.0, %v1125
    %1127 = vdwg.mxu0
    %v1129 = vrot.slane %v1124, 4
    %v1131 = vadd.f32 %v133, %v1129
    %v1133 = vrot.slane %v1126, 6
    %v1135 = vadd.f32 %v129, %v1133
    %v1136 = vsub.f32 0.0, %v1131
    %v1137 = vmul.f32 %v1136, 1.442695
    %v1138 = vpow.pop %v1137
    %v1139 = vadd.f32 %v1138, 1.0
    %v1140 = vrcp.pop %v1139
    %v1141 = vmul.f32 1.0, %v1140
    %v1142 = vtanh.pop %v1131
    %v1144 = vrot.slane %v1004, 6
    %v1146 = vmul.f32 %v1141, %v1144
    %1148 = vrot.lane.b32.xlu0 %v1142, 64
    %v1149 = vpop.permute.xlu0 %1148
    %v1151 = vmul.f32 %v1141, %v1149
    %1153 = vrot.lane.b32.xlu0 %v1151, 32
    %v1154 = vpop.permute.xlu0 %1153
    %v1156 = vadd.f32 %v1146, %v1154
    %v1157 = vtanh.pop %v1156
    %1159 = vrot.lane.b32.xlu0 %v1157, 64
    %v1160 = vpop.permute.xlu0 %1159
    %v1162 = vmul.f32 %v1141, %v1160
    %v1163 = vsub.f32 0.0, %v1135
    %v1164 = vmul.f32 %v1163, 1.442695
    %v1165 = vpow.pop %v1164
    %v1166 = vadd.f32 %v1165, 1.0
    %v1167 = vrcp.pop %v1166
    %v1168 = vmul.f32 1.0, %v1167
    %v1169 = vtanh.pop %v1135
    %v1171 = vrot.slane %v1031, 2
    %v1173 = vmul.f32 %v1168, %v1171
    %1175 = vrot.lane.b32.xlu0 %v1169, 64
    %v1176 = vpop.permute.xlu0 %1175
    %v1178 = vmul.f32 %v1168, %v1176
    %1180 = vrot.lane.b32.xlu0 %v1178, 32
    %v1181 = vpop.permute.xlu0 %1180
    %v1183 = vadd.f32 %v1173, %v1181
    %v1184 = vtanh.pop %v1183
    %1186 = vrot.lane.b32.xlu0 %v1184, 64
    %v1187 = vpop.permute.xlu0 %1186
    %v1189 = vmul.f32 %v1168, %v1187
    %1191 = vrot.lane.b32.xlu0 %v1162, 32
    %v1192 = vpop.permute.xlu0 %1191
    %v1195 = vrot.slane %v1189, 6
    %1196 = vrot.lane.b32.xlu0 %v1195, 64
    %v1197 = vpop.permute.xlu0 %1196
    %v1199 = vsel %vm290, %v1192, %v1197
    %1200 = vst.msk [vmem:[#allocation2 + $0x8] sm:$0x30] %vm450, %v1192
    %1201 = vrot.lane.b32.xlu0 %v1189, 32
    %v1202 = vpop.permute.xlu0 %1201
    %1204 = vst.msk [vmem:[#allocation3] sm:$0xc] %vm445, %v1202
    %v1206 = vrot.slane %v1199, 4
    %v1207 = vsel %vm153, %v1206, 0
    %1209 = vmatprep.subr.mxu0 0.0
    %1210 = vmatpush1.msra.mxu0 0.0
    %1211 = vmatprep.subr.mxu0 0.0
    %1212 = vmatpush1.msra.mxu0 0.0
    %1213 = vmatprep.subr.mxu0 0.0
    %1214 = vmatpush1.msra.mxu0 0.0
    %1215 = vmatprep.subr.mxu0 0.0
    %1216 = vmatpush1.msra.mxu0 0.0
    %1217 = vmatprep.subr.mxu0 0.0
    %1218 = vmatpush1.msra.mxu0 0.0
    %1219 = vmatprep.subr.mxu0 0.0
    %1220 = vmatpush1.msra.mxu0 0.0
    %1221 = vmatprep.subr.mxu0 0.0
    %1222 = vmatpush1.msra.mxu0 0.0
    %1223 = vmatprep.subr.mxu0 0.0
    %1224 = vmatpush1.msra.mxu0 0.0
    %1225 = vmatprep.subr.mxu0 %v152
    %1226 = vmatpush1.msra.mxu0 %v151
    %1227 = vmatprep.subr.mxu0 %v150
    %1228 = vmatpush1.msra.mxu0 %v149
    %1229 = vmatprep.subr.mxu0 %v148
    %1230 = vmatpush1.msra.mxu0 %v147
    %1231 = vmatprep.subr.mxu0 %v146
    %1232 = vmatpush1.msra.mxu0 %v145
    %1233 = vmatprep.subr.mxu0 %v144
    %1234 = vmatpush1.msra.mxu0 %v143
    %1235 = vmatprep.subr.mxu0 %v142
    %1236 = vmatpush1.msra.mxu0 %v141
    %1237 = vmatprep.subr.mxu0 %v140
    %1238 = vmatpush1.msra.mxu0 %v139
    %1239 = vmatprep.subr.mxu0 %v138
    %1240 = vmatpush1.msra.mxu0 %v137
    %1241 = vmatprep.subr.mxu0 0.0
    %1242 = vmatpush2.msra.mxu0 0.0
    %1243 = vmatprep.subr.mxu0 0.0
    %1244 = vmatpush2.msra.mxu0 0.0
    %1245 = vmatprep.subr.mxu0 0.0
    %1246 = vmatpush2.msra.mxu0 0.0
    %1247 = vmatprep.subr.mxu0 0.0
    %1248 = vmatpush2.msra.mxu0 0.0
    %1249 = vmatprep.subr.mxu0 0.0
    %1250 = vmatpush2.msra.mxu0 0.0
    %1251 = vmatprep.subr.mxu0 0.0
    %1252 = vmatpush2.msra.mxu0 0.0
    %1253 = vmatprep.subr.mxu0 0.0
    %1254 = vmatpush2.msra.mxu0 0.0
    %1255 = vmatprep.subr.mxu0 0.0
    %1256 = vmatpush2.msra.mxu0 0.0
    %1257 = vmatprep.subr.mxu0 0.0
    %1258 = vmatpush2.msra.mxu0 0.0
    %1259 = vmatprep.subr.mxu0 0.0
    %1260 = vmatpush2.msra.mxu0 0.0
    %1261 = vmatprep.subr.mxu0 0.0
    %1262 = vmatpush2.msra.mxu0 0.0
    %1263 = vmatprep.subr.mxu0 0.0
    %1264 = vmatpush2.msra.mxu0 0.0
    %1265 = vmatprep.subr.mxu0 0.0
    %1266 = vmatpush2.msra.mxu0 0.0
    %1267 = vmatprep.subr.mxu0 0.0
    %1268 = vmatpush2.msra.mxu0 0.0
    %1269 = vmatprep.subr.mxu0 0.0
    %1270 = vmatpush2.msra.mxu0 0.0
    %1271 = vmatprep.subr.mxu0 0.0
    %1272 = vmatpush2.msra.mxu0 0.0
    %1273 = vmatprep.mubr.f32.mxu0 0.0
    %1274 = vmatmul.mubr.f32.gmra.mxu0 %v1207
    %v1275 = vpop.f32.mrf.mxu0
    %v1276 = vadd.f32 0.0, %v1275
    %v1277 = vpop.f32.mrf.mxu0
    %v1278 = vadd.f32 0.0, %v1277
    %1279 = vdwg.mxu0
    %v1281 = vrot.slane %v1276, 2
    %v1283 = vadd.f32 %v133, %v1281
    %v1284 = vadd.f32 %v129, %v1278
    %v1285 = vsub.f32 0.0, %v1283
    %v1286 = vmul.f32 %v1285, 1.442695
    %v1287 = vpow.pop %v1286
    %v1288 = vadd.f32 %v1287, 1.0
    %v1289 = vrcp.pop %v1288
    %v1290 = vmul.f32 1.0, %v1289
    %v1291 = vtanh.pop %v1283
    %v1293 = vrot.slane %v1156, 6
    %v1295 = vmul.f32 %v1290, %v1293
    %1297 = vrot.lane.b32.xlu0 %v1291, 64
    %v1298 = vpop.permute.xlu0 %1297
    %v1300 = vmul.f32 %v1290, %v1298
    %1302 = vrot.lane.b32.xlu0 %v1300, 32
    %v1303 = vpop.permute.xlu0 %1302
    %v1305 = vadd.f32 %v1295, %v1303
    %v1306 = vtanh.pop %v1305
    %1308 = vrot.lane.b32.xlu0 %v1306, 64
    %v1309 = vpop.permute.xlu0 %1308
    %v1311 = vmul.f32 %v1290, %v1309
    %v1312 = vsub.f32 0.0, %v1284
    %v1313 = vmul.f32 %v1312, 1.442695
    %v1314 = vpow.pop %v1313
    %v1315 = vadd.f32 %v1314, 1.0
    %v1316 = vrcp.pop %v1315
    %v1317 = vmul.f32 1.0, %v1316
    %v1318 = vtanh.pop %v1284
    %v1320 = vrot.slane %v1183, 2
    %v1322 = vmul.f32 %v1317, %v1320
    %1324 = vrot.lane.b32.xlu0 %v1318, 64
    %v1325 = vpop.permute.xlu0 %1324
    %v1327 = vmul.f32 %v1317, %v1325
    %1329 = vrot.lane.b32.xlu0 %v1327, 32
    %v1330 = vpop.permute.xlu0 %1329
    %v1332 = vadd.f32 %v1322, %v1330
    %v1333 = vtanh.pop %v1332
    %1335 = vrot.lane.b32.xlu0 %v1333, 64
    %v1336 = vpop.permute.xlu0 %1335
    %v1338 = vmul.f32 %v1317, %v1336
    %1340 = vrot.lane.b32.xlu0 %v1311, 32
    %v1341 = vpop.permute.xlu0 %1340
    %1343 = vst.msk [vmem:[#allocation2 + $0x8] sm:$0xc0] %vm297, %v1341
    %1345 = vrot.lane.b32.xlu0 %v1338, 32
    %v1346 = vpop.permute.xlu0 %1345
    %1348 = vst.msk [vmem:[#allocation3] sm:$0x3] %vm292, %v1346
    %v1349 = vld [vmem:[#allocation6 + $0xe0] sm:$0xff]
    %v1350 = vld [vmem:[#allocation6 + $0xe8] sm:$0xff]
    %v1351 = vld [vmem:[#allocation6 + $0xf0] sm:$0xff]
    %v1352 = vld [vmem:[#allocation6 + $0xf8] sm:$0xff]
    %v1353 = vld [vmem:[#allocation6 + $0x100] sm:$0xff]
    %v1354 = vld [vmem:[#allocation6 + $0x108] sm:$0xff]
    %v1355 = vld [vmem:[#allocation6 + $0x110] sm:$0xff]
    %v1356 = vld [vmem:[#allocation6 + $0x118] sm:$0xff]
    %v1357 = vld [vmem:[#allocation6 + $0x120] sm:$0xff]
    %v1358 = vld [vmem:[#allocation6 + $0x128] sm:$0xff]
    %v1359 = vld [vmem:[#allocation6 + $0x130] sm:$0xff]
    %v1360 = vld [vmem:[#allocation6 + $0x138] sm:$0xff]
    %v1361 = vld [vmem:[#allocation6 + $0x140] sm:$0xff]
    %v1362 = vld [vmem:[#allocation6 + $0x148] sm:$0xff]
    %v1363 = vld [vmem:[#allocation6 + $0x150] sm:$0xff]
    %v1364 = vld [vmem:[#allocation6 + $0x158] sm:$0xff]
    %v1365 = vld [vmem:[#allocation2] sm:$0xff]
    %v1366 = vld [vmem:[#allocation2 + $0x8] sm:$0xff]
    %v1367 = vld [vmem:[#allocation3] sm:$0xff]
    %v1368 = vld [vmem:[#allocation3 + $0x8] sm:$0xff]
    %v1370 = vsel %vm290, %v1367, 0
    %v1373 = vsel %vm290, %v1368, 0
    %1375 = vmatprep.subr.mxu0 0.0
    %1376 = vmatpush1.msra.mxu0 0.0
    %1377 = vmatprep.subr.mxu0 0.0
    %1378 = vmatpush1.msra.mxu0 0.0
    %1379 = vmatprep.subr.mxu0 0.0
    %1380 = vmatpush1.msra.mxu0 0.0
    %1381 = vmatprep.subr.mxu0 0.0
    %1382 = vmatpush1.msra.mxu0 0.0
    %1383 = vmatprep.subr.mxu0 0.0
    %1384 = vmatpush1.msra.mxu0 0.0
    %1385 = vmatprep.subr.mxu0 0.0
    %1386 = vmatpush1.msra.mxu0 0.0
    %1387 = vmatprep.subr.mxu0 0.0
    %1388 = vmatpush1.msra.mxu0 0.0
    %1389 = vmatprep.subr.mxu0 0.0
    %1390 = vmatpush1.msra.mxu0 0.0
    %1391 = vmatprep.subr.mxu0 0.0
    %1392 = vmatpush1.msra.mxu0 0.0
    %1393 = vmatprep.subr.mxu0 0.0
    %1394 = vmatpush1.msra.mxu0 0.0
    %1395 = vmatprep.subr.mxu0 0.0
    %1396 = vmatpush1.msra.mxu0 0.0
    %1397 = vmatprep.subr.mxu0 0.0
    %1398 = vmatpush1.msra.mxu0 0.0
    %1399 = vmatprep.subr.mxu0 %v1364
    %1400 = vmatpush1.msra.mxu0 %v1363
    %1401 = vmatprep.subr.mxu0 %v1362
    %1402 = vmatpush1.msra.mxu0 %v1361
    %1403 = vmatprep.subr.mxu0 %v1360
    %1404 = vmatpush1.msra.mxu0 %v1359
    %1405 = vmatprep.subr.mxu0 %v1358
    %1406 = vmatpush1.msra.mxu0 %v1357
    %1407 = vmatprep.subr.mxu0 0.0
    %1408 = vmatpush2.msra.mxu0 0.0
    %1409 = vmatprep.subr.mxu0 0.0
    %1410 = vmatpush2.msra.mxu0 0.0
    %1411 = vmatprep.subr.mxu0 0.0
    %1412 = vmatpush2.msra.mxu0 0.0
    %1413 = vmatprep.subr.mxu0 0.0
    %1414 = vmatpush2.msra.mxu0 0.0
    %1415 = vmatprep.subr.mxu0 0.0
    %1416 = vmatpush2.msra.mxu0 0.0
    %1417 = vmatprep.subr.mxu0 0.0
    %1418 = vmatpush2.msra.mxu0 0.0
    %1419 = vmatprep.subr.mxu0 0.0
    %1420 = vmatpush2.msra.mxu0 0.0
    %1421 = vmatprep.subr.mxu0 0.0
    %1422 = vmatpush2.msra.mxu0 0.0
    %1423 = vmatprep.subr.mxu0 0.0
    %1424 = vmatpush2.msra.mxu0 0.0
    %1425 = vmatprep.subr.mxu0 0.0
    %1426 = vmatpush2.msra.mxu0 0.0
    %1427 = vmatprep.subr.mxu0 0.0
    %1428 = vmatpush2.msra.mxu0 0.0
    %1429 = vmatprep.subr.mxu0 0.0
    %1430 = vmatpush2.msra.mxu0 0.0
    %1431 = vmatprep.subr.mxu0 0.0
    %1432 = vmatpush2.msra.mxu0 0.0
    %1433 = vmatprep.subr.mxu0 0.0
    %1434 = vmatpush2.msra.mxu0 0.0
    %1435 = vmatprep.subr.mxu0 0.0
    %1436 = vmatpush2.msra.mxu0 0.0
    %1437 = vmatprep.subr.mxu0 0.0
    %1438 = vmatpush2.msra.mxu0 0.0
    %1439 = vmatprep.mubr.f32.mxu0 0.0
    %1440 = vmatmul.mubr.f32.gmra.mxu0 %v1370
    %v1441 = vpop.f32.mrf.mxu0
    %v1442 = vadd.f32 0.0, %v1441
    %v1443 = vpop.f32.mrf.mxu0
    %v1444 = vadd.f32 0.0, %v1443
    %1445 = vmatprep.mubr.f32.mxu0 0.0
    %1446 = vmatmul.mubr.f32.gmra.mxu0 %v1373
    %v1447 = vpop.f32.mrf.mxu0
    %v1448 = vadd.f32 0.0, %v1447
    %v1449 = vpop.f32.mrf.mxu0
    %v1450 = vadd.f32 0.0, %v1449
    %1451 = vdwg.mxu0
    %v1453 = vsel %vm290, %v1365, 0
    %v1456 = vsel %vm290, %v1366, 0
    %1458 = vmatprep.subr.mxu0 0.0
    %1459 = vmatpush1.msra.mxu0 0.0
    %1460 = vmatprep.subr.mxu0 0.0
    %1461 = vmatpush1.msra.mxu0 0.0
    %1462 = vmatprep.subr.mxu0 0.0
    %1463 = vmatpush1.msra.mxu0 0.0
    %1464 = vmatprep.subr.mxu0 0.0
    %1465 = vmatpush1.msra.mxu0 0.0
    %1466 = vmatprep.subr.mxu0 0.0
    %1467 = vmatpush1.msra.mxu0 0.0
    %1468 = vmatprep.subr.mxu0 0.0
    %1469 = vmatpush1.msra.mxu0 0.0
    %1470 = vmatprep.subr.mxu0 0.0
    %1471 = vmatpush1.msra.mxu0 0.0
    %1472 = vmatprep.subr.mxu0 0.0
    %1473 = vmatpush1.msra.mxu0 0.0
    %1474 = vmatprep.subr.mxu0 0.0
    %1475 = vmatpush1.msra.mxu0 0.0
    %1476 = vmatprep.subr.mxu0 0.0
    %1477 = vmatpush1.msra.mxu0 0.0
    %1478 = vmatprep.subr.mxu0 0.0
    %1479 = vmatpush1.msra.mxu0 0.0
    %1480 = vmatprep.subr.mxu0 0.0
    %1481 = vmatpush1.msra.mxu0 0.0
    %1482 = vmatprep.subr.mxu0 %v1356
    %1483 = vmatpush1.msra.mxu0 %v1355
    %1484 = vmatprep.subr.mxu0 %v1354
    %1485 = vmatpush1.msra.mxu0 %v1353
    %1486 = vmatprep.subr.mxu0 %v1352
    %1487 = vmatpush1.msra.mxu0 %v1351
    %1488 = vmatprep.subr.mxu0 %v1350
    %1489 = vmatpush1.msra.mxu0 %v1349
    %1490 = vmatprep.subr.mxu0 0.0
    %1491 = vmatpush2.msra.mxu0 0.0
    %1492 = vmatprep.subr.mxu0 0.0
    %1493 = vmatpush2.msra.mxu0 0.0
    %1494 = vmatprep.subr.mxu0 0.0
    %1495 = vmatpush2.msra.mxu0 0.0
    %1496 = vmatprep.subr.mxu0 0.0
    %1497 = vmatpush2.msra.mxu0 0.0
    %1498 = vmatprep.subr.mxu0 0.0
    %1499 = vmatpush2.msra.mxu0 0.0
    %1500 = vmatprep.subr.mxu0 0.0
    %1501 = vmatpush2.msra.mxu0 0.0
    %1502 = vmatprep.subr.mxu0 0.0
    %1503 = vmatpush2.msra.mxu0 0.0
    %1504 = vmatprep.subr.mxu0 0.0
    %1505 = vmatpush2.msra.mxu0 0.0
    %1506 = vmatprep.subr.mxu0 0.0
    %1507 = vmatpush2.msra.mxu0 0.0
    %1508 = vmatprep.subr.mxu0 0.0
    %1509 = vmatpush2.msra.mxu0 0.0
    %1510 = vmatprep.subr.mxu0 0.0
    %1511 = vmatpush2.msra.mxu0 0.0
    %1512 = vmatprep.subr.mxu0 0.0
    %1513 = vmatpush2.msra.mxu0 0.0
    %1514 = vmatprep.subr.mxu0 0.0
    %1515 = vmatpush2.msra.mxu0 0.0
    %1516 = vmatprep.subr.mxu0 0.0
    %1517 = vmatpush2.msra.mxu0 0.0
    %1518 = vmatprep.subr.mxu0 0.0
    %1519 = vmatpush2.msra.mxu0 0.0
    %1520 = vmatprep.subr.mxu0 0.0
    %1521 = vmatpush2.msra.mxu0 0.0
    %1522 = vmatprep.mubr.f32.mxu0 0.0
    %1523 = vmatmul.mubr.f32.gmra.mxu0 %v1453
    %v1524 = vpop.f32.mrf.mxu0
    %v1525 = vadd.f32 %v1442, %v1524
    %v1526 = vpop.f32.mrf.mxu0
    %v1527 = vadd.f32 %v1444, %v1526
    %1528 = vmatprep.mubr.f32.mxu0 0.0
    %1529 = vmatmul.mubr.f32.gmra.mxu0 %v1456
    %v1530 = vpop.f32.mrf.mxu0
    %v1531 = vadd.f32 %v1448, %v1530
    %v1532 = vpop.f32.mrf.mxu0
    %v1533 = vadd.f32 %v1450, %v1532
    %1534 = vdwg.mxu0
    %s1535 = scalar_lea.vmem [#allocation6], 1072
    %v1536 = vld [vmem:[%s1535] ss:$8 sm:$0x3]
    %v1538 = vlaneseq
    %v1539 = vshrl.u32 %v1538, 7
    %v1540 = vsub.s32 0, %v1539
    %v1541 = vrot.slane %v1536, %v1540
    %v1542 = vlaneseq
    %v1543 = vshrl.u32 %v1542, 7
    %v1544 = vsub.s32 1, %v1543
    %v1545 = vrot.slane %v1536, %v1544
    %v1548 = vadd.f32 %v1525, %v1541
    %v1549 = vadd.f32 %v1527, %v1545
    %v1550 = vadd.f32 %v1531, %v1541
    %v1551 = vadd.f32 %v1533, %v1545
    %v1552 = vld [vmem:[#allocation6 + $0x160] sm:$0xff]
    %v1553 = vld [vmem:[#allocation6 + $0x168] sm:$0xff]
    %v1554 = vld [vmem:[#allocation6 + $0x170] sm:$0xff]
    %v1555 = vld [vmem:[#allocation6 + $0x178] sm:$0xff]
    %v1556 = vld [vmem:[#allocation6 + $0x180] sm:$0xff]
    %v1557 = vld [vmem:[#allocation6 + $0x188] sm:$0xff]
    %v1558 = vld [vmem:[#allocation6 + $0x190] sm:$0xff]
    %v1559 = vld [vmem:[#allocation6 + $0x198] sm:$0xff]
    %v1560 = vld [vmem:[#allocation6 + $0x1a0] sm:$0xff]
    %v1561 = vld [vmem:[#allocation6 + $0x1a8] sm:$0xff]
    %v1562 = vld [vmem:[#allocation6 + $0x1b0] sm:$0xff]
    %v1563 = vld [vmem:[#allocation6 + $0x1b8] sm:$0xff]
    %v1564 = vld [vmem:[#allocation6 + $0x1c0] sm:$0xff]
    %v1565 = vld [vmem:[#allocation6 + $0x1c8] sm:$0xff]
    %v1566 = vld [vmem:[#allocation6 + $0x1d0] sm:$0xff]
    %v1567 = vld [vmem:[#allocation6 + $0x1d8] sm:$0xff]
    %1568 = vmatprep.subr.mxu0 0.0
    %1569 = vmatpush1.msra.mxu0 0.0
    %1570 = vmatprep.subr.mxu0 0.0
    %1571 = vmatpush1.msra.mxu0 0.0
    %1572 = vmatprep.subr.mxu0 0.0
    %1573 = vmatpush1.msra.mxu0 0.0
    %1574 = vmatprep.subr.mxu0 0.0
    %1575 = vmatpush1.msra.mxu0 0.0
    %1576 = vmatprep.subr.mxu0 0.0
    %1577 = vmatpush1.msra.mxu0 0.0
    %1578 = vmatprep.subr.mxu0 0.0
    %1579 = vmatpush1.msra.mxu0 0.0
    %1580 = vmatprep.subr.mxu0 0.0
    %1581 = vmatpush1.msra.mxu0 0.0
    %1582 = vmatprep.subr.mxu0 0.0
    %1583 = vmatpush1.msra.mxu0 0.0
    %1584 = vmatprep.subr.mxu0 %v1567
    %1585 = vmatpush1.msra.mxu0 %v1566
    %1586 = vmatprep.subr.mxu0 %v1565
    %1587 = vmatpush1.msra.mxu0 %v1564
    %1588 = vmatprep.subr.mxu0 %v1563
    %1589 = vmatpush1.msra.mxu0 %v1562
    %1590 = vmatprep.subr.mxu0 %v1561
    %1591 = vmatpush1.msra.mxu0 %v1560
    %1592 = vmatprep.subr.mxu0 %v1559
    %1593 = vmatpush1.msra.mxu0 %v1558
    %1594 = vmatprep.subr.mxu0 %v1557
    %1595 = vmatpush1.msra.mxu0 %v1556
    %1596 = vmatprep.subr.mxu0 %v1555
    %1597 = vmatpush1.msra.mxu0 %v1554
    %1598 = vmatprep.subr.mxu0 %v1553
    %1599 = vmatpush1.msra.mxu0 %v1552
    %1600 = vmatprep.subr.mxu0 0.0
    %1601 = vmatpush2.msra.mxu0 0.0
    %1602 = vmatprep.subr.mxu0 0.0
    %1603 = vmatpush2.msra.mxu0 0.0
    %1604 = vmatprep.subr.mxu0 0.0
    %1605 = vmatpush2.msra.mxu0 0.0
    %1606 = vmatprep.subr.mxu0 0.0
    %1607 = vmatpush2.msra.mxu0 0.0
    %1608 = vmatprep.subr.mxu0 0.0
    %1609 = vmatpush2.msra.mxu0 0.0
    %1610 = vmatprep.subr.mxu0 0.0
    %1611 = vmatpush2.msra.mxu0 0.0
    %1612 = vmatprep.subr.mxu0 0.0
    %1613 = vmatpush2.msra.mxu0 0.0
    %1614 = vmatprep.subr.mxu0 0.0
    %1615 = vmatpush2.msra.mxu0 0.0
    %1616 = vmatprep.subr.mxu0 0.0
    %1617 = vmatpush2.msra.mxu0 0.0
    %1618 = vmatprep.subr.mxu0 0.0
    %1619 = vmatpush2.msra.mxu0 0.0
    %1620 = vmatprep.subr.mxu0 0.0
    %1621 = vmatpush2.msra.mxu0 0.0
    %1622 = vmatprep.subr.mxu0 0.0
    %1623 = vmatpush2.msra.mxu0 0.0
    %1624 = vmatprep.subr.mxu0 0.0
    %1625 = vmatpush2.msra.mxu0 0.0
    %1626 = vmatprep.subr.mxu0 0.0
    %1627 = vmatpush2.msra.mxu0 0.0
    %1628 = vmatprep.subr.mxu0 0.0
    %1629 = vmatpush2.msra.mxu0 0.0
    %1630 = vmatprep.subr.mxu0 0.0
    %1631 = vmatpush2.msra.mxu0 0.0
    %1632 = vmatprep.mubr.f32.mxu0 0.0
    %1633 = vmatmul.mubr.f32.gmra.mxu0 %v155
    %v1634 = vpop.f32.mrf.mxu0
    %v1635 = vadd.f32 0.0, %v1634
    %v1636 = vpop.f32.mrf.mxu0
    %v1637 = vadd.f32 0.0, %v1636
    %1638 = vdwg.mxu0
    %v1639 = vadd.f32 %v1548, %v1635
    %v1641 = vrot.slane %v1637, 2
    %v1643 = vadd.f32 %v1551, %v1641
    %v1644 = vsub.f32 0.0, %v1639
    %v1645 = vmul.f32 %v1644, 1.442695
    %v1646 = vpow.pop %v1645
    %v1647 = vadd.f32 %v1646, 1.0
    %v1648 = vrcp.pop %v1647
    %v1649 = vmul.f32 1.0, %v1648
    %v1650 = vtanh.pop %v1639
    %v1651 = vmul.f32 %v1649, 0.0
    %1653 = vrot.lane.b32.xlu0 %v1650, 64
    %v1654 = vpop.permute.xlu0 %1653
    %v1656 = vmul.f32 %v1649, %v1654
    %1658 = vrot.lane.b32.xlu0 %v1656, 32
    %v1659 = vpop.permute.xlu0 %1658
    %v1661 = vadd.f32 %v1651, %v1659
    %v1662 = vtanh.pop %v1661
    %1664 = vrot.lane.b32.xlu0 %v1662, 64
    %v1665 = vpop.permute.xlu0 %1664
    %v1667 = vmul.f32 %v1649, %v1665
    %v1668 = vsub.f32 0.0, %v1643
    %v1669 = vmul.f32 %v1668, 1.442695
    %v1670 = vpow.pop %v1669
    %v1671 = vadd.f32 %v1670, 1.0
    %v1672 = vrcp.pop %v1671
    %v1673 = vmul.f32 1.0, %v1672
    %v1674 = vtanh.pop %v1643
    %v1675 = vmul.f32 %v1673, 0.0
    %1677 = vrot.lane.b32.xlu0 %v1674, 64
    %v1678 = vpop.permute.xlu0 %1677
    %v1680 = vmul.f32 %v1673, %v1678
    %1682 = vrot.lane.b32.xlu0 %v1680, 32
    %v1683 = vpop.permute.xlu0 %1682
    %v1685 = vadd.f32 %v1675, %v1683
    %v1686 = vtanh.pop %v1685
    %1688 = vrot.lane.b32.xlu0 %v1686, 64
    %v1689 = vpop.permute.xlu0 %1688
    %v1691 = vmul.f32 %v1673, %v1689
    %1693 = vrot.lane.b32.xlu0 %v1667, 32
    %v1694 = vpop.permute.xlu0 %1693
    %v1697 = vrot.slane %v1691, 6
    %1698 = vrot.lane.b32.xlu0 %v1697, 64
    %v1699 = vpop.permute.xlu0 %1698
    %v1701 = vsel %vm290, %v1694, %v1699
    %1702 = vst.msk [vmem:[#allocation4] sm:$0x3] %vm292, %v1694
    %1703 = vrot.lane.b32.xlu0 %v1691, 32
    %v1704 = vpop.permute.xlu0 %1703
    %1706 = vst.msk [vmem:[#allocation5 + $0x8] sm:$0xc0] %vm297, %v1704
    %v1708 = vsel %vm153, %v1701, 0
    %1710 = vmatprep.subr.mxu0 0.0
    %1711 = vmatpush1.msra.mxu0 0.0
    %1712 = vmatprep.subr.mxu0 0.0
    %1713 = vmatpush1.msra.mxu0 0.0
    %1714 = vmatprep.subr.mxu0 0.0
    %1715 = vmatpush1.msra.mxu0 0.0
    %1716 = vmatprep.subr.mxu0 0.0
    %1717 = vmatpush1.msra.mxu0 0.0
    %1718 = vmatprep.subr.mxu0 0.0
    %1719 = vmatpush1.msra.mxu0 0.0
    %1720 = vmatprep.subr.mxu0 0.0
    %1721 = vmatpush1.msra.mxu0 0.0
    %1722 = vmatprep.subr.mxu0 0.0
    %1723 = vmatpush1.msra.mxu0 0.0
    %1724 = vmatprep.subr.mxu0 0.0
    %1725 = vmatpush1.msra.mxu0 0.0
    %1726 = vmatprep.subr.mxu0 %v1567
    %1727 = vmatpush1.msra.mxu0 %v1566
    %1728 = vmatprep.subr.mxu0 %v1565
    %1729 = vmatpush1.msra.mxu0 %v1564
    %1730 = vmatprep.subr.mxu0 %v1563
    %1731 = vmatpush1.msra.mxu0 %v1562
    %1732 = vmatprep.subr.mxu0 %v1561
    %1733 = vmatpush1.msra.mxu0 %v1560
    %1734 = vmatprep.subr.mxu0 %v1559
    %1735 = vmatpush1.msra.mxu0 %v1558
    %1736 = vmatprep.subr.mxu0 %v1557
    %1737 = vmatpush1.msra.mxu0 %v1556
    %1738 = vmatprep.subr.mxu0 %v1555
    %1739 = vmatpush1.msra.mxu0 %v1554
    %1740 = vmatprep.subr.mxu0 %v1553
    %1741 = vmatpush1.msra.mxu0 %v1552
    %1742 = vmatprep.subr.mxu0 0.0
    %1743 = vmatpush2.msra.mxu0 0.0
    %1744 = vmatprep.subr.mxu0 0.0
    %1745 = vmatpush2.msra.mxu0 0.0
    %1746 = vmatprep.subr.mxu0 0.0
    %1747 = vmatpush2.msra.mxu0 0.0
    %1748 = vmatprep.subr.mxu0 0.0
    %1749 = vmatpush2.msra.mxu0 0.0
    %1750 = vmatprep.subr.mxu0 0.0
    %1751 = vmatpush2.msra.mxu0 0.0
    %1752 = vmatprep.subr.mxu0 0.0
    %1753 = vmatpush2.msra.mxu0 0.0
    %1754 = vmatprep.subr.mxu0 0.0
    %1755 = vmatpush2.msra.mxu0 0.0
    %1756 = vmatprep.subr.mxu0 0.0
    %1757 = vmatpush2.msra.mxu0 0.0
    %1758 = vmatprep.subr.mxu0 0.0
    %1759 = vmatpush2.msra.mxu0 0.0
    %1760 = vmatprep.subr.mxu0 0.0
    %1761 = vmatpush2.msra.mxu0 0.0
    %1762 = vmatprep.subr.mxu0 0.0
    %1763 = vmatpush2.msra.mxu0 0.0
    %1764 = vmatprep.subr.mxu0 0.0
    %1765 = vmatpush2.msra.mxu0 0.0
    %1766 = vmatprep.subr.mxu0 0.0
    %1767 = vmatpush2.msra.mxu0 0.0
    %1768 = vmatprep.subr.mxu0 0.0
    %1769 = vmatpush2.msra.mxu0 0.0
    %1770 = vmatprep.subr.mxu0 0.0
    %1771 = vmatpush2.msra.mxu0 0.0
    %1772 = vmatprep.subr.mxu0 0.0
    %1773 = vmatpush2.msra.mxu0 0.0
    %1774 = vmatprep.mubr.f32.mxu0 0.0
    %1775 = vmatmul.mubr.f32.gmra.mxu0 %v1708
    %v1776 = vpop.f32.mrf.mxu0
    %v1777 = vadd.f32 0.0, %v1776
    %v1778 = vpop.f32.mrf.mxu0
    %v1779 = vadd.f32 0.0, %v1778
    %1780 = vdwg.mxu0
    %v1782 = vrot.slane %v1777, 6
    %v1784 = vadd.f32 %v1548, %v1782
    %v1786 = vrot.slane %v1779, 4
    %v1788 = vadd.f32 %v1551, %v1786
    %v1789 = vsub.f32 0.0, %v1784
    %v1790 = vmul.f32 %v1789, 1.442695
    %v1791 = vpow.pop %v1790
    %v1792 = vadd.f32 %v1791, 1.0
    %v1793 = vrcp.pop %v1792
    %v1794 = vmul.f32 1.0, %v1793
    %v1795 = vtanh.pop %v1784
    %v1797 = vrot.slane %v1661, 6
    %v1799 = vmul.f32 %v1794, %v1797
    %1801 = vrot.lane.b32.xlu0 %v1795, 64
    %v1802 = vpop.permute.xlu0 %1801
    %v1804 = vmul.f32 %v1794, %v1802
    %1806 = vrot.lane.b32.xlu0 %v1804, 32
    %v1807 = vpop.permute.xlu0 %1806
    %v1809 = vadd.f32 %v1799, %v1807
    %v1810 = vtanh.pop %v1809
    %1812 = vrot.lane.b32.xlu0 %v1810, 64
    %v1813 = vpop.permute.xlu0 %1812
    %v1815 = vmul.f32 %v1794, %v1813
    %v1816 = vsub.f32 0.0, %v1788
    %v1817 = vmul.f32 %v1816, 1.442695
    %v1818 = vpow.pop %v1817
    %v1819 = vadd.f32 %v1818, 1.0
    %v1820 = vrcp.pop %v1819
    %v1821 = vmul.f32 1.0, %v1820
    %v1822 = vtanh.pop %v1788
    %v1824 = vrot.slane %v1685, 2
    %v1826 = vmul.f32 %v1821, %v1824
    %1828 = vrot.lane.b32.xlu0 %v1822, 64
    %v1829 = vpop.permute.xlu0 %1828
    %v1831 = vmul.f32 %v1821, %v1829
    %1833 = vrot.lane.b32.xlu0 %v1831, 32
    %v1834 = vpop.permute.xlu0 %1833
    %v1836 = vadd.f32 %v1826, %v1834
    %v1837 = vtanh.pop %v1836
    %1839 = vrot.lane.b32.xlu0 %v1837, 64
    %v1840 = vpop.permute.xlu0 %1839
    %v1842 = vmul.f32 %v1821, %v1840
    %1844 = vrot.lane.b32.xlu0 %v1815, 32
    %v1845 = vpop.permute.xlu0 %1844
    %v1848 = vrot.slane %v1842, 2
    %1849 = vrot.lane.b32.xlu0 %v1848, 64
    %v1850 = vpop.permute.xlu0 %1849
    %v1852 = vsel %vm290, %v1845, %v1850
    %1853 = vst.msk [vmem:[#allocation4] sm:$0xc] %vm445, %v1845
    %1854 = vrot.lane.b32.xlu0 %v1842, 32
    %v1855 = vpop.permute.xlu0 %1854
    %1857 = vst.msk [vmem:[#allocation5 + $0x8] sm:$0x30] %vm450, %v1855
    %v1859 = vrot.slane %v1852, 2
    %v1860 = vsel %vm153, %v1859, 0
    %1862 = vmatprep.subr.mxu0 0.0
    %1863 = vmatpush1.msra.mxu0 0.0
    %1864 = vmatprep.subr.mxu0 0.0
    %1865 = vmatpush1.msra.mxu0 0.0
    %1866 = vmatprep.subr.mxu0 0.0
    %1867 = vmatpush1.msra.mxu0 0.0
    %1868 = vmatprep.subr.mxu0 0.0
    %1869 = vmatpush1.msra.mxu0 0.0
    %1870 = vmatprep.subr.mxu0 0.0
    %1871 = vmatpush1.msra.mxu0 0.0
    %1872 = vmatprep.subr.mxu0 0.0
    %1873 = vmatpush1.msra.mxu0 0.0
    %1874 = vmatprep.subr.mxu0 0.0
    %1875 = vmatpush1.msra.mxu0 0.0
    %1876 = vmatprep.subr.mxu0 0.0
    %1877 = vmatpush1.msra.mxu0 0.0
    %1878 = vmatprep.subr.mxu0 %v1567
    %1879 = vmatpush1.msra.mxu0 %v1566
    %1880 = vmatprep.subr.mxu0 %v1565
    %1881 = vmatpush1.msra.mxu0 %v1564
    %1882 = vmatprep.subr.mxu0 %v1563
    %1883 = vmatpush1.msra.mxu0 %v1562
    %1884 = vmatprep.subr.mxu0 %v1561
    %1885 = vmatpush1.msra.mxu0 %v1560
    %1886 = vmatprep.subr.mxu0 %v1559
    %1887 = vmatpush1.msra.mxu0 %v1558
    %1888 = vmatprep.subr.mxu0 %v1557
    %1889 = vmatpush1.msra.mxu0 %v1556
    %1890 = vmatprep.subr.mxu0 %v1555
    %1891 = vmatpush1.msra.mxu0 %v1554
    %1892 = vmatprep.subr.mxu0 %v1553
    %1893 = vmatpush1.msra.mxu0 %v1552
    %1894 = vmatprep.subr.mxu0 0.0
    %1895 = vmatpush2.msra.mxu0 0.0
    %1896 = vmatprep.subr.mxu0 0.0
    %1897 = vmatpush2.msra.mxu0 0.0
    %1898 = vmatprep.subr.mxu0 0.0
    %1899 = vmatpush2.msra.mxu0 0.0
    %1900 = vmatprep.subr.mxu0 0.0
    %1901 = vmatpush2.msra.mxu0 0.0
    %1902 = vmatprep.subr.mxu0 0.0
    %1903 = vmatpush2.msra.mxu0 0.0
    %1904 = vmatprep.subr.mxu0 0.0
    %1905 = vmatpush2.msra.mxu0 0.0
    %1906 = vmatprep.subr.mxu0 0.0
    %1907 = vmatpush2.msra.mxu0 0.0
    %1908 = vmatprep.subr.mxu0 0.0
    %1909 = vmatpush2.msra.mxu0 0.0
    %1910 = vmatprep.subr.mxu0 0.0
    %1911 = vmatpush2.msra.mxu0 0.0
    %1912 = vmatprep.subr.mxu0 0.0
    %1913 = vmatpush2.msra.mxu0 0.0
    %1914 = vmatprep.subr.mxu0 0.0
    %1915 = vmatpush2.msra.mxu0 0.0
    %1916 = vmatprep.subr.mxu0 0.0
    %1917 = vmatpush2.msra.mxu0 0.0
    %1918 = vmatprep.subr.mxu0 0.0
    %1919 = vmatpush2.msra.mxu0 0.0
    %1920 = vmatprep.subr.mxu0 0.0
    %1921 = vmatpush2.msra.mxu0 0.0
    %1922 = vmatprep.subr.mxu0 0.0
    %1923 = vmatpush2.msra.mxu0 0.0
    %1924 = vmatprep.subr.mxu0 0.0
    %1925 = vmatpush2.msra.mxu0 0.0
    %1926 = vmatprep.mubr.f32.mxu0 0.0
    %1927 = vmatmul.mubr.f32.gmra.mxu0 %v1860
    %v1928 = vpop.f32.mrf.mxu0
    %v1929 = vadd.f32 0.0, %v1928
    %v1930 = vpop.f32.mrf.mxu0
    %v1931 = vadd.f32 0.0, %v1930
    %1932 = vdwg.mxu0
    %v1934 = vrot.slane %v1929, 4
    %v1936 = vadd.f32 %v1548, %v1934
    %v1938 = vrot.slane %v1931, 6
    %v1940 = vadd.f32 %v1551, %v1938
    %v1941 = vsub.f32 0.0, %v1936
    %v1942 = vmul.f32 %v1941, 1.442695
    %v1943 = vpow.pop %v1942
    %v1944 = vadd.f32 %v1943, 1.0
    %v1945 = vrcp.pop %v1944
    %v1946 = vmul.f32 1.0, %v1945
    %v1947 = vtanh.pop %v1936
    %v1949 = vrot.slane %v1809, 6
    %v1951 = vmul.f32 %v1946, %v1949
    %1953 = vrot.lane.b32.xlu0 %v1947, 64
    %v1954 = vpop.permute.xlu0 %1953
    %v1956 = vmul.f32 %v1946, %v1954
    %1958 = vrot.lane.b32.xlu0 %v1956, 32
    %v1959 = vpop.permute.xlu0 %1958
    %v1961 = vadd.f32 %v1951, %v1959
    %v1962 = vtanh.pop %v1961
    %1964 = vrot.lane.b32.xlu0 %v1962, 64
    %v1965 = vpop.permute.xlu0 %1964
    %v1967 = vmul.f32 %v1946, %v1965
    %v1968 = vsub.f32 0.0, %v1940
    %v1969 = vmul.f32 %v1968, 1.442695
    %v1970 = vpow.pop %v1969
    %v1971 = vadd.f32 %v1970, 1.0
    %v1972 = vrcp.pop %v1971
    %v1973 = vmul.f32 1.0, %v1972
    %v1974 = vtanh.pop %v1940
    %v1976 = vrot.slane %v1836, 2
    %v1978 = vmul.f32 %v1973, %v1976
    %1980 = vrot.lane.b32.xlu0 %v1974, 64
    %v1981 = vpop.permute.xlu0 %1980
    %v1983 = vmul.f32 %v1973, %v1981
    %1985 = vrot.lane.b32.xlu0 %v1983, 32
    %v1986 = vpop.permute.xlu0 %1985
    %v1988 = vadd.f32 %v1978, %v1986
    %v1989 = vtanh.pop %v1988
    %1991 = vrot.lane.b32.xlu0 %v1989, 64
    %v1992 = vpop.permute.xlu0 %1991
    %v1994 = vmul.f32 %v1973, %v1992
    %1996 = vrot.lane.b32.xlu0 %v1967, 32
    %v1997 = vpop.permute.xlu0 %1996
    %v2000 = vrot.slane %v1994, 6
    %2001 = vrot.lane.b32.xlu0 %v2000, 64
    %v2002 = vpop.permute.xlu0 %2001
    %v2004 = vsel %vm290, %v1997, %v2002
    %2005 = vst.msk [vmem:[#allocation4] sm:$0x30] %vm450, %v1997
    %2006 = vrot.lane.b32.xlu0 %v1994, 32
    %v2007 = vpop.permute.xlu0 %2006
    %2009 = vst.msk [vmem:[#allocation5 + $0x8] sm:$0xc] %vm445, %v2007
    %v2011 = vrot.slane %v2004, 4
    %v2012 = vsel %vm153, %v2011, 0
    %2014 = vmatprep.subr.mxu0 0.0
    %2015 = vmatpush1.msra.mxu0 0.0
    %2016 = vmatprep.subr.mxu0 0.0
    %2017 = vmatpush1.msra.mxu0 0.0
    %2018 = vmatprep.subr.mxu0 0.0
    %2019 = vmatpush1.msra.mxu0 0.0
    %2020 = vmatprep.subr.mxu0 0.0
    %2021 = vmatpush1.msra.mxu0 0.0
    %2022 = vmatprep.subr.mxu0 0.0
    %2023 = vmatpush1.msra.mxu0 0.0
    %2024 = vmatprep.subr.mxu0 0.0
    %2025 = vmatpush1.msra.mxu0 0.0
    %2026 = vmatprep.subr.mxu0 0.0
    %2027 = vmatpush1.msra.mxu0 0.0
    %2028 = vmatprep.subr.mxu0 0.0
    %2029 = vmatpush1.msra.mxu0 0.0
    %2030 = vmatprep.subr.mxu0 %v1567
    %2031 = vmatpush1.msra.mxu0 %v1566
    %2032 = vmatprep.subr.mxu0 %v1565
    %2033 = vmatpush1.msra.mxu0 %v1564
    %2034 = vmatprep.subr.mxu0 %v1563
    %2035 = vmatpush1.msra.mxu0 %v1562
    %2036 = vmatprep.subr.mxu0 %v1561
    %2037 = vmatpush1.msra.mxu0 %v1560
    %2038 = vmatprep.subr.mxu0 %v1559
    %2039 = vmatpush1.msra.mxu0 %v1558
    %2040 = vmatprep.subr.mxu0 %v1557
    %2041 = vmatpush1.msra.mxu0 %v1556
    %2042 = vmatprep.subr.mxu0 %v1555
    %2043 = vmatpush1.msra.mxu0 %v1554
    %2044 = vmatprep.subr.mxu0 %v1553
    %2045 = vmatpush1.msra.mxu0 %v1552
    %2046 = vmatprep.subr.mxu0 0.0
    %2047 = vmatpush2.msra.mxu0 0.0
    %2048 = vmatprep.subr.mxu0 0.0
    %2049 = vmatpush2.msra.mxu0 0.0
    %2050 = vmatprep.subr.mxu0 0.0
    %2051 = vmatpush2.msra.mxu0 0.0
    %2052 = vmatprep.subr.mxu0 0.0
    %2053 = vmatpush2.msra.mxu0 0.0
    %2054 = vmatprep.subr.mxu0 0.0
    %2055 = vmatpush2.msra.mxu0 0.0
    %2056 = vmatprep.subr.mxu0 0.0
    %2057 = vmatpush2.msra.mxu0 0.0
    %2058 = vmatprep.subr.mxu0 0.0
    %2059 = vmatpush2.msra.mxu0 0.0
    %2060 = vmatprep.subr.mxu0 0.0
    %2061 = vmatpush2.msra.mxu0 0.0
    %2062 = vmatprep.subr.mxu0 0.0
    %2063 = vmatpush2.msra.mxu0 0.0
    %2064 = vmatprep.subr.mxu0 0.0
    %2065 = vmatpush2.msra.mxu0 0.0
    %2066 = vmatprep.subr.mxu0 0.0
    %2067 = vmatpush2.msra.mxu0 0.0
    %2068 = vmatprep.subr.mxu0 0.0
    %2069 = vmatpush2.msra.mxu0 0.0
    %2070 = vmatprep.subr.mxu0 0.0
    %2071 = vmatpush2.msra.mxu0 0.0
    %2072 = vmatprep.subr.mxu0 0.0
    %2073 = vmatpush2.msra.mxu0 0.0
    %2074 = vmatprep.subr.mxu0 0.0
    %2075 = vmatpush2.msra.mxu0 0.0
    %2076 = vmatprep.subr.mxu0 0.0
    %2077 = vmatpush2.msra.mxu0 0.0
    %2078 = vmatprep.mubr.f32.mxu0 0.0
    %2079 = vmatmul.mubr.f32.gmra.mxu0 %v2012
    %v2080 = vpop.f32.mrf.mxu0
    %v2081 = vadd.f32 0.0, %v2080
    %v2082 = vpop.f32.mrf.mxu0
    %v2083 = vadd.f32 0.0, %v2082
    %2084 = vdwg.mxu0
    %v2086 = vrot.slane %v2081, 2
    %v2088 = vadd.f32 %v1548, %v2086
    %v2089 = vadd.f32 %v1551, %v2083
    %v2090 = vsub.f32 0.0, %v2088
    %v2091 = vmul.f32 %v2090, 1.442695
    %v2092 = vpow.pop %v2091
    %v2093 = vadd.f32 %v2092, 1.0
    %v2094 = vrcp.pop %v2093
    %v2095 = vmul.f32 1.0, %v2094
    %v2096 = vtanh.pop %v2088
    %v2098 = vrot.slane %v1961, 6
    %v2100 = vmul.f32 %v2095, %v2098
    %2102 = vrot.lane.b32.xlu0 %v2096, 64
    %v2103 = vpop.permute.xlu0 %2102
    %v2105 = vmul.f32 %v2095, %v2103
    %2107 = vrot.lane.b32.xlu0 %v2105, 32
    %v2108 = vpop.permute.xlu0 %2107
    %v2110 = vadd.f32 %v2100, %v2108
    %v2111 = vtanh.pop %v2110
    %2113 = vrot.lane.b32.xlu0 %v2111, 64
    %v2114 = vpop.permute.xlu0 %2113
    %v2116 = vmul.f32 %v2095, %v2114
    %v2117 = vsub.f32 0.0, %v2089
    %v2118 = vmul.f32 %v2117, 1.442695
    %v2119 = vpow.pop %v2118
    %v2120 = vadd.f32 %v2119, 1.0
    %v2121 = vrcp.pop %v2120
    %v2122 = vmul.f32 1.0, %v2121
    %v2123 = vtanh.pop %v2089
    %v2125 = vrot.slane %v1988, 2
    %v2127 = vmul.f32 %v2122, %v2125
    %2129 = vrot.lane.b32.xlu0 %v2123, 64
    %v2130 = vpop.permute.xlu0 %2129
    %v2132 = vmul.f32 %v2122, %v2130
    %2134 = vrot.lane.b32.xlu0 %v2132, 32
    %v2135 = vpop.permute.xlu0 %2134
    %v2137 = vadd.f32 %v2127, %v2135
    %v2138 = vtanh.pop %v2137
    %2140 = vrot.lane.b32.xlu0 %v2138, 64
    %v2141 = vpop.permute.xlu0 %2140
    %v2143 = vmul.f32 %v2122, %v2141
    %2145 = vrot.lane.b32.xlu0 %v2116, 32
    %v2146 = vpop.permute.xlu0 %2145
    %v2149 = vrot.slane %v2143, 2
    %2150 = vrot.lane.b32.xlu0 %v2149, 64
    %v2151 = vpop.permute.xlu0 %2150
    %v2153 = vsel %vm290, %v2146, %v2151
    %2154 = vst.msk [vmem:[#allocation4] sm:$0xc0] %vm297, %v2146
    %2155 = vrot.lane.b32.xlu0 %v2143, 32
    %v2156 = vpop.permute.xlu0 %2155
    %2158 = vst.msk [vmem:[#allocation5 + $0x8] sm:$0x3] %vm292, %v2156
    %v2160 = vrot.slane %v2153, 6
    %v2161 = vsel %vm153, %v2160, 0
    %2163 = vmatprep.subr.mxu0 0.0
    %2164 = vmatpush1.msra.mxu0 0.0
    %2165 = vmatprep.subr.mxu0 0.0
    %2166 = vmatpush1.msra.mxu0 0.0
    %2167 = vmatprep.subr.mxu0 0.0
    %2168 = vmatpush1.msra.mxu0 0.0
    %2169 = vmatprep.subr.mxu0 0.0
    %2170 = vmatpush1.msra.mxu0 0.0
    %2171 = vmatprep.subr.mxu0 0.0
    %2172 = vmatpush1.msra.mxu0 0.0
    %2173 = vmatprep.subr.mxu0 0.0
    %2174 = vmatpush1.msra.mxu0 0.0
    %2175 = vmatprep.subr.mxu0 0.0
    %2176 = vmatpush1.msra.mxu0 0.0
    %2177 = vmatprep.subr.mxu0 0.0
    %2178 = vmatpush1.msra.mxu0 0.0
    %2179 = vmatprep.subr.mxu0 %v1567
    %2180 = vmatpush1.msra.mxu0 %v1566
    %2181 = vmatprep.subr.mxu0 %v1565
    %2182 = vmatpush1.msra.mxu0 %v1564
    %2183 = vmatprep.subr.mxu0 %v1563
    %2184 = vmatpush1.msra.mxu0 %v1562
    %2185 = vmatprep.subr.mxu0 %v1561
    %2186 = vmatpush1.msra.mxu0 %v1560
    %2187 = vmatprep.subr.mxu0 %v1559
    %2188 = vmatpush1.msra.mxu0 %v1558
    %2189 = vmatprep.subr.mxu0 %v1557
    %2190 = vmatpush1.msra.mxu0 %v1556
    %2191 = vmatprep.subr.mxu0 %v1555
    %2192 = vmatpush1.msra.mxu0 %v1554
    %2193 = vmatprep.subr.mxu0 %v1553
    %2194 = vmatpush1.msra.mxu0 %v1552
    %2195 = vmatprep.subr.mxu0 0.0
    %2196 = vmatpush2.msra.mxu0 0.0
    %2197 = vmatprep.subr.mxu0 0.0
    %2198 = vmatpush2.msra.mxu0 0.0
    %2199 = vmatprep.subr.mxu0 0.0
    %2200 = vmatpush2.msra.mxu0 0.0
    %2201 = vmatprep.subr.mxu0 0.0
    %2202 = vmatpush2.msra.mxu0 0.0
    %2203 = vmatprep.subr.mxu0 0.0
    %2204 = vmatpush2.msra.mxu0 0.0
    %2205 = vmatprep.subr.mxu0 0.0
    %2206 = vmatpush2.msra.mxu0 0.0
    %2207 = vmatprep.subr.mxu0 0.0
    %2208 = vmatpush2.msra.mxu0 0.0
    %2209 = vmatprep.subr.mxu0 0.0
    %2210 = vmatpush2.msra.mxu0 0.0
    %2211 = vmatprep.subr.mxu0 0.0
    %2212 = vmatpush2.msra.mxu0 0.0
    %2213 = vmatprep.subr.mxu0 0.0
    %2214 = vmatpush2.msra.mxu0 0.0
    %2215 = vmatprep.subr.mxu0 0.0
    %2216 = vmatpush2.msra.mxu0 0.0
    %2217 = vmatprep.subr.mxu0 0.0
    %2218 = vmatpush2.msra.mxu0 0.0
    %2219 = vmatprep.subr.mxu0 0.0
    %2220 = vmatpush2.msra.mxu0 0.0
    %2221 = vmatprep.subr.mxu0 0.0
    %2222 = vmatpush2.msra.mxu0 0.0
    %2223 = vmatprep.subr.mxu0 0.0
    %2224 = vmatpush2.msra.mxu0 0.0
    %2225 = vmatprep.subr.mxu0 0.0
    %2226 = vmatpush2.msra.mxu0 0.0
    %2227 = vmatprep.mubr.f32.mxu0 0.0
    %2228 = vmatmul.mubr.f32.gmra.mxu0 %v2161
    %v2229 = vpop.f32.mrf.mxu0
    %v2230 = vadd.f32 0.0, %v2229
    %v2231 = vpop.f32.mrf.mxu0
    %v2232 = vadd.f32 0.0, %v2231
    %2233 = vdwg.mxu0
    %v2234 = vadd.f32 %v1550, %v2230
    %v2236 = vrot.slane %v2232, 2
    %v2238 = vadd.f32 %v1549, %v2236
    %v2239 = vsub.f32 0.0, %v2234
    %v2240 = vmul.f32 %v2239, 1.442695
    %v2241 = vpow.pop %v2240
    %v2242 = vadd.f32 %v2241, 1.0
    %v2243 = vrcp.pop %v2242
    %v2244 = vmul.f32 1.0, %v2243
    %v2245 = vtanh.pop %v2234
    %v2247 = vrot.slane %v2110, 6
    %v2249 = vmul.f32 %v2244, %v2247
    %2251 = vrot.lane.b32.xlu0 %v2245, 64
    %v2252 = vpop.permute.xlu0 %2251
    %v2254 = vmul.f32 %v2244, %v2252
    %2256 = vrot.lane.b32.xlu0 %v2254, 32
    %v2257 = vpop.permute.xlu0 %2256
    %v2259 = vadd.f32 %v2249, %v2257
    %v2260 = vtanh.pop %v2259
    %2262 = vrot.lane.b32.xlu0 %v2260, 64
    %v2263 = vpop.permute.xlu0 %2262
    %v2265 = vmul.f32 %v2244, %v2263
    %v2266 = vsub.f32 0.0, %v2238
    %v2267 = vmul.f32 %v2266, 1.442695
    %v2268 = vpow.pop %v2267
    %v2269 = vadd.f32 %v2268, 1.0
    %v2270 = vrcp.pop %v2269
    %v2271 = vmul.f32 1.0, %v2270
    %v2272 = vtanh.pop %v2238
    %v2274 = vrot.slane %v2137, 2
    %v2276 = vmul.f32 %v2271, %v2274
    %2278 = vrot.lane.b32.xlu0 %v2272, 64
    %v2279 = vpop.permute.xlu0 %2278
    %v2281 = vmul.f32 %v2271, %v2279
    %2283 = vrot.lane.b32.xlu0 %v2281, 32
    %v2284 = vpop.permute.xlu0 %2283
    %v2286 = vadd.f32 %v2276, %v2284
    %v2287 = vtanh.pop %v2286
    %2289 = vrot.lane.b32.xlu0 %v2287, 64
    %v2290 = vpop.permute.xlu0 %2289
    %v2292 = vmul.f32 %v2271, %v2290
    %2294 = vrot.lane.b32.xlu0 %v2265, 32
    %v2295 = vpop.permute.xlu0 %2294
    %v2298 = vrot.slane %v2292, 6
    %2299 = vrot.lane.b32.xlu0 %v2298, 64
    %v2300 = vpop.permute.xlu0 %2299
    %v2302 = vsel %vm290, %v2295, %v2300
    %2303 = vst.msk [vmem:[#allocation4 + $0x8] sm:$0x3] %vm292, %v2295
    %2304 = vrot.lane.b32.xlu0 %v2292, 32
    %v2305 = vpop.permute.xlu0 %2304
    %2307 = vst.msk [vmem:[#allocation5] sm:$0xc0] %vm297, %v2305
    %v2309 = vsel %vm153, %v2302, 0
    %2311 = vmatprep.subr.mxu0 0.0
    %2312 = vmatpush1.msra.mxu0 0.0
    %2313 = vmatprep.subr.mxu0 0.0
    %2314 = vmatpush1.msra.mxu0 0.0
    %2315 = vmatprep.subr.mxu0 0.0
    %2316 = vmatpush1.msra.mxu0 0.0
    %2317 = vmatprep.subr.mxu0 0.0
    %2318 = vmatpush1.msra.mxu0 0.0
    %2319 = vmatprep.subr.mxu0 0.0
    %2320 = vmatpush1.msra.mxu0 0.0
    %2321 = vmatprep.subr.mxu0 0.0
    %2322 = vmatpush1.msra.mxu0 0.0
    %2323 = vmatprep.subr.mxu0 0.0
    %2324 = vmatpush1.msra.mxu0 0.0
    %2325 = vmatprep.subr.mxu0 0.0
    %2326 = vmatpush1.msra.mxu0 0.0
    %2327 = vmatprep.subr.mxu0 %v1567
    %2328 = vmatpush1.msra.mxu0 %v1566
    %2329 = vmatprep.subr.mxu0 %v1565
    %2330 = vmatpush1.msra.mxu0 %v1564
    %2331 = vmatprep.subr.mxu0 %v1563
    %2332 = vmatpush1.msra.mxu0 %v1562
    %2333 = vmatprep.subr.mxu0 %v1561
    %2334 = vmatpush1.msra.mxu0 %v1560
    %2335 = vmatprep.subr.mxu0 %v1559
    %2336 = vmatpush1.msra.mxu0 %v1558
    %2337 = vmatprep.subr.mxu0 %v1557
    %2338 = vmatpush1.msra.mxu0 %v1556
    %2339 = vmatprep.subr.mxu0 %v1555
    %2340 = vmatpush1.msra.mxu0 %v1554
    %2341 = vmatprep.subr.mxu0 %v1553
    %2342 = vmatpush1.msra.mxu0 %v1552
    %2343 = vmatprep.subr.mxu0 0.0
    %2344 = vmatpush2.msra.mxu0 0.0
    %2345 = vmatprep.subr.mxu0 0.0
    %2346 = vmatpush2.msra.mxu0 0.0
    %2347 = vmatprep.subr.mxu0 0.0
    %2348 = vmatpush2.msra.mxu0 0.0
    %2349 = vmatprep.subr.mxu0 0.0
    %2350 = vmatpush2.msra.mxu0 0.0
    %2351 = vmatprep.subr.mxu0 0.0
    %2352 = vmatpush2.msra.mxu0 0.0
    %2353 = vmatprep.subr.mxu0 0.0
    %2354 = vmatpush2.msra.mxu0 0.0
    %2355 = vmatprep.subr.mxu0 0.0
    %2356 = vmatpush2.msra.mxu0 0.0
    %2357 = vmatprep.subr.mxu0 0.0
    %2358 = vmatpush2.msra.mxu0 0.0
    %2359 = vmatprep.subr.mxu0 0.0
    %2360 = vmatpush2.msra.mxu0 0.0
    %2361 = vmatprep.subr.mxu0 0.0
    %2362 = vmatpush2.msra.mxu0 0.0
    %2363 = vmatprep.subr.mxu0 0.0
    %2364 = vmatpush2.msra.mxu0 0.0
    %2365 = vmatprep.subr.mxu0 0.0
    %2366 = vmatpush2.msra.mxu0 0.0
    %2367 = vmatprep.subr.mxu0 0.0
    %2368 = vmatpush2.msra.mxu0 0.0
    %2369 = vmatprep.subr.mxu0 0.0
    %2370 = vmatpush2.msra.mxu0 0.0
    %2371 = vmatprep.subr.mxu0 0.0
    %2372 = vmatpush2.msra.mxu0 0.0
    %2373 = vmatprep.subr.mxu0 0.0
    %2374 = vmatpush2.msra.mxu0 0.0
    %2375 = vmatprep.mubr.f32.mxu0 0.0
    %2376 = vmatmul.mubr.f32.gmra.mxu0 %v2309
    %v2377 = vpop.f32.mrf.mxu0
    %v2378 = vadd.f32 0.0, %v2377
    %v2379 = vpop.f32.mrf.mxu0
    %v2380 = vadd.f32 0.0, %v2379
    %2381 = vdwg.mxu0
    %v2383 = vrot.slane %v2378, 6
    %v2385 = vadd.f32 %v1550, %v2383
    %v2387 = vrot.slane %v2380, 4
    %v2389 = vadd.f32 %v1549, %v2387
    %v2390 = vsub.f32 0.0, %v2385
    %v2391 = vmul.f32 %v2390, 1.442695
    %v2392 = vpow.pop %v2391
    %v2393 = vadd.f32 %v2392, 1.0
    %v2394 = vrcp.pop %v2393
    %v2395 = vmul.f32 1.0, %v2394
    %v2396 = vtanh.pop %v2385
    %v2398 = vrot.slane %v2259, 6
    %v2400 = vmul.f32 %v2395, %v2398
    %2402 = vrot.lane.b32.xlu0 %v2396, 64
    %v2403 = vpop.permute.xlu0 %2402
    %v2405 = vmul.f32 %v2395, %v2403
    %2407 = vrot.lane.b32.xlu0 %v2405, 32
    %v2408 = vpop.permute.xlu0 %2407
    %v2410 = vadd.f32 %v2400, %v2408
    %v2411 = vtanh.pop %v2410
    %2413 = vrot.lane.b32.xlu0 %v2411, 64
    %v2414 = vpop.permute.xlu0 %2413
    %v2416 = vmul.f32 %v2395, %v2414
    %v2417 = vsub.f32 0.0, %v2389
    %v2418 = vmul.f32 %v2417, 1.442695
    %v2419 = vpow.pop %v2418
    %v2420 = vadd.f32 %v2419, 1.0
    %v2421 = vrcp.pop %v2420
    %v2422 = vmul.f32 1.0, %v2421
    %v2423 = vtanh.pop %v2389
    %v2425 = vrot.slane %v2286, 2
    %v2427 = vmul.f32 %v2422, %v2425
    %2429 = vrot.lane.b32.xlu0 %v2423, 64
    %v2430 = vpop.permute.xlu0 %2429
    %v2432 = vmul.f32 %v2422, %v2430
    %2434 = vrot.lane.b32.xlu0 %v2432, 32
    %v2435 = vpop.permute.xlu0 %2434
    %v2437 = vadd.f32 %v2427, %v2435
    %v2438 = vtanh.pop %v2437
    %2440 = vrot.lane.b32.xlu0 %v2438, 64
    %v2441 = vpop.permute.xlu0 %2440
    %v2443 = vmul.f32 %v2422, %v2441
    %2445 = vrot.lane.b32.xlu0 %v2416, 32
    %v2446 = vpop.permute.xlu0 %2445
    %v2449 = vrot.slane %v2443, 2
    %2450 = vrot.lane.b32.xlu0 %v2449, 64
    %v2451 = vpop.permute.xlu0 %2450
    %v2453 = vsel %vm290, %v2446, %v2451
    %2454 = vst.msk [vmem:[#allocation4 + $0x8] sm:$0xc] %vm445, %v2446
    %2455 = vrot.lane.b32.xlu0 %v2443, 32
    %v2456 = vpop.permute.xlu0 %2455
    %2458 = vst.msk [vmem:[#allocation5] sm:$0x30] %vm450, %v2456
    %v2460 = vrot.slane %v2453, 2
    %v2461 = vsel %vm153, %v2460, 0
    %2463 = vmatprep.subr.mxu0 0.0
    %2464 = vmatpush1.msra.mxu0 0.0
    %2465 = vmatprep.subr.mxu0 0.0
    %2466 = vmatpush1.msra.mxu0 0.0
    %2467 = vmatprep.subr.mxu0 0.0
    %2468 = vmatpush1.msra.mxu0 0.0
    %2469 = vmatprep.subr.mxu0 0.0
    %2470 = vmatpush1.msra.mxu0 0.0
    %2471 = vmatprep.subr.mxu0 0.0
    %2472 = vmatpush1.msra.mxu0 0.0
    %2473 = vmatprep.subr.mxu0 0.0
    %2474 = vmatpush1.msra.mxu0 0.0
    %2475 = vmatprep.subr.mxu0 0.0
    %2476 = vmatpush1.msra.mxu0 0.0
    %2477 = vmatprep.subr.mxu0 0.0
    %2478 = vmatpush1.msra.mxu0 0.0
    %2479 = vmatprep.subr.mxu0 %v1567
    %2480 = vmatpush1.msra.mxu0 %v1566
    %2481 = vmatprep.subr.mxu0 %v1565
    %2482 = vmatpush1.msra.mxu0 %v1564
    %2483 = vmatprep.subr.mxu0 %v1563
    %2484 = vmatpush1.msra.mxu0 %v1562
    %2485 = vmatprep.subr.mxu0 %v1561
    %2486 = vmatpush1.msra.mxu0 %v1560
    %2487 = vmatprep.subr.mxu0 %v1559
    %2488 = vmatpush1.msra.mxu0 %v1558
    %2489 = vmatprep.subr.mxu0 %v1557
    %2490 = vmatpush1.msra.mxu0 %v1556
    %2491 = vmatprep.subr.mxu0 %v1555
    %2492 = vmatpush1.msra.mxu0 %v1554
    %2493 = vmatprep.subr.mxu0 %v1553
    %2494 = vmatpush1.msra.mxu0 %v1552
    %2495 = vmatprep.subr.mxu0 0.0
    %2496 = vmatpush2.msra.mxu0 0.0
    %2497 = vmatprep.subr.mxu0 0.0
    %2498 = vmatpush2.msra.mxu0 0.0
    %2499 = vmatprep.subr.mxu0 0.0
    %2500 = vmatpush2.msra.mxu0 0.0
    %2501 = vmatprep.subr.mxu0 0.0
    %2502 = vmatpush2.msra.mxu0 0.0
    %2503 = vmatprep.subr.mxu0 0.0
    %2504 = vmatpush2.msra.mxu0 0.0
    %2505 = vmatprep.subr.mxu0 0.0
    %2506 = vmatpush2.msra.mxu0 0.0
    %2507 = vmatprep.subr.mxu0 0.0
    %2508 = vmatpush2.msra.mxu0 0.0
    %2509 = vmatprep.subr.mxu0 0.0
    %2510 = vmatpush2.msra.mxu0 0.0
    %2511 = vmatprep.subr.mxu0 0.0
    %2512 = vmatpush2.msra.mxu0 0.0
    %2513 = vmatprep.subr.mxu0 0.0
    %2514 = vmatpush2.msra.mxu0 0.0
    %2515 = vmatprep.subr.mxu0 0.0
    %2516 = vmatpush2.msra.mxu0 0.0
    %2517 = vmatprep.subr.mxu0 0.0
    %2518 = vmatpush2.msra.mxu0 0.0
    %2519 = vmatprep.subr.mxu0 0.0
    %2520 = vmatpush2.msra.mxu0 0.0
    %2521 = vmatprep.subr.mxu0 0.0
    %2522 = vmatpush2.msra.mxu0 0.0
    %2523 = vmatprep.subr.mxu0 0.0
    %2524 = vmatpush2.msra.mxu0 0.0
    %2525 = vmatprep.subr.mxu0 0.0
    %2526 = vmatpush2.msra.mxu0 0.0
    %2527 = vmatprep.mubr.f32.mxu0 0.0
    %2528 = vmatmul.mubr.f32.gmra.mxu0 %v2461
    %v2529 = vpop.f32.mrf.mxu0
    %v2530 = vadd.f32 0.0, %v2529
    %v2531 = vpop.f32.mrf.mxu0
    %v2532 = vadd.f32 0.0, %v2531
    %2533 = vdwg.mxu0
    %v2535 = vrot.slane %v2530, 4
    %v2537 = vadd.f32 %v1550, %v2535
    %v2539 = vrot.slane %v2532, 6
    %v2541 = vadd.f32 %v1549, %v2539
    %v2542 = vsub.f32 0.0, %v2537
    %v2543 = vmul.f32 %v2542, 1.442695
    %v2544 = vpow.pop %v2543
    %v2545 = vadd.f32 %v2544, 1.0
    %v2546 = vrcp.pop %v2545
    %v2547 = vmul.f32 1.0, %v2546
    %v2548 = vtanh.pop %v2537
    %v2550 = vrot.slane %v2410, 6
    %v2552 = vmul.f32 %v2547, %v2550
    %2554 = vrot.lane.b32.xlu0 %v2548, 64
    %v2555 = vpop.permute.xlu0 %2554
    %v2557 = vmul.f32 %v2547, %v2555
    %2559 = vrot.lane.b32.xlu0 %v2557, 32
    %v2560 = vpop.permute.xlu0 %2559
    %v2562 = vadd.f32 %v2552, %v2560
    %v2563 = vtanh.pop %v2562
    %2565 = vrot.lane.b32.xlu0 %v2563, 64
    %v2566 = vpop.permute.xlu0 %2565
    %v2568 = vmul.f32 %v2547, %v2566
    %v2569 = vsub.f32 0.0, %v2541
    %v2570 = vmul.f32 %v2569, 1.442695
    %v2571 = vpow.pop %v2570
    %v2572 = vadd.f32 %v2571, 1.0
    %v2573 = vrcp.pop %v2572
    %v2574 = vmul.f32 1.0, %v2573
    %v2575 = vtanh.pop %v2541
    %v2577 = vrot.slane %v2437, 2
    %v2579 = vmul.f32 %v2574, %v2577
    %2581 = vrot.lane.b32.xlu0 %v2575, 64
    %v2582 = vpop.permute.xlu0 %2581
    %v2584 = vmul.f32 %v2574, %v2582
    %2586 = vrot.lane.b32.xlu0 %v2584, 32
    %v2587 = vpop.permute.xlu0 %2586
    %v2589 = vadd.f32 %v2579, %v2587
    %v2590 = vtanh.pop %v2589
    %2592 = vrot.lane.b32.xlu0 %v2590, 64
    %v2593 = vpop.permute.xlu0 %2592
    %v2595 = vmul.f32 %v2574, %v2593
    %2597 = vrot.lane.b32.xlu0 %v2568, 32
    %v2598 = vpop.permute.xlu0 %2597
    %v2601 = vrot.slane %v2595, 6
    %2602 = vrot.lane.b32.xlu0 %v2601, 64
    %v2603 = vpop.permute.xlu0 %2602
    %v2605 = vsel %vm290, %v2598, %v2603
    %2606 = vst.msk [vmem:[#allocation4 + $0x8] sm:$0x30] %vm450, %v2598
    %2607 = vrot.lane.b32.xlu0 %v2595, 32
    %v2608 = vpop.permute.xlu0 %2607
    %2610 = vst.msk [vmem:[#allocation5] sm:$0xc] %vm445, %v2608
    %v2612 = vrot.slane %v2605, 4
    %v2613 = vsel %vm153, %v2612, 0
    %2615 = vmatprep.subr.mxu0 0.0
    %2616 = vmatpush1.msra.mxu0 0.0
    %2617 = vmatprep.subr.mxu0 0.0
    %2618 = vmatpush1.msra.mxu0 0.0
    %2619 = vmatprep.subr.mxu0 0.0
    %2620 = vmatpush1.msra.mxu0 0.0
    %2621 = vmatprep.subr.mxu0 0.0
    %2622 = vmatpush1.msra.mxu0 0.0
    %2623 = vmatprep.subr.mxu0 0.0
    %2624 = vmatpush1.msra.mxu0 0.0
    %2625 = vmatprep.subr.mxu0 0.0
    %2626 = vmatpush1.msra.mxu0 0.0
    %2627 = vmatprep.subr.mxu0 0.0
    %2628 = vmatpush1.msra.mxu0 0.0
    %2629 = vmatprep.subr.mxu0 0.0
    %2630 = vmatpush1.msra.mxu0 0.0
    %2631 = vmatprep.subr.mxu0 %v1567
    %2632 = vmatpush1.msra.mxu0 %v1566
    %2633 = vmatprep.subr.mxu0 %v1565
    %2634 = vmatpush1.msra.mxu0 %v1564
    %2635 = vmatprep.subr.mxu0 %v1563
    %2636 = vmatpush1.msra.mxu0 %v1562
    %2637 = vmatprep.subr.mxu0 %v1561
    %2638 = vmatpush1.msra.mxu0 %v1560
    %2639 = vmatprep.subr.mxu0 %v1559
    %2640 = vmatpush1.msra.mxu0 %v1558
    %2641 = vmatprep.subr.mxu0 %v1557
    %2642 = vmatpush1.msra.mxu0 %v1556
    %2643 = vmatprep.subr.mxu0 %v1555
    %2644 = vmatpush1.msra.mxu0 %v1554
    %2645 = vmatprep.subr.mxu0 %v1553
    %2646 = vmatpush1.msra.mxu0 %v1552
    %2647 = vmatprep.subr.mxu0 0.0
    %2648 = vmatpush2.msra.mxu0 0.0
    %2649 = vmatprep.subr.mxu0 0.0
    %2650 = vmatpush2.msra.mxu0 0.0
    %2651 = vmatprep.subr.mxu0 0.0
    %2652 = vmatpush2.msra.mxu0 0.0
    %2653 = vmatprep.subr.mxu0 0.0
    %2654 = vmatpush2.msra.mxu0 0.0
    %2655 = vmatprep.subr.mxu0 0.0
    %2656 = vmatpush2.msra.mxu0 0.0
    %2657 = vmatprep.subr.mxu0 0.0
    %2658 = vmatpush2.msra.mxu0 0.0
    %2659 = vmatprep.subr.mxu0 0.0
    %2660 = vmatpush2.msra.mxu0 0.0
    %2661 = vmatprep.subr.mxu0 0.0
    %2662 = vmatpush2.msra.mxu0 0.0
    %2663 = vmatprep.subr.mxu0 0.0
    %2664 = vmatpush2.msra.mxu0 0.0
    %2665 = vmatprep.subr.mxu0 0.0
    %2666 = vmatpush2.msra.mxu0 0.0
    %2667 = vmatprep.subr.mxu0 0.0
    %2668 = vmatpush2.msra.mxu0 0.0
    %2669 = vmatprep.subr.mxu0 0.0
    %2670 = vmatpush2.msra.mxu0 0.0
    %2671 = vmatprep.subr.mxu0 0.0
    %2672 = vmatpush2.msra.mxu0 0.0
    %2673 = vmatprep.subr.mxu0 0.0
    %2674 = vmatpush2.msra.mxu0 0.0
    %2675 = vmatprep.subr.mxu0 0.0
    %2676 = vmatpush2.msra.mxu0 0.0
    %2677 = vmatprep.subr.mxu0 0.0
    %2678 = vmatpush2.msra.mxu0 0.0
    %2679 = vmatprep.mubr.f32.mxu0 0.0
    %2680 = vmatmul.mubr.f32.gmra.mxu0 %v2613
    %v2681 = vpop.f32.mrf.mxu0
    %v2682 = vadd.f32 0.0, %v2681
    %v2683 = vpop.f32.mrf.mxu0
    %v2684 = vadd.f32 0.0, %v2683
    %2685 = vdwg.mxu0
    %v2687 = vrot.slane %v2682, 2
    %v2689 = vadd.f32 %v1550, %v2687
    %v2690 = vadd.f32 %v1549, %v2684
    %v2691 = vsub.f32 0.0, %v2689
    %v2692 = vmul.f32 %v2691, 1.442695
    %v2693 = vpow.pop %v2692
    %v2694 = vadd.f32 %v2693, 1.0
    %v2695 = vrcp.pop %v2694
    %v2696 = vmul.f32 1.0, %v2695
    %v2697 = vtanh.pop %v2689
    %v2699 = vrot.slane %v2562, 6
    %v2701 = vmul.f32 %v2696, %v2699
    %2703 = vrot.lane.b32.xlu0 %v2697, 64
    %v2704 = vpop.permute.xlu0 %2703
    %v2706 = vmul.f32 %v2696, %v2704
    %2708 = vrot.lane.b32.xlu0 %v2706, 32
    %v2709 = vpop.permute.xlu0 %2708
    %v2711 = vadd.f32 %v2701, %v2709
    %v2712 = vtanh.pop %v2711
    %2714 = vrot.lane.b32.xlu0 %v2712, 64
    %v2715 = vpop.permute.xlu0 %2714
    %v2717 = vmul.f32 %v2696, %v2715
    %v2718 = vsub.f32 0.0, %v2690
    %v2719 = vmul.f32 %v2718, 1.442695
    %v2720 = vpow.pop %v2719
    %v2721 = vadd.f32 %v2720, 1.0
    %v2722 = vrcp.pop %v2721
    %v2723 = vmul.f32 1.0, %v2722
    %v2724 = vtanh.pop %v2690
    %v2726 = vrot.slane %v2589, 2
    %v2728 = vmul.f32 %v2723, %v2726
    %2730 = vrot.lane.b32.xlu0 %v2724, 64
    %v2731 = vpop.permute.xlu0 %2730
    %v2733 = vmul.f32 %v2723, %v2731
    %2735 = vrot.lane.b32.xlu0 %v2733, 32
    %v2736 = vpop.permute.xlu0 %2735
    %v2738 = vadd.f32 %v2728, %v2736
    %v2739 = vtanh.pop %v2738
    %2741 = vrot.lane.b32.xlu0 %v2739, 64
    %v2742 = vpop.permute.xlu0 %2741
    %v2744 = vmul.f32 %v2723, %v2742
    %2746 = vrot.lane.b32.xlu0 %v2717, 32
    %v2747 = vpop.permute.xlu0 %2746
    %2749 = vst.msk [vmem:[#allocation4 + $0x8] sm:$0xc0] %vm297, %v2747
    %2751 = vrot.lane.b32.xlu0 %v2744, 32
    %v2752 = vpop.permute.xlu0 %2751
    %2754 = vst.msk [vmem:[#allocation5] sm:$0x3] %vm292, %v2752
    %v2755 = vld [vmem:[#allocation6 + $0x1e0] sm:$0xff]
    %v2756 = vld [vmem:[#allocation6 + $0x1f0] sm:$0xff]
    %v2757 = vld [vmem:[#allocation6 + $0x200] sm:$0xff]
    %v2758 = vld [vmem:[#allocation6 + $0x210] sm:$0xff]
    %v2759 = vld [vmem:[#allocation6 + $0x220] sm:$0xff]
    %v2760 = vld [vmem:[#allocation6 + $0x230] sm:$0xff]
    %v2761 = vld [vmem:[#allocation6 + $0x240] sm:$0xff]
    %v2762 = vld [vmem:[#allocation6 + $0x250] sm:$0xff]
    %v2763 = vld [vmem:[#allocation4] sm:$0xff]
    %v2764 = vld [vmem:[#allocation4 + $0x8] sm:$0xff]
    %v2765 = vld [vmem:[#allocation5] sm:$0xff]
    %v2766 = vld [vmem:[#allocation5 + $0x8] sm:$0xff]
    %v2768 = vsel %vm290, %v2765, 0
    %v2771 = vsel %vm290, %v2766, 0
    %2773 = vmatprep.subr.mxu0 0.0
    %2774 = vmatpush1.msra.mxu0 0.0
    %2775 = vmatprep.subr.mxu0 0.0
    %2776 = vmatpush1.msra.mxu0 0.0
    %2777 = vmatprep.subr.mxu0 0.0
    %2778 = vmatpush1.msra.mxu0 0.0
    %2779 = vmatprep.subr.mxu0 0.0
    %2780 = vmatpush1.msra.mxu0 0.0
    %2781 = vmatprep.subr.mxu0 0.0
    %2782 = vmatpush1.msra.mxu0 0.0
    %2783 = vmatprep.subr.mxu0 0.0
    %2784 = vmatpush1.msra.mxu0 0.0
    %2785 = vmatprep.subr.mxu0 0.0
    %2786 = vmatpush1.msra.mxu0 0.0
    %2787 = vmatprep.subr.mxu0 0.0
    %2788 = vmatpush1.msra.mxu0 0.0
    %2789 = vmatprep.subr.mxu0 0.0
    %2790 = vmatpush1.msra.mxu0 0.0
    %2791 = vmatprep.subr.mxu0 0.0
    %2792 = vmatpush1.msra.mxu0 0.0
    %2793 = vmatprep.subr.mxu0 0.0
    %2794 = vmatpush1.msra.mxu0 0.0
    %2795 = vmatprep.subr.mxu0 0.0
    %2796 = vmatpush1.msra.mxu0 0.0
    %2797 = vmatprep.subr.mxu0 0.0
    %2798 = vmatpush1.msra.mxu0 %v2762
    %2799 = vmatprep.subr.mxu0 0.0
    %2800 = vmatpush1.msra.mxu0 %v2761
    %2801 = vmatprep.subr.mxu0 0.0
    %2802 = vmatpush1.msra.mxu0 %v2760
    %2803 = vmatprep.subr.mxu0 0.0
    %2804 = vmatpush1.msra.mxu0 %v2759
    %2805 = vmatprep.subr.mxu0 0.0
    %2806 = vmatpush2.msra.mxu0 0.0
    %2807 = vmatprep.subr.mxu0 0.0
    %2808 = vmatpush2.msra.mxu0 0.0
    %2809 = vmatprep.subr.mxu0 0.0
    %2810 = vmatpush2.msra.mxu0 0.0
    %2811 = vmatprep.subr.mxu0 0.0
    %2812 = vmatpush2.msra.mxu0 0.0
    %2813 = vmatprep.subr.mxu0 0.0
    %2814 = vmatpush2.msra.mxu0 0.0
    %2815 = vmatprep.subr.mxu0 0.0
    %2816 = vmatpush2.msra.mxu0 0.0
    %2817 = vmatprep.subr.mxu0 0.0
    %2818 = vmatpush2.msra.mxu0 0.0
    %2819 = vmatprep.subr.mxu0 0.0
    %2820 = vmatpush2.msra.mxu0 0.0
    %2821 = vmatprep.subr.mxu0 0.0
    %2822 = vmatpush2.msra.mxu0 0.0
    %2823 = vmatprep.subr.mxu0 0.0
    %2824 = vmatpush2.msra.mxu0 0.0
    %2825 = vmatprep.subr.mxu0 0.0
    %2826 = vmatpush2.msra.mxu0 0.0
    %2827 = vmatprep.subr.mxu0 0.0
    %2828 = vmatpush2.msra.mxu0 0.0
    %2829 = vmatprep.subr.mxu0 0.0
    %2830 = vmatpush2.msra.mxu0 0.0
    %2831 = vmatprep.subr.mxu0 0.0
    %2832 = vmatpush2.msra.mxu0 0.0
    %2833 = vmatprep.subr.mxu0 0.0
    %2834 = vmatpush2.msra.mxu0 0.0
    %2835 = vmatprep.subr.mxu0 0.0
    %2836 = vmatpush2.msra.mxu0 0.0
    %2837 = vmatprep.mubr.f32.mxu0 0.0
    %2838 = vmatmul.mubr.f32.gmra.mxu0 %v2768
    %v2839 = vpop.f32.mrf.mxu0
    %v2840 = vadd.f32 0.0, %v2839
    %v2841 = vpop.f32.mrf.mxu0
    %2842 = vmatprep.mubr.f32.mxu0 0.0
    %2843 = vmatmul.mubr.f32.gmra.mxu0 %v2771
    %v2844 = vpop.f32.mrf.mxu0
    %v2845 = vadd.f32 0.0, %v2844
    %v2846 = vpop.f32.mrf.mxu0
    %2847 = vdwg.mxu0
    %v2849 = vsel %vm290, %v2763, 0
    %v2852 = vsel %vm290, %v2764, 0
    %2854 = vmatprep.subr.mxu0 0.0
    %2855 = vmatpush1.msra.mxu0 0.0
    %2856 = vmatprep.subr.mxu0 0.0
    %2857 = vmatpush1.msra.mxu0 0.0
    %2858 = vmatprep.subr.mxu0 0.0
    %2859 = vmatpush1.msra.mxu0 0.0
    %2860 = vmatprep.subr.mxu0 0.0
    %2861 = vmatpush1.msra.mxu0 0.0
    %2862 = vmatprep.subr.mxu0 0.0
    %2863 = vmatpush1.msra.mxu0 0.0
    %2864 = vmatprep.subr.mxu0 0.0
    %2865 = vmatpush1.msra.mxu0 0.0
    %2866 = vmatprep.subr.mxu0 0.0
    %2867 = vmatpush1.msra.mxu0 0.0
    %2868 = vmatprep.subr.mxu0 0.0
    %2869 = vmatpush1.msra.mxu0 0.0
    %2870 = vmatprep.subr.mxu0 0.0
    %2871 = vmatpush1.msra.mxu0 0.0
    %2872 = vmatprep.subr.mxu0 0.0
    %2873 = vmatpush1.msra.mxu0 0.0
    %2874 = vmatprep.subr.mxu0 0.0
    %2875 = vmatpush1.msra.mxu0 0.0
    %2876 = vmatprep.subr.mxu0 0.0
    %2877 = vmatpush1.msra.mxu0 0.0
    %2878 = vmatprep.subr.mxu0 0.0
    %2879 = vmatpush1.msra.mxu0 %v2758
    %2880 = vmatprep.subr.mxu0 0.0
    %2881 = vmatpush1.msra.mxu0 %v2757
    %2882 = vmatprep.subr.mxu0 0.0
    %2883 = vmatpush1.msra.mxu0 %v2756
    %2884 = vmatprep.subr.mxu0 0.0
    %2885 = vmatpush1.msra.mxu0 %v2755
    %2886 = vmatprep.subr.mxu0 0.0
    %2887 = vmatpush2.msra.mxu0 0.0
    %2888 = vmatprep.subr.mxu0 0.0
    %2889 = vmatpush2.msra.mxu0 0.0
    %2890 = vmatprep.subr.mxu0 0.0
    %2891 = vmatpush2.msra.mxu0 0.0
    %2892 = vmatprep.subr.mxu0 0.0
    %2893 = vmatpush2.msra.mxu0 0.0
    %2894 = vmatprep.subr.mxu0 0.0
    %2895 = vmatpush2.msra.mxu0 0.0
    %2896 = vmatprep.subr.mxu0 0.0
    %2897 = vmatpush2.msra.mxu0 0.0
    %2898 = vmatprep.subr.mxu0 0.0
    %2899 = vmatpush2.msra.mxu0 0.0
    %2900 = vmatprep.subr.mxu0 0.0
    %2901 = vmatpush2.msra.mxu0 0.0
    %2902 = vmatprep.subr.mxu0 0.0
    %2903 = vmatpush2.msra.mxu0 0.0
    %2904 = vmatprep.subr.mxu0 0.0
    %2905 = vmatpush2.msra.mxu0 0.0
    %2906 = vmatprep.subr.mxu0 0.0
    %2907 = vmatpush2.msra.mxu0 0.0
    %2908 = vmatprep.subr.mxu0 0.0
    %2909 = vmatpush2.msra.mxu0 0.0
    %2910 = vmatprep.subr.mxu0 0.0
    %2911 = vmatpush2.msra.mxu0 0.0
    %2912 = vmatprep.subr.mxu0 0.0
    %2913 = vmatpush2.msra.mxu0 0.0
    %2914 = vmatprep.subr.mxu0 0.0
    %2915 = vmatpush2.msra.mxu0 0.0
    %2916 = vmatprep.subr.mxu0 0.0
    %2917 = vmatpush2.msra.mxu0 0.0
    %2918 = vmatprep.mubr.f32.mxu0 0.0
    %2919 = vmatmul.mubr.f32.gmra.mxu0 %v2849
    %v2920 = vpop.f32.mrf.mxu0
    %v2921 = vadd.f32 %v2840, %v2920
    %v2922 = vpop.f32.mrf.mxu0
    %2923 = vmatprep.mubr.f32.mxu0 0.0
    %2924 = vmatmul.mubr.f32.gmra.mxu0 %v2852
    %v2925 = vpop.f32.mrf.mxu0
    %v2926 = vadd.f32 %v2845, %v2925
    %v2927 = vpop.f32.mrf.mxu0
    %2928 = vdwg.mxu0
    %v2929 = vld [vmem:[#allocation6 + $0x440] ss:$0 sm:$0xff]
    %v2930 = vadd.f32 %v2921, %v2929
    %v2931 = vadd.f32 %v2926, %v2929
    %v2932 = vtanh.pop %v2930
    %v2933 = vtanh.pop %v2931
    %v2934 = vld [vmem:[#allocation6 + $0x360] sm:$0xff]
    %v2935 = vld [vmem:[#allocation6 + $0x370] sm:$0xff]
    %v2936 = vld [vmem:[#allocation6 + $0x380] sm:$0xff]
    %v2937 = vld [vmem:[#allocation6 + $0x390] sm:$0xff]
    %v2938 = vld [vmem:[#allocation6 + $0x3a0] sm:$0xff]
    %v2939 = vld [vmem:[#allocation6 + $0x3b0] sm:$0xff]
    %v2940 = vld [vmem:[#allocation6 + $0x3c0] sm:$0xff]
    %v2941 = vld [vmem:[#allocation6 + $0x3d0] sm:$0xff]
    %2944 = vrot.lane.b32.xlu0 %v2932, 64
    %v2945 = vpop.permute.xlu0 %2944
    %2946 = vrot.lane.b32.xlu0 %v2933, 64
    %v2947 = vpop.permute.xlu0 %2946
    %v2948 = vsel %vm153, %v2945, 0
    %v2950 = vsel %vm153, %v2947, 0
    %2952 = vmatprep.subr.mxu0 0.0
    %2953 = vmatpush1.msra.mxu0 0.0
    %2954 = vmatprep.subr.mxu0 0.0
    %2955 = vmatpush1.msra.mxu0 0.0
    %2956 = vmatprep.subr.mxu0 0.0
    %2957 = vmatpush1.msra.mxu0 0.0
    %2958 = vmatprep.subr.mxu0 0.0
    %2959 = vmatpush1.msra.mxu0 0.0
    %2960 = vmatprep.subr.mxu0 0.0
    %2961 = vmatpush1.msra.mxu0 0.0
    %2962 = vmatprep.subr.mxu0 0.0
    %2963 = vmatpush1.msra.mxu0 0.0
    %2964 = vmatprep.subr.mxu0 0.0
    %2965 = vmatpush1.msra.mxu0 0.0
    %2966 = vmatprep.subr.mxu0 0.0
    %2967 = vmatpush1.msra.mxu0 0.0
    %2968 = vmatprep.subr.mxu0 0.0
    %2969 = vmatpush1.msra.mxu0 %v2941
    %2970 = vmatprep.subr.mxu0 0.0
    %2971 = vmatpush1.msra.mxu0 %v2940
    %2972 = vmatprep.subr.mxu0 0.0
    %2973 = vmatpush1.msra.mxu0 %v2939
    %2974 = vmatprep.subr.mxu0 0.0
    %2975 = vmatpush1.msra.mxu0 %v2938
    %2976 = vmatprep.subr.mxu0 0.0
    %2977 = vmatpush1.msra.mxu0 %v2937
    %2978 = vmatprep.subr.mxu0 0.0
    %2979 = vmatpush1.msra.mxu0 %v2936
    %2980 = vmatprep.subr.mxu0 0.0
    %2981 = vmatpush1.msra.mxu0 %v2935
    %2982 = vmatprep.subr.mxu0 0.0
    %2983 = vmatpush1.msra.mxu0 %v2934
    %2984 = vmatprep.subr.mxu0 0.0
    %2985 = vmatpush2.msra.mxu0 0.0
    %2986 = vmatprep.subr.mxu0 0.0
    %2987 = vmatpush2.msra.mxu0 0.0
    %2988 = vmatprep.subr.mxu0 0.0
    %2989 = vmatpush2.msra.mxu0 0.0
    %2990 = vmatprep.subr.mxu0 0.0
    %2991 = vmatpush2.msra.mxu0 0.0
    %2992 = vmatprep.subr.mxu0 0.0
    %2993 = vmatpush2.msra.mxu0 0.0
    %2994 = vmatprep.subr.mxu0 0.0
    %2995 = vmatpush2.msra.mxu0 0.0
    %2996 = vmatprep.subr.mxu0 0.0
    %2997 = vmatpush2.msra.mxu0 0.0
    %2998 = vmatprep.subr.mxu0 0.0
    %2999 = vmatpush2.msra.mxu0 0.0
    %3000 = vmatprep.subr.mxu0 0.0
    %3001 = vmatpush2.msra.mxu0 0.0
    %3002 = vmatprep.subr.mxu0 0.0
    %3003 = vmatpush2.msra.mxu0 0.0
    %3004 = vmatprep.subr.mxu0 0.0
    %3005 = vmatpush2.msra.mxu0 0.0
    %3006 = vmatprep.subr.mxu0 0.0
    %3007 = vmatpush2.msra.mxu0 0.0
    %3008 = vmatprep.subr.mxu0 0.0
    %3009 = vmatpush2.msra.mxu0 0.0
    %3010 = vmatprep.subr.mxu0 0.0
    %3011 = vmatpush2.msra.mxu0 0.0
    %3012 = vmatprep.subr.mxu0 0.0
    %3013 = vmatpush2.msra.mxu0 0.0
    %3014 = vmatprep.subr.mxu0 0.0
    %3015 = vmatpush2.msra.mxu0 0.0
    %3016 = vmatprep.mubr.f32.mxu0 0.0
    %3017 = vmatmul.mubr.f32.gmra.mxu0 %v2948
    %v3018 = vpop.f32.mrf.mxu0
    %v3019 = vadd.f32 0.0, %v3018
    %v3020 = vpop.f32.mrf.mxu0
    %3021 = vmatprep.mubr.f32.mxu0 0.0
    %3022 = vmatmul.mubr.f32.gmra.mxu0 %v2950
    %v3023 = vpop.f32.mrf.mxu0
    %v3024 = vadd.f32 0.0, %v3023
    %v3025 = vpop.f32.mrf.mxu0
    %3026 = vdwg.mxu0
    %v3027 = vld [vmem:[#allocation6 + $0x3f0] sm:$0xff]
    %v3028 = vld [vmem:[#allocation6 + $0x400] sm:$0xff]
    %vm3029 = vcmp.gt.f32.partialorder %v3027, 0.5
    %vm3030 = vcmp.gt.f32.partialorder %v3028, 0.5
    %v3031 = vsel %vm3029, 1, 0
    %v3032 = vsel %vm3030, 1, 0
    %3033 = vset.pattern.permute.xlu0 0
    %3034 = vperm.xlu0 %3033, %v3031
    %v3035 = vpop.permute.xlu0 %3034
    %3036 = vset.pattern.permute.xlu0 0
    %3037 = vperm.xlu0 %3036, %v3032
    %v3038 = vpop.permute.xlu0 %3037
    %vm3039 = vcmp.eq.s32.totalorder %v3035, 1
    %vm3040 = vcmp.eq.s32.totalorder %v3038, 1
    %v3041 = vsel %vm3039, %v3019, -3e+38
    %v3042 = vsel %vm3040, %v3024, -3e+38
    %vm3043 = vcmask 64512
    %v3044 = vsel %vm3043, %v3041, -inf
    %v3045 = vsel %vm3043, %v3042, -inf
    %v3046 = vmax.f32 %v3044, %v3045
    %v3047 = vrot.slane %v3046, 4
    %v3048 = vmax.f32 %v3046, %v3047
    %v3049 = vrot.slane %v3048, 2
    %v3050 = vmax.f32 %v3048, %v3049
    %v3051 = vrot.slane %v3050, 1
    %v3052 = vmax.f32 %v3050, %v3051
    %v3053 = vsel %vm3039, %v3052, 0.0
    %v3054 = vsel %vm3040, %v3052, 0.0
    %3055 = vset.pattern.permute.xlu0 1
    %3056 = vperm.xlu0 %3055, %v3031
    %v3057 = vpop.permute.xlu0 %3056
    %3058 = vset.pattern.permute.xlu0 1
    %3059 = vperm.xlu0 %3058, %v3032
    %v3060 = vpop.permute.xlu0 %3059
    %vm3061 = vcmp.eq.s32.totalorder %v3057, 1
    %vm3062 = vcmp.eq.s32.totalorder %v3060, 1
    %v3063 = vsel %vm3061, %v3019, -3e+38
    %v3064 = vsel %vm3062, %v3024, -3e+38
    %v3065 = vsel %vm3043, %v3063, -inf
    %v3066 = vsel %vm3043, %v3064, -inf
    %v3067 = vmax.f32 %v3065, %v3066
    %v3068 = vrot.slane %v3067, 4
    %v3069 = vmax.f32 %v3067, %v3068
    %v3070 = vrot.slane %v3069, 2
    %v3071 = vmax.f32 %v3069, %v3070
    %v3072 = vrot.slane %v3071, 1
    %v3073 = vmax.f32 %v3071, %v3072
    %v3074 = vsel %vm3061, %v3073, %v3053
    %v3075 = vsel %vm3062, %v3073, %v3054
    %v3076 = vsub.f32 %v3019, %v3074
    %v3077 = vsub.f32 %v3024, %v3075
    %v3078 = vmul.f32 %v3076, 1.442695
    %v3079 = vpow.pop %v3078
    %v3080 = vmul.f32 %v3077, 1.442695
    %v3081 = vpow.pop %v3080
    %v3082 = vld [vmem:[#allocation6 + $0x410] sm:$0x3]
    %v3083 = vld [vmem:[#allocation6 + $0x3e0] sm:$0xff]
    %v3085 = vsel %vm3043, %v3079, 0
    %v3088 = vsel %vm3043, %v3081, 0
    %3090 = vmatprep.subr.mxu0 0.0
    %3091 = vmatpush1.msra.mxu0 0.0
    %3092 = vmatprep.subr.mxu0 0.0
    %3093 = vmatpush1.msra.mxu0 0.0
    %3094 = vmatprep.subr.mxu0 0.0
    %3095 = vmatpush1.msra.mxu0 0.0
    %3096 = vmatprep.subr.mxu0 0.0
    %3097 = vmatpush1.msra.mxu0 0.0
    %3098 = vmatprep.subr.mxu0 0.0
    %3099 = vmatpush1.msra.mxu0 0.0
    %3100 = vmatprep.subr.mxu0 0.0
    %3101 = vmatpush1.msra.mxu0 0.0
    %3102 = vmatprep.subr.mxu0 0.0
    %3103 = vmatpush1.msra.mxu0 0.0
    %3104 = vmatprep.subr.mxu0 0.0
    %3105 = vmatpush1.msra.mxu0 0.0
    %3106 = vmatprep.subr.mxu0 0.0
    %3107 = vmatpush1.msra.mxu0 0.0
    %3108 = vmatprep.subr.mxu0 0.0
    %3109 = vmatpush1.msra.mxu0 0.0
    %3110 = vmatprep.subr.mxu0 0.0
    %3111 = vmatpush1.msra.mxu0 0.0
    %3112 = vmatprep.subr.mxu0 0.0
    %3113 = vmatpush1.msra.mxu0 0.0
    %3114 = vmatprep.subr.mxu0 0.0
    %3115 = vmatpush1.msra.mxu0 0.0
    %3116 = vmatprep.subr.mxu0 0.0
    %3117 = vmatpush1.msra.mxu0 0.0
    %3118 = vmatprep.subr.mxu0 0.0
    %3119 = vmatpush1.msra.mxu0 0.0
    %3120 = vmatprep.subr.mxu0 0.0
    %3121 = vmatpush1.msra.mxu0 %v3083
    %3122 = vmatprep.subr.mxu0 0.0
    %3123 = vmatpush2.msra.mxu0 0.0
    %3124 = vmatprep.subr.mxu0 0.0
    %3125 = vmatpush2.msra.mxu0 0.0
    %3126 = vmatprep.subr.mxu0 0.0
    %3127 = vmatpush2.msra.mxu0 0.0
    %3128 = vmatprep.subr.mxu0 0.0
    %3129 = vmatpush2.msra.mxu0 0.0
    %3130 = vmatprep.subr.mxu0 0.0
    %3131 = vmatpush2.msra.mxu0 0.0
    %3132 = vmatprep.subr.mxu0 0.0
    %3133 = vmatpush2.msra.mxu0 0.0
    %3134 = vmatprep.subr.mxu0 0.0
    %3135 = vmatpush2.msra.mxu0 0.0
    %3136 = vmatprep.subr.mxu0 0.0
    %3137 = vmatpush2.msra.mxu0 0.0
    %3138 = vmatprep.subr.mxu0 0.0
    %3139 = vmatpush2.msra.mxu0 0.0
    %3140 = vmatprep.subr.mxu0 0.0
    %3141 = vmatpush2.msra.mxu0 0.0
    %3142 = vmatprep.subr.mxu0 0.0
    %3143 = vmatpush2.msra.mxu0 0.0
    %3144 = vmatprep.subr.mxu0 0.0
    %3145 = vmatpush2.msra.mxu0 0.0
    %3146 = vmatprep.subr.mxu0 0.0
    %3147 = vmatpush2.msra.mxu0 0.0
    %3148 = vmatprep.subr.mxu0 0.0
    %3149 = vmatpush2.msra.mxu0 0.0
    %3150 = vmatprep.subr.mxu0 0.0
    %3151 = vmatpush2.msra.mxu0 0.0
    %3152 = vmatprep.subr.mxu0 0.0
    %3153 = vmatpush2.msra.mxu0 0.0
    %3154 = vmatprep.mubr.f32.mxu0 0.0
    %3155 = vmatmul.mubr.f32.gmra.mxu0 %v3085
    %v3156 = vpop.f32.mrf.mxu0
    %v3157 = vadd.f32 0.0, %v3156
    %v3158 = vpop.f32.mrf.mxu0
    %3159 = vmatprep.mubr.f32.mxu0 0.0
    %3160 = vmatmul.mubr.f32.gmra.mxu0 %v3088
    %v3161 = vpop.f32.mrf.mxu0
    %v3162 = vadd.f32 0.0, %v3161
    %v3163 = vpop.f32.mrf.mxu0
    %3164 = vdwg.mxu0
    %v3165 = vmul.f32 %v2930, %v3157
    %v3166 = vmul.f32 %v2931, %v3162
    %vm3167 = vcmask 130048
    %v3169 = vsel %vm3167, %v3082, 0
    %3171 = vmatprep.subr.mxu0 0.0
    %3172 = vmatpush1.msra.mxu0 0.0
    %3173 = vmatprep.subr.mxu0 0.0
    %3174 = vmatpush1.msra.mxu0 0.0
    %3175 = vmatprep.subr.mxu0 0.0
    %3176 = vmatpush1.msra.mxu0 0.0
    %3177 = vmatprep.subr.mxu0 0.0
    %3178 = vmatpush1.msra.mxu0 0.0
    %3179 = vmatprep.subr.mxu0 0.0
    %3180 = vmatpush1.msra.mxu0 0.0
    %3181 = vmatprep.subr.mxu0 0.0
    %3182 = vmatpush1.msra.mxu0 0.0
    %3183 = vmatprep.subr.mxu0 0.0
    %3184 = vmatpush1.msra.mxu0 0.0
    %3185 = vmatprep.subr.mxu0 0.0
    %3186 = vmatpush1.msra.mxu0 0.0
    %3187 = vmatprep.subr.mxu0 0.0
    %3188 = vmatpush1.msra.mxu0 0.0
    %3189 = vmatprep.subr.mxu0 0.0
    %3190 = vmatpush1.msra.mxu0 0.0
    %3191 = vmatprep.subr.mxu0 0.0
    %3192 = vmatpush1.msra.mxu0 0.0
    %3193 = vmatprep.subr.mxu0 0.0
    %3194 = vmatpush1.msra.mxu0 0.0
    %3195 = vmatprep.subr.mxu0 0.0
    %3196 = vmatpush1.msra.mxu0 0.0
    %3197 = vmatprep.subr.mxu0 0.0
    %3198 = vmatpush1.msra.mxu0 0.0
    %3199 = vmatprep.subr.mxu0 0.0
    %3200 = vmatpush1.msra.mxu0 %v3166
    %3201 = vmatprep.subr.mxu0 0.0
    %3202 = vmatpush1.msra.mxu0 %v3165
    %3203 = vmatprep.subr.mxu0 0.0
    %3204 = vmatpush2.msra.mxu0 0.0
    %3205 = vmatprep.subr.mxu0 0.0
    %3206 = vmatpush2.msra.mxu0 0.0
    %3207 = vmatprep.subr.mxu0 0.0
    %3208 = vmatpush2.msra.mxu0 0.0
    %3209 = vmatprep.subr.mxu0 0.0
    %3210 = vmatpush2.msra.mxu0 0.0
    %3211 = vmatprep.subr.mxu0 0.0
    %3212 = vmatpush2.msra.mxu0 0.0
    %3213 = vmatprep.subr.mxu0 0.0
    %3214 = vmatpush2.msra.mxu0 0.0
    %3215 = vmatprep.subr.mxu0 0.0
    %3216 = vmatpush2.msra.mxu0 0.0
    %3217 = vmatprep.subr.mxu0 0.0
    %3218 = vmatpush2.msra.mxu0 0.0
    %3219 = vmatprep.subr.mxu0 0.0
    %3220 = vmatpush2.msra.mxu0 0.0
    %3221 = vmatprep.subr.mxu0 0.0
    %3222 = vmatpush2.msra.mxu0 0.0
    %3223 = vmatprep.subr.mxu0 0.0
    %3224 = vmatpush2.msra.mxu0 0.0
    %3225 = vmatprep.subr.mxu0 0.0
    %3226 = vmatpush2.msra.mxu0 0.0
    %3227 = vmatprep.subr.mxu0 0.0
    %3228 = vmatpush2.msra.mxu0 0.0
    %3229 = vmatprep.subr.mxu0 0.0
    %3230 = vmatpush2.msra.mxu0 0.0
    %3231 = vmatprep.subr.mxu0 0.0
    %3232 = vmatpush2.msra.mxu0 0.0
    %3233 = vmatprep.subr.mxu0 0.0
    %3234 = vmatpush2.msra.mxu0 0.0
    %3235 = vmatprep.mubr.f32.mxu0 0.0
    %3236 = vmatmul.mubr.f32.gmra.mxu0 %v3169
    %v3237 = vpop.f32.mrf.mxu0
    %v3238 = vadd.f32 0.0, %v3237
    %v3239 = vpop.f32.mrf.mxu0
    %3240 = vdwg.mxu0
    %3241 = vmatprep.subr.mxu0 0.0
    %3242 = vmatpush1.msra.mxu0 0.0
    %3243 = vmatprep.subr.mxu0 0.0
    %3244 = vmatpush1.msra.mxu0 0.0
    %3245 = vmatprep.subr.mxu0 0.0
    %3246 = vmatpush1.msra.mxu0 0.0
    %3247 = vmatprep.subr.mxu0 0.0
    %3248 = vmatpush1.msra.mxu0 0.0
    %3249 = vmatprep.subr.mxu0 0.0
    %3250 = vmatpush1.msra.mxu0 0.0
    %3251 = vmatprep.subr.mxu0 0.0
    %3252 = vmatpush1.msra.mxu0 0.0
    %3253 = vmatprep.subr.mxu0 0.0
    %3254 = vmatpush1.msra.mxu0 0.0
    %3255 = vmatprep.subr.mxu0 0.0
    %3256 = vmatpush1.msra.mxu0 0.0
    %3257 = vmatprep.subr.mxu0 0.0
    %3258 = vmatpush1.msra.mxu0 0.0
    %3259 = vmatprep.subr.mxu0 0.0
    %3260 = vmatpush1.msra.mxu0 0.0
    %3261 = vmatprep.subr.mxu0 0.0
    %3262 = vmatpush1.msra.mxu0 0.0
    %3263 = vmatprep.subr.mxu0 0.0
    %3264 = vmatpush1.msra.mxu0 0.0
    %3265 = vmatprep.subr.mxu0 0.0
    %3266 = vmatpush1.msra.mxu0 0.0
    %3267 = vmatprep.subr.mxu0 0.0
    %3268 = vmatpush1.msra.mxu0 0.0
    %3269 = vmatprep.subr.mxu0 0.0
    %3270 = vmatpush1.msra.mxu0 %v3081
    %3271 = vmatprep.subr.mxu0 0.0
    %3272 = vmatpush1.msra.mxu0 %v3079
    %3273 = vmatprep.subr.mxu0 0.0
    %3274 = vmatpush2.msra.mxu0 0.0
    %3275 = vmatprep.subr.mxu0 0.0
    %3276 = vmatpush2.msra.mxu0 0.0
    %3277 = vmatprep.subr.mxu0 0.0
    %3278 = vmatpush2.msra.mxu0 0.0
    %3279 = vmatprep.subr.mxu0 0.0
    %3280 = vmatpush2.msra.mxu0 0.0
    %3281 = vmatprep.subr.mxu0 0.0
    %3282 = vmatpush2.msra.mxu0 0.0
    %3283 = vmatprep.subr.mxu0 0.0
    %3284 = vmatpush2.msra.mxu0 0.0
    %3285 = vmatprep.subr.mxu0 0.0
    %3286 = vmatpush2.msra.mxu0 0.0
    %3287 = vmatprep.subr.mxu0 0.0
    %3288 = vmatpush2.msra.mxu0 0.0
    %3289 = vmatprep.subr.mxu0 0.0
    %3290 = vmatpush2.msra.mxu0 0.0
    %3291 = vmatprep.subr.mxu0 0.0
    %3292 = vmatpush2.msra.mxu0 0.0
    %3293 = vmatprep.subr.mxu0 0.0
    %3294 = vmatpush2.msra.mxu0 0.0
    %3295 = vmatprep.subr.mxu0 0.0
    %3296 = vmatpush2.msra.mxu0 0.0
    %3297 = vmatprep.subr.mxu0 0.0
    %3298 = vmatpush2.msra.mxu0 0.0
    %3299 = vmatprep.subr.mxu0 0.0
    %3300 = vmatpush2.msra.mxu0 0.0
    %3301 = vmatprep.subr.mxu0 0.0
    %3302 = vmatpush2.msra.mxu0 0.0
    %3303 = vmatprep.subr.mxu0 0.0
    %3304 = vmatpush2.msra.mxu0 0.0
    %3305 = vmatprep.mubr.f32.mxu0 0.0
    %3306 = vmatmul.mubr.f32.gmra.mxu0 %v3169
    %v3307 = vpop.f32.mrf.mxu0
    %v3308 = vadd.f32 0.0, %v3307
    %v3309 = vpop.f32.mrf.mxu0
    %3310 = vdwg.mxu0
    %v3312 = vsel %vm3043, %v3308, 0
    %3314 = vmatprep.subr.mxu0 0.0
    %3315 = vmatpush1.msra.mxu0 0.0
    %3316 = vmatprep.subr.mxu0 0.0
    %3317 = vmatpush1.msra.mxu0 0.0
    %3318 = vmatprep.subr.mxu0 0.0
    %3319 = vmatpush1.msra.mxu0 0.0
    %3320 = vmatprep.subr.mxu0 0.0
    %3321 = vmatpush1.msra.mxu0 0.0
    %3322 = vmatprep.subr.mxu0 0.0
    %3323 = vmatpush1.msra.mxu0 0.0
    %3324 = vmatprep.subr.mxu0 0.0
    %3325 = vmatpush1.msra.mxu0 0.0
    %3326 = vmatprep.subr.mxu0 0.0
    %3327 = vmatpush1.msra.mxu0 0.0
    %3328 = vmatprep.subr.mxu0 0.0
    %3329 = vmatpush1.msra.mxu0 0.0
    %3330 = vmatprep.subr.mxu0 0.0
    %3331 = vmatpush1.msra.mxu0 0.0
    %3332 = vmatprep.subr.mxu0 0.0
    %3333 = vmatpush1.msra.mxu0 0.0
    %3334 = vmatprep.subr.mxu0 0.0
    %3335 = vmatpush1.msra.mxu0 0.0
    %3336 = vmatprep.subr.mxu0 0.0
    %3337 = vmatpush1.msra.mxu0 0.0
    %3338 = vmatprep.subr.mxu0 0.0
    %3339 = vmatpush1.msra.mxu0 0.0
    %3340 = vmatprep.subr.mxu0 0.0
    %3341 = vmatpush1.msra.mxu0 0.0
    %3342 = vmatprep.subr.mxu0 0.0
    %3343 = vmatpush1.msra.mxu0 0.0
    %3344 = vmatprep.subr.mxu0 0.0
    %3345 = vmatpush1.msra.mxu0 %v3083
    %3346 = vmatprep.subr.mxu0 0.0
    %3347 = vmatpush2.msra.mxu0 0.0
    %3348 = vmatprep.subr.mxu0 0.0
    %3349 = vmatpush2.msra.mxu0 0.0
    %3350 = vmatprep.subr.mxu0 0.0
    %3351 = vmatpush2.msra.mxu0 0.0
    %3352 = vmatprep.subr.mxu0 0.0
    %3353 = vmatpush2.msra.mxu0 0.0
    %3354 = vmatprep.subr.mxu0 0.0
    %3355 = vmatpush2.msra.mxu0 0.0
    %3356 = vmatprep.subr.mxu0 0.0
    %3357 = vmatpush2.msra.mxu0 0.0
    %3358 = vmatprep.subr.mxu0 0.0
    %3359 = vmatpush2.msra.mxu0 0.0
    %3360 = vmatprep.subr.mxu0 0.0
    %3361 = vmatpush2.msra.mxu0 0.0
    %3362 = vmatprep.subr.mxu0 0.0
    %3363 = vmatpush2.msra.mxu0 0.0
    %3364 = vmatprep.subr.mxu0 0.0
    %3365 = vmatpush2.msra.mxu0 0.0
    %3366 = vmatprep.subr.mxu0 0.0
    %3367 = vmatpush2.msra.mxu0 0.0
    %3368 = vmatprep.subr.mxu0 0.0
    %3369 = vmatpush2.msra.mxu0 0.0
    %3370 = vmatprep.subr.mxu0 0.0
    %3371 = vmatpush2.msra.mxu0 0.0
    %3372 = vmatprep.subr.mxu0 0.0
    %3373 = vmatpush2.msra.mxu0 0.0
    %3374 = vmatprep.subr.mxu0 0.0
    %3375 = vmatpush2.msra.mxu0 0.0
    %3376 = vmatprep.subr.mxu0 0.0
    %3377 = vmatpush2.msra.mxu0 0.0
    %3378 = vmatprep.mubr.f32.mxu0 0.0
    %3379 = vmatmul.mubr.f32.gmra.mxu0 %v3312
    %v3380 = vpop.f32.mrf.mxu0
    %v3381 = vadd.f32 0.0, %v3380
    %v3382 = vpop.f32.mrf.mxu0
    %3383 = vdwg.mxu0
    %v3384 = vrcp.pop %v3381
    %v3385 = vmul.f32 %v3238, %v3384
    %v3386 = vld [vmem:[#allocation6 + $0x260] sm:$0xff]
    %v3387 = vld [vmem:[#allocation6 + $0x270] sm:$0xff]
    %v3388 = vld [vmem:[#allocation6 + $0x280] sm:$0xff]
    %v3389 = vld [vmem:[#allocation6 + $0x290] sm:$0xff]
    %v3390 = vld [vmem:[#allocation6 + $0x2a0] sm:$0xff]
    %v3391 = vld [vmem:[#allocation6 + $0x2b0] sm:$0xff]
    %v3392 = vld [vmem:[#allocation6 + $0x2c0] sm:$0xff]
    %v3393 = vld [vmem:[#allocation6 + $0x2d0] sm:$0xff]
    %v3394 = vld [vmem:[#allocation6 + $0x450] ss:$0 sm:$0xff]
    %v3396 = vsel %vm153, %v3385, 0
    %3398 = vmatprep.subr.mxu0 0.0
    %3399 = vmatpush1.msra.mxu0 0.0
    %3400 = vmatprep.subr.mxu0 0.0
    %3401 = vmatpush1.msra.mxu0 0.0
    %3402 = vmatprep.subr.mxu0 0.0
    %3403 = vmatpush1.msra.mxu0 0.0
    %3404 = vmatprep.subr.mxu0 0.0
    %3405 = vmatpush1.msra.mxu0 0.0
    %3406 = vmatprep.subr.mxu0 0.0
    %3407 = vmatpush1.msra.mxu0 0.0
    %3408 = vmatprep.subr.mxu0 0.0
    %3409 = vmatpush1.msra.mxu0 0.0
    %3410 = vmatprep.subr.mxu0 0.0
    %3411 = vmatpush1.msra.mxu0 0.0
    %3412 = vmatprep.subr.mxu0 0.0
    %3413 = vmatpush1.msra.mxu0 0.0
    %3414 = vmatprep.subr.mxu0 0.0
    %3415 = vmatpush1.msra.mxu0 %v3393
    %3416 = vmatprep.subr.mxu0 0.0
    %3417 = vmatpush1.msra.mxu0 %v3392
    %3418 = vmatprep.subr.mxu0 0.0
    %3419 = vmatpush1.msra.mxu0 %v3391
    %3420 = vmatprep.subr.mxu0 0.0
    %3421 = vmatpush1.msra.mxu0 %v3390
    %3422 = vmatprep.subr.mxu0 0.0
    %3423 = vmatpush1.msra.mxu0 %v3389
    %3424 = vmatprep.subr.mxu0 0.0
    %3425 = vmatpush1.msra.mxu0 %v3388
    %3426 = vmatprep.subr.mxu0 0.0
    %3427 = vmatpush1.msra.mxu0 %v3387
    %3428 = vmatprep.subr.mxu0 0.0
    %3429 = vmatpush1.msra.mxu0 %v3386
    %3430 = vmatprep.subr.mxu0 0.0
    %3431 = vmatpush2.msra.mxu0 0.0
    %3432 = vmatprep.subr.mxu0 0.0
    %3433 = vmatpush2.msra.mxu0 0.0
    %3434 = vmatprep.subr.mxu0 0.0
    %3435 = vmatpush2.msra.mxu0 0.0
    %3436 = vmatprep.subr.mxu0 0.0
    %3437 = vmatpush2.msra.mxu0 0.0
    %3438 = vmatprep.subr.mxu0 0.0
    %3439 = vmatpush2.msra.mxu0 0.0
    %3440 = vmatprep.subr.mxu0 0.0
    %3441 = vmatpush2.msra.mxu0 0.0
    %3442 = vmatprep.subr.mxu0 0.0
    %3443 = vmatpush2.msra.mxu0 0.0
    %3444 = vmatprep.subr.mxu0 0.0
    %3445 = vmatpush2.msra.mxu0 0.0
    %3446 = vmatprep.subr.mxu0 0.0
    %3447 = vmatpush2.msra.mxu0 0.0
    %3448 = vmatprep.subr.mxu0 0.0
    %3449 = vmatpush2.msra.mxu0 0.0
    %3450 = vmatprep.subr.mxu0 0.0
    %3451 = vmatpush2.msra.mxu0 0.0
    %3452 = vmatprep.subr.mxu0 0.0
    %3453 = vmatpush2.msra.mxu0 0.0
    %3454 = vmatprep.subr.mxu0 0.0
    %3455 = vmatpush2.msra.mxu0 0.0
    %3456 = vmatprep.subr.mxu0 0.0
    %3457 = vmatpush2.msra.mxu0 0.0
    %3458 = vmatprep.subr.mxu0 0.0
    %3459 = vmatpush2.msra.mxu0 0.0
    %3460 = vmatprep.subr.mxu0 0.0
    %3461 = vmatpush2.msra.mxu0 0.0
    %3462 = vmatprep.mubr.f32.mxu0 0.0
    %3463 = vmatmul.mubr.f32.gmra.mxu0 %v3396
    %v3464 = vpop.f32.mrf.mxu0
    %v3465 = vadd.f32 %v3394, %v3464
    %v3466 = vpop.f32.mrf.mxu0
    %3467 = vdwg.mxu0
    %v3468 = vmul.f32 %v3465, 0.5
    %v3469 = vmul.f32 %v3465, 0.70710677
    %v3470 = verf.f32.pop %v3469
    %v3471 = vadd.f32 %v3470, 1.0
    %v3472 = vmul.f32 %v3468, %v3471
    %v3473 = vld [vmem:[#allocation6 + $0x2e0] sm:$0xff]
    %v3474 = vld [vmem:[#allocation6 + $0x2f0] sm:$0xff]
    %v3475 = vld [vmem:[#allocation6 + $0x300] sm:$0xff]
    %v3476 = vld [vmem:[#allocation6 + $0x310] sm:$0xff]
    %v3477 = vld [vmem:[#allocation6 + $0x320] sm:$0xff]
    %v3478 = vld [vmem:[#allocation6 + $0x330] sm:$0xff]
    %v3479 = vld [vmem:[#allocation6 + $0x340] sm:$0xff]
    %v3480 = vld [vmem:[#allocation6 + $0x350] sm:$0xff]
    %v3481 = vld [vmem:[#allocation6 + $0x460] ss:$0 sm:$0xff]
    %v3483 = vsel %vm153, %v3472, 0
    %3485 = vmatprep.subr.mxu0 0.0
    %3486 = vmatpush1.msra.mxu0 0.0
    %3487 = vmatprep.subr.mxu0 0.0
    %3488 = vmatpush1.msra.mxu0 0.0
    %3489 = vmatprep.subr.mxu0 0.0
    %3490 = vmatpush1.msra.mxu0 0.0
    %3491 = vmatprep.subr.mxu0 0.0
    %3492 = vmatpush1.msra.mxu0 0.0
    %3493 = vmatprep.subr.mxu0 0.0
    %3494 = vmatpush1.msra.mxu0 0.0
    %3495 = vmatprep.subr.mxu0 0.0
    %3496 = vmatpush1.msra.mxu0 0.0
    %3497 = vmatprep.subr.mxu0 0.0
    %3498 = vmatpush1.msra.mxu0 0.0
    %3499 = vmatprep.subr.mxu0 0.0
    %3500 = vmatpush1.msra.mxu0 0.0
    %3501 = vmatprep.subr.mxu0 0.0
    %3502 = vmatpush1.msra.mxu0 %v3480
    %3503 = vmatprep.subr.mxu0 0.0
    %3504 = vmatpush1.msra.mxu0 %v3479
    %3505 = vmatprep.subr.mxu0 0.0
    %3506 = vmatpush1.msra.mxu0 %v3478
    %3507 = vmatprep.subr.mxu0 0.0
    %3508 = vmatpush1.msra.mxu0 %v3477
    %3509 = vmatprep.subr.mxu0 0.0
    %3510 = vmatpush1.msra.mxu0 %v3476
    %3511 = vmatprep.subr.mxu0 0.0
    %3512 = vmatpush1.msra.mxu0 %v3475
    %3513 = vmatprep.subr.mxu0 0.0
    %3514 = vmatpush1.msra.mxu0 %v3474
    %3515 = vmatprep.subr.mxu0 0.0
    %3516 = vmatpush1.msra.mxu0 %v3473
    %3517 = vmatprep.subr.mxu0 0.0
    %3518 = vmatpush2.msra.mxu0 0.0
    %3519 = vmatprep.subr.mxu0 0.0
    %3520 = vmatpush2.msra.mxu0 0.0
    %3521 = vmatprep.subr.mxu0 0.0
    %3522 = vmatpush2.msra.mxu0 0.0
    %3523 = vmatprep.subr.mxu0 0.0
    %3524 = vmatpush2.msra.mxu0 0.0
    %3525 = vmatprep.subr.mxu0 0.0
    %3526 = vmatpush2.msra.mxu0 0.0
    %3527 = vmatprep.subr.mxu0 0.0
    %3528 = vmatpush2.msra.mxu0 0.0
    %3529 = vmatprep.subr.mxu0 0.0
    %3530 = vmatpush2.msra.mxu0 0.0
    %3531 = vmatprep.subr.mxu0 0.0
    %3532 = vmatpush2.msra.mxu0 0.0
    %3533 = vmatprep.subr.mxu0 0.0
    %3534 = vmatpush2.msra.mxu0 0.0
    %3535 = vmatprep.subr.mxu0 0.0
    %3536 = vmatpush2.msra.mxu0 0.0
    %3537 = vmatprep.subr.mxu0 0.0
    %3538 = vmatpush2.msra.mxu0 0.0
    %3539 = vmatprep.subr.mxu0 0.0
    %3540 = vmatpush2.msra.mxu0 0.0
    %3541 = vmatprep.subr.mxu0 0.0
    %3542 = vmatpush2.msra.mxu0 0.0
    %3543 = vmatprep.subr.mxu0 0.0
    %3544 = vmatpush2.msra.mxu0 0.0
    %3545 = vmatprep.subr.mxu0 0.0
    %3546 = vmatpush2.msra.mxu0 0.0
    %3547 = vmatprep.subr.mxu0 0.0
    %3548 = vmatpush2.msra.mxu0 0.0
    %3549 = vmatprep.mubr.f32.mxu0 0.0
    %3550 = vmatmul.mubr.f32.gmra.mxu0 %v3483
    %v3551 = vpop.f32.mrf.mxu0
    %v3552 = vadd.f32 %v3481, %v3551
    %v3553 = vpop.f32.mrf.mxu0
    %3554 = vdwg.mxu0
    %vm3555 = vcmask 123904
    %3556 = vst.msk [vmem:[#allocation9] sm:$0x3] %vm3555, %v3552
    // Predicated region
    $region14: #{virtuoso_forward.1} parent=1 // pred_check
      _
    $region15: #{virtuoso_forward.1} parent=1 // pred_check_branch
      %3558 = sbr.rel (0) target = $region17
    $region16: #{virtuoso_forward.1} parent=1 // pred_region
      %s3560 = ssub.s32 32, 32
      %3561 = vsyncadd [#allocation8], %s3560
      %s3563 = sshll.u32 [#allocation9], 4
      %s3564 = int_to_ptr.vmem [resolvable:$true] %s3563
      %3566 = dma.vmem_to_hbm [thread:$0]  %s3564, 32, %s2, [#allocation8]
    $region17: #{virtuoso_forward.1} parent=1 // pred_fallthru
      _
    // Predicated region
    $region18: #{virtuoso_forward.1} parent=1 // pred_check
      _
    $region19: #{virtuoso_forward.1} parent=1 // pred_check_branch
      %3568 = sbr.rel (0) target = $region21
    $region20: #{virtuoso_forward.1} parent=1 // pred_region
      %3569 = dma.done [#allocation8], 32
    $region21: #{virtuoso_forward.1} parent=1 // pred_fallthru
      _
    %3570 = vsyncpa [#allocation7], 1
    %3571 = vsyncpa [#allocation8], 1

</llo_original>
